<compile_context>
chip_gen: v5e
topology: v5e:2x2
jax: 0.10.0
libtpu: 0.0.40
codegen_flags: <defaults>
</compile_context>

<pallas_src>
import jax
import jax.numpy as jnp
from jax.experimental import pallas as pl
from jax.experimental.pallas import tpu as pltpu

LATENT_DIM = 20
IN_DIM = 28 * 28          # 784
HID_DIM = 400

LAT_PAD = 128             # latent padded to one full lane group
IN_PAD = 896              # 7 * 128
HID_PAD = 512             # 4 * 128
HEAD_PAD = 2 * LAT_PAD    # fused [mu | log_var] head, 256 lanes
LAT_SLAB = 3 * LAT_PAD    # packed [mu | log_var | z] output, 384 lanes

BM_MAX = 256              # batch tile (multiple of 16; fills MXU M on v6e/v7x)


def _round_up(x, m):
    return ((x + m - 1) // m) * m


def _vae_kernel(x_ref, eps_ref,
                w1_ref, b1_ref,
                wh_ref, bh_ref,
                w3_ref, b3_ref,
                w4_ref, b4_ref,
                recon_ref, lat_ref):
    """Fused VAE forward on one batch tile: encode -> reparameterize -> decode."""
    # ---- encode ----
    x = x_ref[...]                                                     # (BM, 896) bf16
    h1 = jnp.dot(x, w1_ref[...], preferred_element_type=jnp.float32) + b1_ref[...]
    h1 = jnp.maximum(h1, 0.0)                                          # (BM, 512) f32

    head = jnp.dot(h1.astype(jnp.bfloat16), wh_ref[...],
                   preferred_element_type=jnp.float32) + bh_ref[...]   # (BM, 256)
    mu = head[:, :LAT_PAD]                                             # (BM, 128)
    log_var = head[:, LAT_PAD:]                                        # (BM, 128)

    # ---- reparameterize ----  (padded lanes: mu = eps = 0 -> z = 0)
    std = jnp.exp(0.5 * log_var)
    z = mu + eps_ref[...] * std                                        # (BM, 128) f32

    # ---- decode ----
    h3 = jnp.dot(z.astype(jnp.bfloat16), w3_ref[...],
                 preferred_element_type=jnp.float32) + b3_ref[...]
    h3 = jnp.maximum(h3, 0.0)                                          # (BM, 512)

    logits = jnp.dot(h3.astype(jnp.bfloat16), w4_ref[...],
                     preferred_element_type=jnp.float32) + b4_ref[...]
    recon_ref[...] = jax.nn.sigmoid(logits)                            # (BM, 896)

    # lane-dense packed latent outputs (128-aligned slices -> unmasked stores)
    lat_ref[:, 0:LAT_PAD] = mu
    lat_ref[:, LAT_PAD:2 * LAT_PAD] = log_var
    lat_ref[:, 2 * LAT_PAD:3 * LAT_PAD] = z


@jax.jit
def vae_forward(x_img, eps, params):
    """x_img: (B, 1, 28, 28) f32 NCHW.  Returns (recon_x, mu, log_var, z)."""
    (w1, b1, wh, bh, w3, b3, w4, b4) = params
    B = x_img.shape[0]
    x = x_img.reshape(B, IN_DIM).astype(jnp.bfloat16)                  # x.view(-1, 784)

    # batch tile: multiple of 16 sublanes (native bf16 packing), capped at BM_MAX
    bm = min(BM_MAX, _round_up(B, 16))
    b_pad = _round_up(B, bm)
    n_tiles = b_pad // bm

    x_p = jnp.pad(x, ((0, b_pad - B), (0, IN_PAD - IN_DIM)))
    eps_p = jnp.pad(eps.astype(jnp.float32),
                    ((0, b_pad - B), (0, LAT_PAD - LATENT_DIM)))

    def batch_spec(lanes):
        return pl.BlockSpec((bm, lanes), lambda i: (i, 0))

    def weight_spec(shape):
        # same block for every grid step -> stays VMEM-resident across tiles
        return pl.BlockSpec(shape, lambda i: (0, 0))

    out_shapes = (
        jax.ShapeDtypeStruct((b_pad, IN_PAD), jnp.float32),      # recon (padded)
        jax.ShapeDtypeStruct((b_pad, LAT_SLAB), jnp.float32),    # [mu | log_var | z]
    )

    recon_p, lat_p = pl.pallas_call(
        _vae_kernel,
        out_shape=out_shapes,
        grid_spec=pltpu.PrefetchScalarGridSpec(
            num_scalar_prefetch=0,
            grid=(n_tiles,),
            in_specs=[
                batch_spec(IN_PAD),          # x (bf16)
                batch_spec(LAT_PAD),         # eps (f32)
                weight_spec(w1.shape), weight_spec(b1.shape),
                weight_spec(wh.shape), weight_spec(bh.shape),
                weight_spec(w3.shape), weight_spec(b3.shape),
                weight_spec(w4.shape), weight_spec(b4.shape),
            ],
            out_specs=(batch_spec(IN_PAD), batch_spec(LAT_SLAB)),
        ),
        compiler_params=pltpu.CompilerParams(
            dimension_semantics=("parallel",),   # batch axis -> megacore sharding
            vmem_limit_bytes=24 << 20,           # headroom under v7x 64 MiB VMEM
        ),
    )(x_p, eps_p, w1, b1, wh, bh, w3, b3, w4, b4)

    recon = recon_p[:B, :IN_DIM]
    mu = lat_p[:B, 0:LATENT_DIM]
    log_var = lat_p[:B, LAT_PAD:LAT_PAD + LATENT_DIM]
    z = lat_p[:B, 2 * LAT_PAD:2 * LAT_PAD + LATENT_DIM]
    return recon, mu, log_var, z


def init_params(key):
    """nn.Linear-style init on the true (unpadded) shapes, then zero-padded to
    lane-aligned shapes and pre-transposed to (in, out).

    Weights are bf16 (MXU-native, half the HBM traffic); biases stay f32.
    Zero padding keeps the math bit-compatible: ReLU(0)=0 and zero weight
    rows/cols contribute nothing.
    """
    def linear(key, fan_in, fan_out):
        kw, kb = jax.random.split(key)
        bound = 1.0 / jnp.sqrt(fan_in)
        w = jax.random.uniform(kw, (fan_in, fan_out), jnp.float32, -bound, bound)
        b = jax.random.uniform(kb, (fan_out,), jnp.float32, -bound, bound)
        return w, b

    k1, k21, k22, k3, k4 = jax.random.split(key, 5)
    w1, b1 = linear(k1, IN_DIM, HID_DIM)
    w21, b21 = linear(k21, HID_DIM, LATENT_DIM)
    w22, b22 = linear(k22, HID_DIM, LATENT_DIM)
    w3, b3 = linear(k3, LATENT_DIM, HID_DIM)
    w4, b4 = linear(k4, HID_DIM, IN_DIM)

    def pad_w(w, pad_in, pad_out):
        return (jnp.zeros((pad_in, pad_out), jnp.float32)
                .at[:w.shape[0], :w.shape[1]].set(w)
                .astype(jnp.bfloat16))

    def pad_b(b, pad_out):
        return jnp.zeros((1, pad_out), jnp.float32).at[0, :b.shape[0]].set(b)

    w1_p, b1_p = pad_w(w1, IN_PAD, HID_PAD), pad_b(b1, HID_PAD)

    # fused encoder head: lanes [0:128) = mu head, lanes [128:256) = log_var head
    wh_p = (jnp.zeros((HID_PAD, HEAD_PAD), jnp.float32)
            .at[:HID_DIM, :LATENT_DIM].set(w21)
            .at[:HID_DIM, LAT_PAD:LAT_PAD + LATENT_DIM].set(w22)
            .astype(jnp.bfloat16))
    bh_p = (jnp.zeros((1, HEAD_PAD), jnp.float32)
            .at[0, :LATENT_DIM].set(b21)
            .at[0, LAT_PAD:LAT_PAD + LATENT_DIM].set(b22))

    w3_p, b3_p = pad_w(w3, LAT_PAD, HID_PAD), pad_b(b3, HID_PAD)
    w4_p, b4_p = pad_w(w4, HID_PAD, IN_PAD), pad_b(b4, IN_PAD)

    return (w1_p, b1_p, wh_p, bh_p, w3_p, b3_p, w4_p, b4_p)


def vae_forward_ref(x_img, eps, params):
    """Pure-JAX reference applying the identical padding / bf16 casts."""
    (w1, b1, wh, bh, w3, b3, w4, b4) = params
    B = x_img.shape[0]
    x = jnp.zeros((B, IN_PAD), jnp.float32).at[:, :IN_DIM].set(
        x_img.reshape(B, IN_DIM))
    eps_p = jnp.zeros((B, LAT_PAD), jnp.float32).at[:, :LATENT_DIM].set(eps)

    def mm(a, w, b):
        return jnp.dot(a.astype(jnp.bfloat16), w,
                       preferred_element_type=jnp.float32) + b

    h1 = jnp.maximum(mm(x, w1, b1), 0.0)
    head = mm(h1, wh, bh)
    mu, log_var = head[:, :LAT_PAD], head[:, LAT_PAD:]
    z = mu + eps_p * jnp.exp(0.5 * log_var)
    h3 = jnp.maximum(mm(z, w3, b3), 0.0)
    recon = jax.nn.sigmoid(mm(h3, w4, b4))
    return (recon[:, :IN_DIM], mu[:, :LATENT_DIM],
            log_var[:, :LATENT_DIM], z[:, :LATENT_DIM])


if __name__ == "__main__":
    key = jax.random.PRNGKey(0)
    k_param, k_x, k_eps = jax.random.split(key, 3)

    B = 2
    x_img = jax.random.uniform(k_x, (B, 1, 28, 28), jnp.float32)      # NCHW "MNIST" batch
    # eps ~ N(0,1), same role as torch.randn_like(std) in reparameterize
    eps = jax.random.normal(k_eps, (B, LATENT_DIM), jnp.float32)

    params = init_params(k_param)

    outs = jax.block_until_ready(vae_forward(x_img, eps, params))
    recon, mu, log_var, z = outs

    # sanity check against pure-JAX reference (same bf16-weight path)
    refs = vae_forward_ref(x_img, eps, params)
    for name, o, r in zip(("recon", "mu", "log_var", "z"), outs, refs):
        assert o.shape == r.shape and o.dtype == r.dtype, (name, o.shape, o.dtype)
        err = float(jnp.max(jnp.abs(o - r)))
        assert err < 5e-3, (name, err)

    assert recon.shape == (B, IN_DIM)
    assert mu.shape == (B, LATENT_DIM)
    assert log_var.shape == (B, LATENT_DIM)
    assert z.shape == (B, LATENT_DIM)

    print("KERNEL_OK")
</pallas_src>

<mosaic_0001>
module attributes {stable_mosaic.version = 11 : i64} {
  func.func @_vae_kernel(%arg0: i32, %arg1: memref<16x896xbf16, #tpu.memory_space<vmem>>, %arg2: memref<16x128xf32, #tpu.memory_space<vmem>>, %arg3: memref<896x512xbf16, #tpu.memory_space<vmem>>, %arg4: memref<1x512xf32, #tpu.memory_space<vmem>>, %arg5: memref<512x256xbf16, #tpu.memory_space<vmem>>, %arg6: memref<1x256xf32, #tpu.memory_space<vmem>>, %arg7: memref<128x512xbf16, #tpu.memory_space<vmem>>, %arg8: memref<1x512xf32, #tpu.memory_space<vmem>>, %arg9: memref<512x896xbf16, #tpu.memory_space<vmem>>, %arg10: memref<1x896xf32, #tpu.memory_space<vmem>>, %arg11: memref<16x896xf32, #tpu.memory_space<vmem>>, %arg12: memref<16x384xf32, #tpu.memory_space<vmem>>) attributes {dimension_semantics = [#tpu.dimension_semantics<parallel>], iteration_bounds = array<i64: 1>, scalar_prefetch = 0 : i64, scratch_operands = 0 : i64, tpu.core_type = #tpu.core_type<tc>, window_params = [{transform_indices = @transform_0, window_bounds = array<i64: 16, 896>}, {transform_indices = @transform_1, window_bounds = array<i64: 16, 128>}, {pipeline_mode = #tpu.pipeline_mode<synchronous>, transform_indices = @transform_2, window_bounds = array<i64: 896, 512>}, {pipeline_mode = #tpu.pipeline_mode<synchronous>, transform_indices = @transform_3, window_bounds = array<i64: 1, 512>}, {pipeline_mode = #tpu.pipeline_mode<synchronous>, transform_indices = @transform_4, window_bounds = array<i64: 512, 256>}, {pipeline_mode = #tpu.pipeline_mode<synchronous>, transform_indices = @transform_5, window_bounds = array<i64: 1, 256>}, {pipeline_mode = #tpu.pipeline_mode<synchronous>, transform_indices = @transform_6, window_bounds = array<i64: 128, 512>}, {pipeline_mode = #tpu.pipeline_mode<synchronous>, transform_indices = @transform_7, window_bounds = array<i64: 1, 512>}, {pipeline_mode = #tpu.pipeline_mode<synchronous>, transform_indices = @transform_8, window_bounds = array<i64: 512, 896>}, {pipeline_mode = #tpu.pipeline_mode<synchronous>, transform_indices = @transform_9, window_bounds = array<i64: 1, 896>}, {transform_indices = @transform_10, window_bounds = array<i64: 16, 896>}, {transform_indices = @transform_11, window_bounds = array<i64: 16, 384>}]} {
    %c0 = arith.constant 0 : index
    %c0_0 = arith.constant 0 : index
    %0 = vector.load %arg1[%c0, %c0_0] : memref<16x896xbf16, #tpu.memory_space<vmem>>, vector<16x896xbf16>
    %c0_1 = arith.constant 0 : index
    %c0_2 = arith.constant 0 : index
    %1 = vector.load %arg3[%c0_1, %c0_2] : memref<896x512xbf16, #tpu.memory_space<vmem>>, vector<896x512xbf16>
    %cst = arith.constant dense<0.000000e+00> : vector<16x512xf32>
    %2 = tpu.matmul %0, %1, %cst {dimension_numbers = #tpu.dot_dimension_numbers<[1], [0], [0], [1], [0, 0, 1, 1], [], []>} : vector<16x896xbf16>, vector<896x512xbf16>, vector<16x512xf32> -> vector<16x512xf32>
    %c0_3 = arith.constant 0 : index
    %c0_4 = arith.constant 0 : index
    %3 = vector.load %arg4[%c0_3, %c0_4] : memref<1x512xf32, #tpu.memory_space<vmem>>, vector<1x512xf32>
    %4 = vector.broadcast %3 : vector<1x512xf32> to vector<16x512xf32>
    %5 = arith.addf %2, %4 : vector<16x512xf32>
    %cst_5 = arith.constant 0.000000e+00 : f32
    %6 = vector.broadcast %cst_5 : f32 to vector<16x512xf32>
    %7 = arith.maximumf %5, %6 : vector<16x512xf32>
    %8 = arith.truncf %7 : vector<16x512xf32> to vector<16x512xbf16>
    %c0_6 = arith.constant 0 : index
    %c0_7 = arith.constant 0 : index
    %9 = vector.load %arg5[%c0_6, %c0_7] : memref<512x256xbf16, #tpu.memory_space<vmem>>, vector<512x256xbf16>
    %cst_8 = arith.constant dense<0.000000e+00> : vector<16x256xf32>
    %10 = tpu.matmul %8, %9, %cst_8 {dimension_numbers = #tpu.dot_dimension_numbers<[1], [0], [0], [1], [0, 0, 1, 1], [], []>} : vector<16x512xbf16>, vector<512x256xbf16>, vector<16x256xf32> -> vector<16x256xf32>
    %c0_9 = arith.constant 0 : index
    %c0_10 = arith.constant 0 : index
    %11 = vector.load %arg6[%c0_9, %c0_10] : memref<1x256xf32, #tpu.memory_space<vmem>>, vector<1x256xf32>
    %12 = vector.broadcast %11 : vector<1x256xf32> to vector<16x256xf32>
    %13 = arith.addf %10, %12 : vector<16x256xf32>
    %14 = vector.extract_strided_slice %13 {offsets = [0, 0], sizes = [16, 128], strides = [1, 1]} : vector<16x256xf32> to vector<16x128xf32>
    %15 = vector.extract_strided_slice %13 {offsets = [0, 128], sizes = [16, 128], strides = [1, 1]} : vector<16x256xf32> to vector<16x128xf32>
    %cst_11 = arith.constant 5.000000e-01 : f32
    %16 = vector.broadcast %cst_11 : f32 to vector<16x128xf32>
    %17 = arith.mulf %16, %15 : vector<16x128xf32>
    %18 = math.exp %17 : vector<16x128xf32>
    %c0_12 = arith.constant 0 : index
    %c0_13 = arith.constant 0 : index
    %19 = vector.load %arg2[%c0_12, %c0_13] : memref<16x128xf32, #tpu.memory_space<vmem>>, vector<16x128xf32>
    %20 = arith.mulf %19, %18 : vector<16x128xf32>
    %21 = arith.addf %14, %20 : vector<16x128xf32>
    %22 = arith.truncf %21 : vector<16x128xf32> to vector<16x128xbf16>
    %c0_14 = arith.constant 0 : index
    %c0_15 = arith.constant 0 : index
    %23 = vector.load %arg7[%c0_14, %c0_15] : memref<128x512xbf16, #tpu.memory_space<vmem>>, vector<128x512xbf16>
    %cst_16 = arith.constant dense<0.000000e+00> : vector<16x512xf32>
    %24 = tpu.matmul %22, %23, %cst_16 {dimension_numbers = #tpu.dot_dimension_numbers<[1], [0], [0], [1], [0, 0, 1, 1], [], []>} : vector<16x128xbf16>, vector<128x512xbf16>, vector<16x512xf32> -> vector<16x512xf32>
    %c0_17 = arith.constant 0 : index
    %c0_18 = arith.constant 0 : index
    %25 = vector.load %arg8[%c0_17, %c0_18] : memref<1x512xf32, #tpu.memory_space<vmem>>, vector<1x512xf32>
    %26 = vector.broadcast %25 : vector<1x512xf32> to vector<16x512xf32>
    %27 = arith.addf %24, %26 : vector<16x512xf32>
    %cst_19 = arith.constant 0.000000e+00 : f32
    %28 = vector.broadcast %cst_19 : f32 to vector<16x512xf32>
    %29 = arith.maximumf %27, %28 : vector<16x512xf32>
    %30 = arith.truncf %29 : vector<16x512xf32> to vector<16x512xbf16>
    %c0_20 = arith.constant 0 : index
    %c0_21 = arith.constant 0 : index
    %31 = vector.load %arg9[%c0_20, %c0_21] : memref<512x896xbf16, #tpu.memory_space<vmem>>, vector<512x896xbf16>
    %cst_22 = arith.constant dense<0.000000e+00> : vector<16x896xf32>
    %32 = tpu.matmul %30, %31, %cst_22 {dimension_numbers = #tpu.dot_dimension_numbers<[1], [0], [0], [1], [0, 0, 1, 1], [], []>} : vector<16x512xbf16>, vector<512x896xbf16>, vector<16x896xf32> -> vector<16x896xf32>
    %c0_23 = arith.constant 0 : index
    %c0_24 = arith.constant 0 : index
    %33 = vector.load %arg10[%c0_23, %c0_24] : memref<1x896xf32, #tpu.memory_space<vmem>>, vector<1x896xf32>
    %34 = vector.broadcast %33 : vector<1x896xf32> to vector<16x896xf32>
    %35 = arith.addf %32, %34 : vector<16x896xf32>
    %36 = arith.negf %35 : vector<16x896xf32>
    %37 = math.exp %36 : vector<16x896xf32>
    %cst_25 = arith.constant 1.000000e+00 : f32
    %38 = vector.broadcast %cst_25 : f32 to vector<16x896xf32>
    %39 = arith.addf %38, %37 : vector<16x896xf32>
    %40 = arith.divf %38, %39 : vector<16x896xf32>
    %c0_26 = arith.constant 0 : index
    %c0_27 = arith.constant 0 : index
    %41 = vector.load %arg11[%c0_26, %c0_27] : memref<16x896xf32, #tpu.memory_space<vmem>>, vector<16x896xf32>
    tpu.vector_store %arg11[%c0_26, %c0_27], %40 {strides = array<i32>} : memref<16x896xf32, #tpu.memory_space<vmem>>, vector<16x896xf32>,
    %c0_28 = arith.constant 0 : index
    %c0_29 = arith.constant 0 : index
    %42 = vector.load %arg12[%c0_28, %c0_29] : memref<16x384xf32, #tpu.memory_space<vmem>>, vector<16x128xf32>
    tpu.vector_store %arg12[%c0_28, %c0_29], %14 {strides = array<i32>} : memref<16x384xf32, #tpu.memory_space<vmem>>, vector<16x128xf32>,
    %c0_30 = arith.constant 0 : index
    %c128 = arith.constant 128 : index
    %43 = vector.load %arg12[%c0_30, %c128] : memref<16x384xf32, #tpu.memory_space<vmem>>, vector<16x128xf32>
    tpu.vector_store %arg12[%c0_30, %c128], %15 {strides = array<i32>} : memref<16x384xf32, #tpu.memory_space<vmem>>, vector<16x128xf32>,
    %c0_31 = arith.constant 0 : index
    %c256 = arith.constant 256 : index
    %44 = vector.load %arg12[%c0_31, %c256] : memref<16x384xf32, #tpu.memory_space<vmem>>, vector<16x128xf32>
    tpu.vector_store %arg12[%c0_31, %c256], %21 {strides = array<i32>} : memref<16x384xf32, #tpu.memory_space<vmem>>, vector<16x128xf32>,
    return
  }
  func.func @transform_0(%arg0: i32) -> (i32, i32) {
    %c0_i32 = arith.constant 0 : i32
    %c0_i32_0 = arith.constant 0 : i32
    return %arg0, %c0_i32 : i32, i32
  }
  func.func @transform_1(%arg0: i32) -> (i32, i32) {
    %c0_i32 = arith.constant 0 : i32
    %c0_i32_0 = arith.constant 0 : i32
    return %arg0, %c0_i32 : i32, i32
  }
  func.func @transform_2(%arg0: i32) -> (i32, i32) {
    %c0_i32 = arith.constant 0 : i32
    %c0_i32_0 = arith.constant 0 : i32
    %c0_i32_1 = arith.constant 0 : i32
    return %c0_i32, %c0_i32_0 : i32, i32
  }
  func.func @transform_3(%arg0: i32) -> (i32, i32) {
    %c0_i32 = arith.constant 0 : i32
    %c0_i32_0 = arith.constant 0 : i32
    %c0_i32_1 = arith.constant 0 : i32
    return %c0_i32, %c0_i32_0 : i32, i32
  }
  func.func @transform_4(%arg0: i32) -> (i32, i32) {
    %c0_i32 = arith.constant 0 : i32
    %c0_i32_0 = arith.constant 0 : i32
    %c0_i32_1 = arith.constant 0 : i32
    return %c0_i32, %c0_i32_0 : i32, i32
  }
  func.func @transform_5(%arg0: i32) -> (i32, i32) {
    %c0_i32 = arith.constant 0 : i32
    %c0_i32_0 = arith.constant 0 : i32
    %c0_i32_1 = arith.constant 0 : i32
    return %c0_i32, %c0_i32_0 : i32, i32
  }
  func.func @transform_6(%arg0: i32) -> (i32, i32) {
    %c0_i32 = arith.constant 0 : i32
    %c0_i32_0 = arith.constant 0 : i32
    %c0_i32_1 = arith.constant 0 : i32
    return %c0_i32, %c0_i32_0 : i32, i32
  }
  func.func @transform_7(%arg0: i32) -> (i32, i32) {
    %c0_i32 = arith.constant 0 : i32
    %c0_i32_0 = arith.constant 0 : i32
    %c0_i32_1 = arith.constant 0 : i32
    return %c0_i32, %c0_i32_0 : i32, i32
  }
  func.func @transform_8(%arg0: i32) -> (i32, i32) {
    %c0_i32 = arith.constant 0 : i32
    %c0_i32_0 = arith.constant 0 : i32
    %c0_i32_1 = arith.constant 0 : i32
    return %c0_i32, %c0_i32_0 : i32, i32
  }
  func.func @transform_9(%arg0: i32) -> (i32, i32) {
    %c0_i32 = arith.constant 0 : i32
    %c0_i32_0 = arith.constant 0 : i32
    %c0_i32_1 = arith.constant 0 : i32
    return %c0_i32, %c0_i32_0 : i32, i32
  }
  func.func @transform_10(%arg0: i32) -> (i32, i32) {
    %c0_i32 = arith.constant 0 : i32
    %c0_i32_0 = arith.constant 0 : i32
    return %arg0, %c0_i32 : i32, i32
  }
  func.func @transform_11(%arg0: i32) -> (i32, i32) {
    %c0_i32 = arith.constant 0 : i32
    %c0_i32_0 = arith.constant 0 : i32
    return %arg0, %c0_i32 : i32, i32
  }
}

</mosaic_0001>

<llo_original>
// kernel: vae_forward.1
$region0: #{vae_forward.1}
  #allocation0 [shape = 'u32[]', space=smem, size = 0x4, offset = 0x4, fixed_abs, tag = 'smem constant byte address 0x4 - core index']
  #allocation1 [shape = 'u32[72,128]{1,0:T(1,128)}', space=vmem, size = 0x9000, scoped, tag = 'internal scratch']
  %s0 = inlined_call_operand.vmem [shape: bf16[16,896], index: 0, kind: input, shape index: {}]
  %s1 = inlined_call_operand.vmem [shape: f32[16,128], index: 1, kind: input, shape index: {}]
  %s2 = inlined_call_operand.hbm [shape: bf16[896,512], index: 2, kind: input, shape index: {}]
  %s3 = inlined_call_operand.vmem [shape: f32[1,512], index: 3, kind: input, shape index: {}]
  %s4 = inlined_call_operand.hbm [shape: bf16[512,256], index: 4, kind: input, shape index: {}]
  %s5 = inlined_call_operand.vmem [shape: f32[1,256], index: 5, kind: input, shape index: {}]
  %s6 = inlined_call_operand.hbm [shape: bf16[128,512], index: 6, kind: input, shape index: {}]
  %s7 = inlined_call_operand.vmem [shape: f32[1,512], index: 7, kind: input, shape index: {}]
  %s8 = inlined_call_operand.hbm [shape: bf16[512,896], index: 8, kind: input, shape index: {}]
  %s9 = inlined_call_operand.vmem [shape: f32[1,896], index: 9, kind: input, shape index: {}]
  %s10 = inlined_call_operand.vmem [shape: f32[16,896], index: 10, kind: output, shape index: {0}]
  %s11 = inlined_call_operand.vmem [shape: f32[16,384], index: 11, kind: output, shape index: {1}]
  %12 = xla_tuple %s10, %s11
  %s13 = sld [smem:[#allocation0]]
  $region74: #{vae_forward.1} parent=0
    _
  %s15 = ssub.s32 1, %s13
  %s16 = scalar_select 0, %s15, %s13
  $region1: #{vae_forward.1} parent=0
    #allocation2 [shape = 'u8[917504]{0}', space=vmem, size = 0xe0000, scoped, tag = 'input window, operand 2, single buffered']
    #allocation3 [shape = 's32[1]{0}', space=sflag, size = 0x4, scoped, tag = 'scoped memory for vae_forward.1']
    #allocation4 [shape = 'u8[262144]{0}', space=vmem, size = 0x40000, scoped, tag = 'input window, operand 4, single buffered']
    #allocation5 [shape = 's32[1]{0}', space=sflag, size = 0x4, scoped, tag = 'scoped memory for vae_forward.1']
    #allocation6 [shape = 'u8[131072]{0}', space=vmem, size = 0x20000, scoped, tag = 'input window, operand 6, single buffered']
    #allocation7 [shape = 'u8[917504]{0}', space=vmem, size = 0xe0000, scoped, tag = 'input window, operand 8, single buffered']
    #allocation8 [shape = 's32[1]{0}', space=sflag, size = 0x4, scoped, tag = 'scoped memory for vae_forward.1']
    %17 = vsyncpa [#allocation3], 0
    %18 = vsyncpa [#allocation5], 0
    %19 = vsyncpa [#allocation8], 0
    // Predicated region
    $region2: #{vae_forward.1} parent=1 // pred_check
      _
    $region3: #{vae_forward.1} parent=1 // pred_check_branch
      %21 = sbr.rel (0) target = $region5
    $region4: #{vae_forward.1} parent=1 // pred_region
      _
    $region5: #{vae_forward.1} parent=1 // pred_fallthru
      _
    // Predicated region
    $region6: #{vae_forward.1} parent=1 // pred_check
      _
    $region7: #{vae_forward.1} parent=1 // pred_check_branch
      %23 = sbr.rel (0) target = $region9
    $region8: #{vae_forward.1} parent=1 // pred_region
      _
    $region9: #{vae_forward.1} parent=1 // pred_fallthru
      _
    // Predicated region
    $region10: #{vae_forward.1} parent=1 // pred_check
      _
    $region11: #{vae_forward.1} parent=1 // pred_check_branch
      %25 = sbr.rel (0) target = $region13
    $region12: #{vae_forward.1} parent=1 // pred_region
      %27 = vsyncadd [#allocation3], 0
      %s28 = sshll.u32 %s2, 4
      %s29 = int_to_ptr.hbm [resolvable:$true] %s28
      %s30 = sshll.u32 [#allocation2], 4
      %s31 = int_to_ptr.vmem [resolvable:$true] %s30
      %36 = dma.hbm_to_vmem [thread:$0]  %s29, 28672, %s31, [#allocation3], 256, 256, 16
    $region13: #{vae_forward.1} parent=1 // pred_fallthru
      _
    // Predicated region
    $region14: #{vae_forward.1} parent=1 // pred_check
      _
    $region15: #{vae_forward.1} parent=1 // pred_check_branch
      %38 = sbr.rel (0) target = $region17
    $region16: #{vae_forward.1} parent=1 // pred_region
      _
    $region17: #{vae_forward.1} parent=1 // pred_fallthru
      _
    // Predicated region
    $region18: #{vae_forward.1} parent=1 // pred_check
      _
    $region19: #{vae_forward.1} parent=1 // pred_check_branch
      %40 = sbr.rel (0) target = $region21
    $region20: #{vae_forward.1} parent=1 // pred_region
      %42 = vsyncadd [#allocation5], 0
      %s43 = sshll.u32 %s4, 4
      %s44 = int_to_ptr.hbm [resolvable:$true] %s43
      %s45 = sshll.u32 [#allocation4], 4
      %s46 = int_to_ptr.vmem [resolvable:$true] %s45
      %51 = dma.hbm_to_vmem [thread:$0]  %s44, 8192, %s46, [#allocation5], 128, 128, 8
    $region21: #{vae_forward.1} parent=1 // pred_fallthru
      _
    // Predicated region
    $region22: #{vae_forward.1} parent=1 // pred_check
      _
    $region23: #{vae_forward.1} parent=1 // pred_check_branch
      %53 = sbr.rel (0) target = $region25
    $region24: #{vae_forward.1} parent=1 // pred_region
      _
    $region25: #{vae_forward.1} parent=1 // pred_fallthru
      _
    // Predicated region
    $region26: #{vae_forward.1} parent=1 // pred_check
      _
    $region27: #{vae_forward.1} parent=1 // pred_check_branch
      %55 = sbr.rel (0) target = $region29
    $region28: #{vae_forward.1} parent=1 // pred_region
      %57 = vsyncadd [#allocation5], 0
      %s58 = sshll.u32 %s6, 4
      %s59 = int_to_ptr.hbm [resolvable:$true] %s58
      %s60 = sshll.u32 [#allocation6], 4
      %s61 = int_to_ptr.vmem [resolvable:$true] %s60
      %66 = dma.hbm_to_vmem [thread:$0]  %s59, 4096, %s61, [#allocation5], 256, 256, 16
    $region29: #{vae_forward.1} parent=1 // pred_fallthru
      _
    // Predicated region
    $region30: #{vae_forward.1} parent=1 // pred_check
      _
    $region31: #{vae_forward.1} parent=1 // pred_check_branch
      %68 = sbr.rel (0) target = $region33
    $region32: #{vae_forward.1} parent=1 // pred_region
      _
    $region33: #{vae_forward.1} parent=1 // pred_fallthru
      _
    // Predicated region
    $region34: #{vae_forward.1} parent=1 // pred_check
      _
    $region35: #{vae_forward.1} parent=1 // pred_check_branch
      %70 = sbr.rel (0) target = $region37
    $region36: #{vae_forward.1} parent=1 // pred_region
      %72 = vsyncadd [#allocation8], 0
      %s73 = sshll.u32 %s8, 4
      %s74 = int_to_ptr.hbm [resolvable:$true] %s73
      %s75 = sshll.u32 [#allocation7], 4
      %s76 = int_to_ptr.vmem [resolvable:$true] %s75
      %81 = dma.hbm_to_vmem [thread:$0]  %s74, 28672, %s76, [#allocation8], 448, 448, 28
    $region37: #{vae_forward.1} parent=1 // pred_fallthru
      _
    // Predicated region
    $region38: #{vae_forward.1} parent=1 // pred_check
      _
    $region39: #{vae_forward.1} parent=1 // pred_check_branch
      %83 = sbr.rel (0) target = $region41
    $region40: #{vae_forward.1} parent=1 // pred_region
      _
    $region41: #{vae_forward.1} parent=1 // pred_fallthru
      _
    // Predicated region
    $region42: #{vae_forward.1} parent=1 // pred_check
      _
    $region43: #{vae_forward.1} parent=1 // pred_check_branch
      %85 = sbr.rel (0) target = $region45
    $region44: #{vae_forward.1} parent=1 // pred_region
      %87 = dma.done [#allocation3], 28672
    $region45: #{vae_forward.1} parent=1 // pred_fallthru
      _
    // Predicated region
    $region46: #{vae_forward.1} parent=1 // pred_check
      _
    $region47: #{vae_forward.1} parent=1 // pred_check_branch
      %89 = sbr.rel (0) target = $region49
    $region48: #{vae_forward.1} parent=1 // pred_region
      %91 = dma.done [#allocation5], 8192
    $region49: #{vae_forward.1} parent=1 // pred_fallthru
      _
    // Predicated region
    $region50: #{vae_forward.1} parent=1 // pred_check
      _
    $region51: #{vae_forward.1} parent=1 // pred_check_branch
      %93 = sbr.rel (0) target = $region53
    $region52: #{vae_forward.1} parent=1 // pred_region
      %95 = dma.done [#allocation5], 4096
    $region53: #{vae_forward.1} parent=1 // pred_fallthru
      _
    // Predicated region
    $region54: #{vae_forward.1} parent=1 // pred_check
      _
    $region55: #{vae_forward.1} parent=1 // pred_check_branch
      %97 = sbr.rel (0) target = $region57
    $region56: #{vae_forward.1} parent=1 // pred_region
      %99 = dma.done [#allocation8], 28672
    $region57: #{vae_forward.1} parent=1 // pred_fallthru
      _
    %v100 = vld [vmem:[%s0] sm:$0xff]
    %v101 = vld [vmem:[%s0 + $0x8] sm:$0xff]
    %v102 = vld [vmem:[%s0 + $0x10] sm:$0xff]
    %v103 = vld [vmem:[%s0 + $0x18] sm:$0xf]
    %v104 = vld [vmem:[%s0 + $0x1c] sm:$0xff]
    %v105 = vld [vmem:[%s0 + $0x24] sm:$0xff]
    %v106 = vld [vmem:[%s0 + $0x2c] sm:$0xff]
    %v107 = vld [vmem:[%s0 + $0x34] sm:$0xf]
    %v108 = vld [vmem:[#allocation2] sm:$0xff]
    %v109 = vld [vmem:[#allocation2 + $0x8] sm:$0xff]
    %v110 = vld [vmem:[#allocation2 + $0x10] sm:$0xff]
    %v111 = vld [vmem:[#allocation2 + $0x18] sm:$0xff]
    %v112 = vld [vmem:[#allocation2 + $0x20] sm:$0xff]
    %v113 = vld [vmem:[#allocation2 + $0x28] sm:$0xff]
    %v114 = vld [vmem:[#allocation2 + $0x30] sm:$0xff]
    %v115 = vld [vmem:[#allocation2 + $0x38] sm:$0xff]
    %v116 = vld [vmem:[#allocation2 + $0x40] sm:$0xff]
    %v117 = vld [vmem:[#allocation2 + $0x48] sm:$0xff]
    %v118 = vld [vmem:[#allocation2 + $0x50] sm:$0xff]
    %v119 = vld [vmem:[#allocation2 + $0x58] sm:$0xff]
    %v120 = vld [vmem:[#allocation2 + $0x60] sm:$0xff]
    %v121 = vld [vmem:[#allocation2 + $0x68] sm:$0xff]
    %v122 = vld [vmem:[#allocation2 + $0x70] sm:$0xff]
    %v123 = vld [vmem:[#allocation2 + $0x78] sm:$0xff]
    %v124 = vld [vmem:[#allocation2 + $0x80] sm:$0xff]
    %v125 = vld [vmem:[#allocation2 + $0x88] sm:$0xff]
    %v126 = vld [vmem:[#allocation2 + $0x90] sm:$0xff]
    %v127 = vld [vmem:[#allocation2 + $0x98] sm:$0xff]
    %v128 = vld [vmem:[#allocation2 + $0xa0] sm:$0xff]
    %v129 = vld [vmem:[#allocation2 + $0xa8] sm:$0xff]
    %v130 = vld [vmem:[#allocation2 + $0xb0] sm:$0xff]
    %v131 = vld [vmem:[#allocation2 + $0xb8] sm:$0xff]
    %v132 = vld [vmem:[#allocation2 + $0xc0] sm:$0xff]
    %v133 = vld [vmem:[#allocation2 + $0xc8] sm:$0xff]
    %v134 = vld [vmem:[#allocation2 + $0xd0] sm:$0xff]
    %v135 = vld [vmem:[#allocation2 + $0xd8] sm:$0xff]
    %v136 = vld [vmem:[#allocation2 + $0xe0] sm:$0xff]
    %v137 = vld [vmem:[#allocation2 + $0xe8] sm:$0xff]
    %v138 = vld [vmem:[#allocation2 + $0xf0] sm:$0xff]
    %v139 = vld [vmem:[#allocation2 + $0xf8] sm:$0xff]
    %v140 = vld [vmem:[#allocation2 + $0x100] sm:$0xff]
    %v141 = vld [vmem:[#allocation2 + $0x108] sm:$0xff]
    %v142 = vld [vmem:[#allocation2 + $0x110] sm:$0xff]
    %v143 = vld [vmem:[#allocation2 + $0x118] sm:$0xff]
    %v144 = vld [vmem:[#allocation2 + $0x120] sm:$0xff]
    %v145 = vld [vmem:[#allocation2 + $0x128] sm:$0xff]
    %v146 = vld [vmem:[#allocation2 + $0x130] sm:$0xff]
    %v147 = vld [vmem:[#allocation2 + $0x138] sm:$0xff]
    %v148 = vld [vmem:[#allocation2 + $0x140] sm:$0xff]
    %v149 = vld [vmem:[#allocation2 + $0x148] sm:$0xff]
    %v150 = vld [vmem:[#allocation2 + $0x150] sm:$0xff]
    %v151 = vld [vmem:[#allocation2 + $0x158] sm:$0xff]
    %v152 = vld [vmem:[#allocation2 + $0x160] sm:$0xff]
    %v153 = vld [vmem:[#allocation2 + $0x168] sm:$0xff]
    %v154 = vld [vmem:[#allocation2 + $0x170] sm:$0xff]
    %v155 = vld [vmem:[#allocation2 + $0x178] sm:$0xff]
    %v156 = vld [vmem:[#allocation2 + $0x180] sm:$0xff]
    %v157 = vld [vmem:[#allocation2 + $0x188] sm:$0xff]
    %v158 = vld [vmem:[#allocation2 + $0x190] sm:$0xff]
    %v159 = vld [vmem:[#allocation2 + $0x198] sm:$0xff]
    %v160 = vld [vmem:[#allocation2 + $0x1a0] sm:$0xff]
    %v161 = vld [vmem:[#allocation2 + $0x1a8] sm:$0xff]
    %v162 = vld [vmem:[#allocation2 + $0x1b0] sm:$0xff]
    %v163 = vld [vmem:[#allocation2 + $0x1b8] sm:$0xff]
    %v164 = vld [vmem:[#allocation2 + $0x1c0] sm:$0xff]
    %v165 = vld [vmem:[#allocation2 + $0x1c8] sm:$0xff]
    %v166 = vld [vmem:[#allocation2 + $0x1d0] sm:$0xff]
    %v167 = vld [vmem:[#allocation2 + $0x1d8] sm:$0xff]
    %v168 = vld [vmem:[#allocation2 + $0x1e0] sm:$0xff]
    %v169 = vld [vmem:[#allocation2 + $0x1e8] sm:$0xff]
    %v170 = vld [vmem:[#allocation2 + $0x1f0] sm:$0xff]
    %v171 = vld [vmem:[#allocation2 + $0x1f8] sm:$0xff]
    %v172 = vld [vmem:[#allocation2 + $0x200] sm:$0xff]
    %v173 = vld [vmem:[#allocation2 + $0x208] sm:$0xff]
    %v174 = vld [vmem:[#allocation2 + $0x210] sm:$0xff]
    %v175 = vld [vmem:[#allocation2 + $0x218] sm:$0xff]
    %v176 = vld [vmem:[#allocation2 + $0x220] sm:$0xff]
    %v177 = vld [vmem:[#allocation2 + $0x228] sm:$0xff]
    %v178 = vld [vmem:[#allocation2 + $0x230] sm:$0xff]
    %v179 = vld [vmem:[#allocation2 + $0x238] sm:$0xff]
    %v180 = vld [vmem:[#allocation2 + $0x240] sm:$0xff]
    %v181 = vld [vmem:[#allocation2 + $0x248] sm:$0xff]
    %v182 = vld [vmem:[#allocation2 + $0x250] sm:$0xff]
    %v183 = vld [vmem:[#allocation2 + $0x258] sm:$0xff]
    %v184 = vld [vmem:[#allocation2 + $0x260] sm:$0xff]
    %v185 = vld [vmem:[#allocation2 + $0x268] sm:$0xff]
    %v186 = vld [vmem:[#allocation2 + $0x270] sm:$0xff]
    %v187 = vld [vmem:[#allocation2 + $0x278] sm:$0xff]
    %v188 = vld [vmem:[#allocation2 + $0x280] sm:$0xff]
    %v189 = vld [vmem:[#allocation2 + $0x288] sm:$0xff]
    %v190 = vld [vmem:[#allocation2 + $0x290] sm:$0xff]
    %v191 = vld [vmem:[#allocation2 + $0x298] sm:$0xff]
    %v192 = vld [vmem:[#allocation2 + $0x2a0] sm:$0xff]
    %v193 = vld [vmem:[#allocation2 + $0x2a8] sm:$0xff]
    %v194 = vld [vmem:[#allocation2 + $0x2b0] sm:$0xff]
    %v195 = vld [vmem:[#allocation2 + $0x2b8] sm:$0xff]
    %v196 = vld [vmem:[#allocation2 + $0x2c0] sm:$0xff]
    %v197 = vld [vmem:[#allocation2 + $0x2c8] sm:$0xff]
    %v198 = vld [vmem:[#allocation2 + $0x2d0] sm:$0xff]
    %v199 = vld [vmem:[#allocation2 + $0x2d8] sm:$0xff]
    %v200 = vld [vmem:[#allocation2 + $0x2e0] sm:$0xff]
    %v201 = vld [vmem:[#allocation2 + $0x2e8] sm:$0xff]
    %v202 = vld [vmem:[#allocation2 + $0x2f0] sm:$0xff]
    %v203 = vld [vmem:[#allocation2 + $0x2f8] sm:$0xff]
    %v204 = vld [vmem:[#allocation2 + $0x300] sm:$0xff]
    %v205 = vld [vmem:[#allocation2 + $0x308] sm:$0xff]
    %v206 = vld [vmem:[#allocation2 + $0x310] sm:$0xff]
    %v207 = vld [vmem:[#allocation2 + $0x318] sm:$0xff]
    %v208 = vld [vmem:[#allocation2 + $0x320] sm:$0xff]
    %v209 = vld [vmem:[#allocation2 + $0x328] sm:$0xff]
    %v210 = vld [vmem:[#allocation2 + $0x330] sm:$0xff]
    %v211 = vld [vmem:[#allocation2 + $0x338] sm:$0xff]
    %v212 = vld [vmem:[#allocation2 + $0x340] sm:$0xff]
    %v213 = vld [vmem:[#allocation2 + $0x348] sm:$0xff]
    %v214 = vld [vmem:[#allocation2 + $0x350] sm:$0xff]
    %v215 = vld [vmem:[#allocation2 + $0x358] sm:$0xff]
    %v216 = vld [vmem:[#allocation2 + $0x360] sm:$0xff]
    %v217 = vld [vmem:[#allocation2 + $0x368] sm:$0xff]
    %v218 = vld [vmem:[#allocation2 + $0x370] sm:$0xff]
    %v219 = vld [vmem:[#allocation2 + $0x378] sm:$0xff]
    %v220 = vld [vmem:[#allocation2 + $0x380] sm:$0xff]
    %v221 = vld [vmem:[#allocation2 + $0x388] sm:$0xff]
    %v222 = vld [vmem:[#allocation2 + $0x390] sm:$0xff]
    %v223 = vld [vmem:[#allocation2 + $0x398] sm:$0xff]
    %v224 = vld [vmem:[#allocation2 + $0x3a0] sm:$0xff]
    %v225 = vld [vmem:[#allocation2 + $0x3a8] sm:$0xff]
    %v226 = vld [vmem:[#allocation2 + $0x3b0] sm:$0xff]
    %v227 = vld [vmem:[#allocation2 + $0x3b8] sm:$0xff]
    %v228 = vld [vmem:[#allocation2 + $0x3c0] sm:$0xff]
    %v229 = vld [vmem:[#allocation2 + $0x3c8] sm:$0xff]
    %v230 = vld [vmem:[#allocation2 + $0x3d0] sm:$0xff]
    %v231 = vld [vmem:[#allocation2 + $0x3d8] sm:$0xff]
    %v232 = vld [vmem:[#allocation2 + $0x3e0] sm:$0xff]
    %v233 = vld [vmem:[#allocation2 + $0x3e8] sm:$0xff]
    %v234 = vld [vmem:[#allocation2 + $0x3f0] sm:$0xff]
    %v235 = vld [vmem:[#allocation2 + $0x3f8] sm:$0xff]
    %v236 = vld [vmem:[#allocation2 + $0x400] sm:$0xff]
    %v237 = vld [vmem:[#allocation2 + $0x408] sm:$0xff]
    %v238 = vld [vmem:[#allocation2 + $0x410] sm:$0xff]
    %v239 = vld [vmem:[#allocation2 + $0x418] sm:$0xff]
    %v240 = vld [vmem:[#allocation2 + $0x420] sm:$0xff]
    %v241 = vld [vmem:[#allocation2 + $0x428] sm:$0xff]
    %v242 = vld [vmem:[#allocation2 + $0x430] sm:$0xff]
    %v243 = vld [vmem:[#allocation2 + $0x438] sm:$0xff]
    %v244 = vld [vmem:[#allocation2 + $0x440] sm:$0xff]
    %v245 = vld [vmem:[#allocation2 + $0x448] sm:$0xff]
    %v246 = vld [vmem:[#allocation2 + $0x450] sm:$0xff]
    %v247 = vld [vmem:[#allocation2 + $0x458] sm:$0xff]
    %v248 = vld [vmem:[#allocation2 + $0x460] sm:$0xff]
    %v249 = vld [vmem:[#allocation2 + $0x468] sm:$0xff]
    %v250 = vld [vmem:[#allocation2 + $0x470] sm:$0xff]
    %v251 = vld [vmem:[#allocation2 + $0x478] sm:$0xff]
    %v252 = vld [vmem:[#allocation2 + $0x480] sm:$0xff]
    %v253 = vld [vmem:[#allocation2 + $0x488] sm:$0xff]
    %v254 = vld [vmem:[#allocation2 + $0x490] sm:$0xff]
    %v255 = vld [vmem:[#allocation2 + $0x498] sm:$0xff]
    %v256 = vld [vmem:[#allocation2 + $0x4a0] sm:$0xff]
    %v257 = vld [vmem:[#allocation2 + $0x4a8] sm:$0xff]
    %v258 = vld [vmem:[#allocation2 + $0x4b0] sm:$0xff]
    %v259 = vld [vmem:[#allocation2 + $0x4b8] sm:$0xff]
    %v260 = vld [vmem:[#allocation2 + $0x4c0] sm:$0xff]
    %v261 = vld [vmem:[#allocation2 + $0x4c8] sm:$0xff]
    %v262 = vld [vmem:[#allocation2 + $0x4d0] sm:$0xff]
    %v263 = vld [vmem:[#allocation2 + $0x4d8] sm:$0xff]
    %v264 = vld [vmem:[#allocation2 + $0x4e0] sm:$0xff]
    %v265 = vld [vmem:[#allocation2 + $0x4e8] sm:$0xff]
    %v266 = vld [vmem:[#allocation2 + $0x4f0] sm:$0xff]
    %v267 = vld [vmem:[#allocation2 + $0x4f8] sm:$0xff]
    %v268 = vld [vmem:[#allocation2 + $0x500] sm:$0xff]
    %v269 = vld [vmem:[#allocation2 + $0x508] sm:$0xff]
    %v270 = vld [vmem:[#allocation2 + $0x510] sm:$0xff]
    %v271 = vld [vmem:[#allocation2 + $0x518] sm:$0xff]
    %v272 = vld [vmem:[#allocation2 + $0x520] sm:$0xff]
    %v273 = vld [vmem:[#allocation2 + $0x528] sm:$0xff]
    %v274 = vld [vmem:[#allocation2 + $0x530] sm:$0xff]
    %v275 = vld [vmem:[#allocation2 + $0x538] sm:$0xff]
    %v276 = vld [vmem:[#allocation2 + $0x540] sm:$0xff]
    %v277 = vld [vmem:[#allocation2 + $0x548] sm:$0xff]
    %v278 = vld [vmem:[#allocation2 + $0x550] sm:$0xff]
    %v279 = vld [vmem:[#allocation2 + $0x558] sm:$0xff]
    %v280 = vld [vmem:[#allocation2 + $0x560] sm:$0xff]
    %v281 = vld [vmem:[#allocation2 + $0x568] sm:$0xff]
    %v282 = vld [vmem:[#allocation2 + $0x570] sm:$0xff]
    %v283 = vld [vmem:[#allocation2 + $0x578] sm:$0xff]
    %v284 = vld [vmem:[#allocation2 + $0x580] sm:$0xff]
    %v285 = vld [vmem:[#allocation2 + $0x588] sm:$0xff]
    %v286 = vld [vmem:[#allocation2 + $0x590] sm:$0xff]
    %v287 = vld [vmem:[#allocation2 + $0x598] sm:$0xff]
    %v288 = vld [vmem:[#allocation2 + $0x5a0] sm:$0xff]
    %v289 = vld [vmem:[#allocation2 + $0x5a8] sm:$0xff]
    %v290 = vld [vmem:[#allocation2 + $0x5b0] sm:$0xff]
    %v291 = vld [vmem:[#allocation2 + $0x5b8] sm:$0xff]
    %v292 = vld [vmem:[#allocation2 + $0x5c0] sm:$0xff]
    %v293 = vld [vmem:[#allocation2 + $0x5c8] sm:$0xff]
    %v294 = vld [vmem:[#allocation2 + $0x5d0] sm:$0xff]
    %v295 = vld [vmem:[#allocation2 + $0x5d8] sm:$0xff]
    %v296 = vld [vmem:[#allocation2 + $0x5e0] sm:$0xff]
    %v297 = vld [vmem:[#allocation2 + $0x5e8] sm:$0xff]
    %v298 = vld [vmem:[#allocation2 + $0x5f0] sm:$0xff]
    %v299 = vld [vmem:[#allocation2 + $0x5f8] sm:$0xff]
    %v300 = vld [vmem:[#allocation2 + $0x600] sm:$0xff]
    %v301 = vld [vmem:[#allocation2 + $0x608] sm:$0xff]
    %v302 = vld [vmem:[#allocation2 + $0x610] sm:$0xff]
    %v303 = vld [vmem:[#allocation2 + $0x618] sm:$0xff]
    %v304 = vld [vmem:[#allocation2 + $0x620] sm:$0xff]
    %v305 = vld [vmem:[#allocation2 + $0x628] sm:$0xff]
    %v306 = vld [vmem:[#allocation2 + $0x630] sm:$0xff]
    %v307 = vld [vmem:[#allocation2 + $0x638] sm:$0xff]
    %v308 = vld [vmem:[#allocation2 + $0x640] sm:$0xff]
    %v309 = vld [vmem:[#allocation2 + $0x648] sm:$0xff]
    %v310 = vld [vmem:[#allocation2 + $0x650] sm:$0xff]
    %v311 = vld [vmem:[#allocation2 + $0x658] sm:$0xff]
    %v312 = vld [vmem:[#allocation2 + $0x660] sm:$0xff]
    %v313 = vld [vmem:[#allocation2 + $0x668] sm:$0xff]
    %v314 = vld [vmem:[#allocation2 + $0x670] sm:$0xff]
    %v315 = vld [vmem:[#allocation2 + $0x678] sm:$0xff]
    %v316 = vld [vmem:[#allocation2 + $0x680] sm:$0xff]
    %v317 = vld [vmem:[#allocation2 + $0x688] sm:$0xff]
    %v318 = vld [vmem:[#allocation2 + $0x690] sm:$0xff]
    %v319 = vld [vmem:[#allocation2 + $0x698] sm:$0xff]
    %v320 = vld [vmem:[#allocation2 + $0x6a0] sm:$0xff]
    %v321 = vld [vmem:[#allocation2 + $0x6a8] sm:$0xff]
    %v322 = vld [vmem:[#allocation2 + $0x6b0] sm:$0xff]
    %v323 = vld [vmem:[#allocation2 + $0x6b8] sm:$0xff]
    %v324 = vld [vmem:[#allocation2 + $0x6c0] sm:$0xff]
    %v325 = vld [vmem:[#allocation2 + $0x6c8] sm:$0xff]
    %v326 = vld [vmem:[#allocation2 + $0x6d0] sm:$0xff]
    %v327 = vld [vmem:[#allocation2 + $0x6d8] sm:$0xff]
    %v328 = vld [vmem:[#allocation2 + $0x6e0] sm:$0xff]
    %v329 = vld [vmem:[#allocation2 + $0x6e8] sm:$0xff]
    %v330 = vld [vmem:[#allocation2 + $0x6f0] sm:$0xff]
    %v331 = vld [vmem:[#allocation2 + $0x6f8] sm:$0xff]
    %v332 = vld [vmem:[%s3] sm:$0xf]
    %v334 = vperm.slane %v332, 0
    %v335 = vperm.slane %v332, 1
    %v336 = vperm.slane %v332, 2
    %v337 = vperm.slane %v332, 3
    %v350 = vunpack.c.l.b16 %v100
    %v351 = vunpack.c.h.b16 %v100
    %v352 = vunpack.c.l.b16 %v101
    %v353 = vunpack.c.h.b16 %v101
    %v354 = vunpack.c.l.b16 %v102
    %v355 = vunpack.c.h.b16 %v102
    %v356 = vunpack.c.l.b16 %v103
    %v357 = vunpack.c.l.b16 %v104
    %v358 = vunpack.c.h.b16 %v104
    %v359 = vunpack.c.l.b16 %v105
    %v360 = vunpack.c.h.b16 %v105
    %v361 = vunpack.c.l.b16 %v106
    %v362 = vunpack.c.h.b16 %v106
    %v363 = vunpack.c.l.b16 %v107
    %v364 = vpack.c.b16 %v357, %v350
    %v365 = vpack.c.b16 %v358, %v351
    %v366 = vpack.c.b16 %v359, %v352
    %v367 = vpack.c.b16 %v360, %v353
    %v368 = vpack.c.b16 %v361, %v354
    %v369 = vpack.c.b16 %v362, %v355
    %v370 = vpack.c.b16 %v363, %v356
    %v602 = vunpack.c.l.b16 %v108
    %v603 = vunpack.c.h.b16 %v108
    %v604 = vunpack.c.l.b16 %v109
    %v605 = vunpack.c.h.b16 %v109
    %v606 = vunpack.c.l.b16 %v110
    %v607 = vunpack.c.h.b16 %v110
    %v608 = vunpack.c.l.b16 %v111
    %v609 = vunpack.c.h.b16 %v111
    %v610 = vunpack.c.l.b16 %v112
    %v611 = vunpack.c.h.b16 %v112
    %v612 = vunpack.c.l.b16 %v113
    %v613 = vunpack.c.h.b16 %v113
    %v614 = vunpack.c.l.b16 %v114
    %v615 = vunpack.c.h.b16 %v114
    %v616 = vunpack.c.l.b16 %v115
    %v617 = vunpack.c.h.b16 %v115
    %v618 = vunpack.c.l.b16 %v116
    %v619 = vunpack.c.h.b16 %v116
    %v620 = vunpack.c.l.b16 %v117
    %v621 = vunpack.c.h.b16 %v117
    %v622 = vunpack.c.l.b16 %v118
    %v623 = vunpack.c.h.b16 %v118
    %v624 = vunpack.c.l.b16 %v119
    %v625 = vunpack.c.h.b16 %v119
    %v626 = vunpack.c.l.b16 %v120
    %v627 = vunpack.c.h.b16 %v120
    %v628 = vunpack.c.l.b16 %v121
    %v629 = vunpack.c.h.b16 %v121
    %v630 = vunpack.c.l.b16 %v122
    %v631 = vunpack.c.h.b16 %v122
    %v632 = vunpack.c.l.b16 %v123
    %v633 = vunpack.c.h.b16 %v123
    %v634 = vunpack.c.l.b16 %v124
    %v635 = vunpack.c.h.b16 %v124
    %v636 = vunpack.c.l.b16 %v125
    %v637 = vunpack.c.h.b16 %v125
    %v638 = vunpack.c.l.b16 %v126
    %v639 = vunpack.c.h.b16 %v126
    %v640 = vunpack.c.l.b16 %v127
    %v641 = vunpack.c.h.b16 %v127
    %v642 = vunpack.c.l.b16 %v128
    %v643 = vunpack.c.h.b16 %v128
    %v644 = vunpack.c.l.b16 %v129
    %v645 = vunpack.c.h.b16 %v129
    %v646 = vunpack.c.l.b16 %v130
    %v647 = vunpack.c.h.b16 %v130
    %v648 = vunpack.c.l.b16 %v131
    %v649 = vunpack.c.h.b16 %v131
    %v650 = vunpack.c.l.b16 %v132
    %v651 = vunpack.c.h.b16 %v132
    %v652 = vunpack.c.l.b16 %v133
    %v653 = vunpack.c.h.b16 %v133
    %v654 = vunpack.c.l.b16 %v134
    %v655 = vunpack.c.h.b16 %v134
    %v656 = vunpack.c.l.b16 %v135
    %v657 = vunpack.c.h.b16 %v135
    %v658 = vunpack.c.l.b16 %v136
    %v659 = vunpack.c.h.b16 %v136
    %v660 = vunpack.c.l.b16 %v137
    %v661 = vunpack.c.h.b16 %v137
    %v662 = vunpack.c.l.b16 %v138
    %v663 = vunpack.c.h.b16 %v138
    %v664 = vunpack.c.l.b16 %v139
    %v665 = vunpack.c.h.b16 %v139
    %v666 = vunpack.c.l.b16 %v140
    %v667 = vunpack.c.h.b16 %v140
    %v668 = vunpack.c.l.b16 %v141
    %v669 = vunpack.c.h.b16 %v141
    %v670 = vunpack.c.l.b16 %v142
    %v671 = vunpack.c.h.b16 %v142
    %v672 = vunpack.c.l.b16 %v143
    %v673 = vunpack.c.h.b16 %v143
    %v674 = vunpack.c.l.b16 %v144
    %v675 = vunpack.c.h.b16 %v144
    %v676 = vunpack.c.l.b16 %v145
    %v677 = vunpack.c.h.b16 %v145
    %v678 = vunpack.c.l.b16 %v146
    %v679 = vunpack.c.h.b16 %v146
    %v680 = vunpack.c.l.b16 %v147
    %v681 = vunpack.c.h.b16 %v147
    %v682 = vunpack.c.l.b16 %v148
    %v683 = vunpack.c.h.b16 %v148
    %v684 = vunpack.c.l.b16 %v149
    %v685 = vunpack.c.h.b16 %v149
    %v686 = vunpack.c.l.b16 %v150
    %v687 = vunpack.c.h.b16 %v150
    %v688 = vunpack.c.l.b16 %v151
    %v689 = vunpack.c.h.b16 %v151
    %v690 = vunpack.c.l.b16 %v152
    %v691 = vunpack.c.h.b16 %v152
    %v692 = vunpack.c.l.b16 %v153
    %v693 = vunpack.c.h.b16 %v153
    %v694 = vunpack.c.l.b16 %v154
    %v695 = vunpack.c.h.b16 %v154
    %v696 = vunpack.c.l.b16 %v155
    %v697 = vunpack.c.h.b16 %v155
    %v698 = vunpack.c.l.b16 %v156
    %v699 = vunpack.c.h.b16 %v156
    %v700 = vunpack.c.l.b16 %v157
    %v701 = vunpack.c.h.b16 %v157
    %v702 = vunpack.c.l.b16 %v158
    %v703 = vunpack.c.h.b16 %v158
    %v704 = vunpack.c.l.b16 %v159
    %v705 = vunpack.c.h.b16 %v159
    %v706 = vunpack.c.l.b16 %v160
    %v707 = vunpack.c.h.b16 %v160
    %v708 = vunpack.c.l.b16 %v161
    %v709 = vunpack.c.h.b16 %v161
    %v710 = vunpack.c.l.b16 %v162
    %v711 = vunpack.c.h.b16 %v162
    %v712 = vunpack.c.l.b16 %v163
    %v713 = vunpack.c.h.b16 %v163
    %v714 = vunpack.c.l.b16 %v164
    %v715 = vunpack.c.h.b16 %v164
    %v716 = vunpack.c.l.b16 %v165
    %v717 = vunpack.c.h.b16 %v165
    %v718 = vunpack.c.l.b16 %v166
    %v719 = vunpack.c.h.b16 %v166
    %v720 = vunpack.c.l.b16 %v167
    %v721 = vunpack.c.h.b16 %v167
    %v722 = vunpack.c.l.b16 %v168
    %v723 = vunpack.c.h.b16 %v168
    %v724 = vunpack.c.l.b16 %v169
    %v725 = vunpack.c.h.b16 %v169
    %v726 = vunpack.c.l.b16 %v170
    %v727 = vunpack.c.h.b16 %v170
    %v728 = vunpack.c.l.b16 %v171
    %v729 = vunpack.c.h.b16 %v171
    %v730 = vunpack.c.l.b16 %v172
    %v731 = vunpack.c.h.b16 %v172
    %v732 = vunpack.c.l.b16 %v173
    %v733 = vunpack.c.h.b16 %v173
    %v734 = vunpack.c.l.b16 %v174
    %v735 = vunpack.c.h.b16 %v174
    %v736 = vunpack.c.l.b16 %v175
    %v737 = vunpack.c.h.b16 %v175
    %v738 = vunpack.c.l.b16 %v176
    %v739 = vunpack.c.h.b16 %v176
    %v740 = vunpack.c.l.b16 %v177
    %v741 = vunpack.c.h.b16 %v177
    %v742 = vunpack.c.l.b16 %v178
    %v743 = vunpack.c.h.b16 %v178
    %v744 = vunpack.c.l.b16 %v179
    %v745 = vunpack.c.h.b16 %v179
    %v746 = vunpack.c.l.b16 %v180
    %v747 = vunpack.c.h.b16 %v180
    %v748 = vunpack.c.l.b16 %v181
    %v749 = vunpack.c.h.b16 %v181
    %v750 = vunpack.c.l.b16 %v182
    %v751 = vunpack.c.h.b16 %v182
    %v752 = vunpack.c.l.b16 %v183
    %v753 = vunpack.c.h.b16 %v183
    %v754 = vunpack.c.l.b16 %v184
    %v755 = vunpack.c.h.b16 %v184
    %v756 = vunpack.c.l.b16 %v185
    %v757 = vunpack.c.h.b16 %v185
    %v758 = vunpack.c.l.b16 %v186
    %v759 = vunpack.c.h.b16 %v186
    %v760 = vunpack.c.l.b16 %v187
    %v761 = vunpack.c.h.b16 %v187
    %v762 = vunpack.c.l.b16 %v188
    %v763 = vunpack.c.h.b16 %v188
    %v764 = vunpack.c.l.b16 %v189
    %v765 = vunpack.c.h.b16 %v189
    %v766 = vunpack.c.l.b16 %v190
    %v767 = vunpack.c.h.b16 %v190
    %v768 = vunpack.c.l.b16 %v191
    %v769 = vunpack.c.h.b16 %v191
    %v770 = vunpack.c.l.b16 %v192
    %v771 = vunpack.c.h.b16 %v192
    %v772 = vunpack.c.l.b16 %v193
    %v773 = vunpack.c.h.b16 %v193
    %v774 = vunpack.c.l.b16 %v194
    %v775 = vunpack.c.h.b16 %v194
    %v776 = vunpack.c.l.b16 %v195
    %v777 = vunpack.c.h.b16 %v195
    %v778 = vunpack.c.l.b16 %v196
    %v779 = vunpack.c.h.b16 %v196
    %v780 = vunpack.c.l.b16 %v197
    %v781 = vunpack.c.h.b16 %v197
    %v782 = vunpack.c.l.b16 %v198
    %v783 = vunpack.c.h.b16 %v198
    %v784 = vunpack.c.l.b16 %v199
    %v785 = vunpack.c.h.b16 %v199
    %v786 = vunpack.c.l.b16 %v200
    %v787 = vunpack.c.h.b16 %v200
    %v788 = vunpack.c.l.b16 %v201
    %v789 = vunpack.c.h.b16 %v201
    %v790 = vunpack.c.l.b16 %v202
    %v791 = vunpack.c.h.b16 %v202
    %v792 = vunpack.c.l.b16 %v203
    %v793 = vunpack.c.h.b16 %v203
    %v794 = vunpack.c.l.b16 %v204
    %v795 = vunpack.c.h.b16 %v204
    %v796 = vunpack.c.l.b16 %v205
    %v797 = vunpack.c.h.b16 %v205
    %v798 = vunpack.c.l.b16 %v206
    %v799 = vunpack.c.h.b16 %v206
    %v800 = vunpack.c.l.b16 %v207
    %v801 = vunpack.c.h.b16 %v207
    %v802 = vunpack.c.l.b16 %v208
    %v803 = vunpack.c.h.b16 %v208
    %v804 = vunpack.c.l.b16 %v209
    %v805 = vunpack.c.h.b16 %v209
    %v806 = vunpack.c.l.b16 %v210
    %v807 = vunpack.c.h.b16 %v210
    %v808 = vunpack.c.l.b16 %v211
    %v809 = vunpack.c.h.b16 %v211
    %v810 = vunpack.c.l.b16 %v212
    %v811 = vunpack.c.h.b16 %v212
    %v812 = vunpack.c.l.b16 %v213
    %v813 = vunpack.c.h.b16 %v213
    %v814 = vunpack.c.l.b16 %v214
    %v815 = vunpack.c.h.b16 %v214
    %v816 = vunpack.c.l.b16 %v215
    %v817 = vunpack.c.h.b16 %v215
    %v818 = vunpack.c.l.b16 %v216
    %v819 = vunpack.c.h.b16 %v216
    %v820 = vunpack.c.l.b16 %v217
    %v821 = vunpack.c.h.b16 %v217
    %v822 = vunpack.c.l.b16 %v218
    %v823 = vunpack.c.h.b16 %v218
    %v824 = vunpack.c.l.b16 %v219
    %v825 = vunpack.c.h.b16 %v219
    %v826 = vunpack.c.l.b16 %v220
    %v827 = vunpack.c.h.b16 %v220
    %v828 = vunpack.c.l.b16 %v221
    %v829 = vunpack.c.h.b16 %v221
    %v830 = vunpack.c.l.b16 %v222
    %v831 = vunpack.c.h.b16 %v222
    %v832 = vunpack.c.l.b16 %v223
    %v833 = vunpack.c.h.b16 %v223
    %v834 = vunpack.c.l.b16 %v224
    %v835 = vunpack.c.h.b16 %v224
    %v836 = vunpack.c.l.b16 %v225
    %v837 = vunpack.c.h.b16 %v225
    %v838 = vunpack.c.l.b16 %v226
    %v839 = vunpack.c.h.b16 %v226
    %v840 = vunpack.c.l.b16 %v227
    %v841 = vunpack.c.h.b16 %v227
    %v842 = vunpack.c.l.b16 %v228
    %v843 = vunpack.c.h.b16 %v228
    %v844 = vunpack.c.l.b16 %v229
    %v845 = vunpack.c.h.b16 %v229
    %v846 = vunpack.c.l.b16 %v230
    %v847 = vunpack.c.h.b16 %v230
    %v848 = vunpack.c.l.b16 %v231
    %v849 = vunpack.c.h.b16 %v231
    %v850 = vunpack.c.l.b16 %v232
    %v851 = vunpack.c.h.b16 %v232
    %v852 = vunpack.c.l.b16 %v233
    %v853 = vunpack.c.h.b16 %v233
    %v854 = vunpack.c.l.b16 %v234
    %v855 = vunpack.c.h.b16 %v234
    %v856 = vunpack.c.l.b16 %v235
    %v857 = vunpack.c.h.b16 %v235
    %v858 = vunpack.c.l.b16 %v236
    %v859 = vunpack.c.h.b16 %v236
    %v860 = vunpack.c.l.b16 %v237
    %v861 = vunpack.c.h.b16 %v237
    %v862 = vunpack.c.l.b16 %v238
    %v863 = vunpack.c.h.b16 %v238
    %v864 = vunpack.c.l.b16 %v239
    %v865 = vunpack.c.h.b16 %v239
    %v866 = vunpack.c.l.b16 %v240
    %v867 = vunpack.c.h.b16 %v240
    %v868 = vunpack.c.l.b16 %v241
    %v869 = vunpack.c.h.b16 %v241
    %v870 = vunpack.c.l.b16 %v242
    %v871 = vunpack.c.h.b16 %v242
    %v872 = vunpack.c.l.b16 %v243
    %v873 = vunpack.c.h.b16 %v243
    %v874 = vunpack.c.l.b16 %v244
    %v875 = vunpack.c.h.b16 %v244
    %v876 = vunpack.c.l.b16 %v245
    %v877 = vunpack.c.h.b16 %v245
    %v878 = vunpack.c.l.b16 %v246
    %v879 = vunpack.c.h.b16 %v246
    %v880 = vunpack.c.l.b16 %v247
    %v881 = vunpack.c.h.b16 %v247
    %v882 = vunpack.c.l.b16 %v248
    %v883 = vunpack.c.h.b16 %v248
    %v884 = vunpack.c.l.b16 %v249
    %v885 = vunpack.c.h.b16 %v249
    %v886 = vunpack.c.l.b16 %v250
    %v887 = vunpack.c.h.b16 %v250
    %v888 = vunpack.c.l.b16 %v251
    %v889 = vunpack.c.h.b16 %v251
    %v890 = vunpack.c.l.b16 %v252
    %v891 = vunpack.c.h.b16 %v252
    %v892 = vunpack.c.l.b16 %v253
    %v893 = vunpack.c.h.b16 %v253
    %v894 = vunpack.c.l.b16 %v254
    %v895 = vunpack.c.h.b16 %v254
    %v896 = vunpack.c.l.b16 %v255
    %v897 = vunpack.c.h.b16 %v255
    %v898 = vunpack.c.l.b16 %v256
    %v899 = vunpack.c.h.b16 %v256
    %v900 = vunpack.c.l.b16 %v257
    %v901 = vunpack.c.h.b16 %v257
    %v902 = vunpack.c.l.b16 %v258
    %v903 = vunpack.c.h.b16 %v258
    %v904 = vunpack.c.l.b16 %v259
    %v905 = vunpack.c.h.b16 %v259
    %v906 = vunpack.c.l.b16 %v260
    %v907 = vunpack.c.h.b16 %v260
    %v908 = vunpack.c.l.b16 %v261
    %v909 = vunpack.c.h.b16 %v261
    %v910 = vunpack.c.l.b16 %v262
    %v911 = vunpack.c.h.b16 %v262
    %v912 = vunpack.c.l.b16 %v263
    %v913 = vunpack.c.h.b16 %v263
    %v914 = vunpack.c.l.b16 %v264
    %v915 = vunpack.c.h.b16 %v264
    %v916 = vunpack.c.l.b16 %v265
    %v917 = vunpack.c.h.b16 %v265
    %v918 = vunpack.c.l.b16 %v266
    %v919 = vunpack.c.h.b16 %v266
    %v920 = vunpack.c.l.b16 %v267
    %v921 = vunpack.c.h.b16 %v267
    %v922 = vunpack.c.l.b16 %v268
    %v923 = vunpack.c.h.b16 %v268
    %v924 = vunpack.c.l.b16 %v269
    %v925 = vunpack.c.h.b16 %v269
    %v926 = vunpack.c.l.b16 %v270
    %v927 = vunpack.c.h.b16 %v270
    %v928 = vunpack.c.l.b16 %v271
    %v929 = vunpack.c.h.b16 %v271
    %v930 = vunpack.c.l.b16 %v272
    %v931 = vunpack.c.h.b16 %v272
    %v932 = vunpack.c.l.b16 %v273
    %v933 = vunpack.c.h.b16 %v273
    %v934 = vunpack.c.l.b16 %v274
    %v935 = vunpack.c.h.b16 %v274
    %v936 = vunpack.c.l.b16 %v275
    %v937 = vunpack.c.h.b16 %v275
    %v938 = vunpack.c.l.b16 %v276
    %v939 = vunpack.c.h.b16 %v276
    %v940 = vunpack.c.l.b16 %v277
    %v941 = vunpack.c.h.b16 %v277
    %v942 = vunpack.c.l.b16 %v278
    %v943 = vunpack.c.h.b16 %v278
    %v944 = vunpack.c.l.b16 %v279
    %v945 = vunpack.c.h.b16 %v279
    %v946 = vunpack.c.l.b16 %v280
    %v947 = vunpack.c.h.b16 %v280
    %v948 = vunpack.c.l.b16 %v281
    %v949 = vunpack.c.h.b16 %v281
    %v950 = vunpack.c.l.b16 %v282
    %v951 = vunpack.c.h.b16 %v282
    %v952 = vunpack.c.l.b16 %v283
    %v953 = vunpack.c.h.b16 %v283
    %v954 = vunpack.c.l.b16 %v284
    %v955 = vunpack.c.h.b16 %v284
    %v956 = vunpack.c.l.b16 %v285
    %v957 = vunpack.c.h.b16 %v285
    %v958 = vunpack.c.l.b16 %v286
    %v959 = vunpack.c.h.b16 %v286
    %v960 = vunpack.c.l.b16 %v287
    %v961 = vunpack.c.h.b16 %v287
    %v962 = vunpack.c.l.b16 %v288
    %v963 = vunpack.c.h.b16 %v288
    %v964 = vunpack.c.l.b16 %v289
    %v965 = vunpack.c.h.b16 %v289
    %v966 = vunpack.c.l.b16 %v290
    %v967 = vunpack.c.h.b16 %v290
    %v968 = vunpack.c.l.b16 %v291
    %v969 = vunpack.c.h.b16 %v291
    %v970 = vunpack.c.l.b16 %v292
    %v971 = vunpack.c.h.b16 %v292
    %v972 = vunpack.c.l.b16 %v293
    %v973 = vunpack.c.h.b16 %v293
    %v974 = vunpack.c.l.b16 %v294
    %v975 = vunpack.c.h.b16 %v294
    %v976 = vunpack.c.l.b16 %v295
    %v977 = vunpack.c.h.b16 %v295
    %v978 = vunpack.c.l.b16 %v296
    %v979 = vunpack.c.h.b16 %v296
    %v980 = vunpack.c.l.b16 %v297
    %v981 = vunpack.c.h.b16 %v297
    %v982 = vunpack.c.l.b16 %v298
    %v983 = vunpack.c.h.b16 %v298
    %v984 = vunpack.c.l.b16 %v299
    %v985 = vunpack.c.h.b16 %v299
    %v986 = vunpack.c.l.b16 %v300
    %v987 = vunpack.c.h.b16 %v300
    %v988 = vunpack.c.l.b16 %v301
    %v989 = vunpack.c.h.b16 %v301
    %v990 = vunpack.c.l.b16 %v302
    %v991 = vunpack.c.h.b16 %v302
    %v992 = vunpack.c.l.b16 %v303
    %v993 = vunpack.c.h.b16 %v303
    %v994 = vunpack.c.l.b16 %v304
    %v995 = vunpack.c.h.b16 %v304
    %v996 = vunpack.c.l.b16 %v305
    %v997 = vunpack.c.h.b16 %v305
    %v998 = vunpack.c.l.b16 %v306
    %v999 = vunpack.c.h.b16 %v306
    %v1000 = vunpack.c.l.b16 %v307
    %v1001 = vunpack.c.h.b16 %v307
    %v1002 = vunpack.c.l.b16 %v308
    %v1003 = vunpack.c.h.b16 %v308
    %v1004 = vunpack.c.l.b16 %v309
    %v1005 = vunpack.c.h.b16 %v309
    %v1006 = vunpack.c.l.b16 %v310
    %v1007 = vunpack.c.h.b16 %v310
    %v1008 = vunpack.c.l.b16 %v311
    %v1009 = vunpack.c.h.b16 %v311
    %v1010 = vunpack.c.l.b16 %v312
    %v1011 = vunpack.c.h.b16 %v312
    %v1012 = vunpack.c.l.b16 %v313
    %v1013 = vunpack.c.h.b16 %v313
    %v1014 = vunpack.c.l.b16 %v314
    %v1015 = vunpack.c.h.b16 %v314
    %v1016 = vunpack.c.l.b16 %v315
    %v1017 = vunpack.c.h.b16 %v315
    %v1018 = vunpack.c.l.b16 %v316
    %v1019 = vunpack.c.h.b16 %v316
    %v1020 = vunpack.c.l.b16 %v317
    %v1021 = vunpack.c.h.b16 %v317
    %v1022 = vunpack.c.l.b16 %v318
    %v1023 = vunpack.c.h.b16 %v318
    %v1024 = vunpack.c.l.b16 %v319
    %v1025 = vunpack.c.h.b16 %v319
    %v1026 = vunpack.c.l.b16 %v320
    %v1027 = vunpack.c.h.b16 %v320
    %v1028 = vunpack.c.l.b16 %v321
    %v1029 = vunpack.c.h.b16 %v321
    %v1030 = vunpack.c.l.b16 %v322
    %v1031 = vunpack.c.h.b16 %v322
    %v1032 = vunpack.c.l.b16 %v323
    %v1033 = vunpack.c.h.b16 %v323
    %v1034 = vunpack.c.l.b16 %v324
    %v1035 = vunpack.c.h.b16 %v324
    %v1036 = vunpack.c.l.b16 %v325
    %v1037 = vunpack.c.h.b16 %v325
    %v1038 = vunpack.c.l.b16 %v326
    %v1039 = vunpack.c.h.b16 %v326
    %v1040 = vunpack.c.l.b16 %v327
    %v1041 = vunpack.c.h.b16 %v327
    %v1042 = vunpack.c.l.b16 %v328
    %v1043 = vunpack.c.h.b16 %v328
    %v1044 = vunpack.c.l.b16 %v329
    %v1045 = vunpack.c.h.b16 %v329
    %v1046 = vunpack.c.l.b16 %v330
    %v1047 = vunpack.c.h.b16 %v330
    %v1048 = vunpack.c.l.b16 %v331
    %v1049 = vunpack.c.h.b16 %v331
    %v1050 = vpack.c.b16 %v606, %v602
    %v1051 = vpack.c.b16 %v607, %v603
    %v1052 = vpack.c.b16 %v608, %v604
    %v1053 = vpack.c.b16 %v609, %v605
    %v1054 = vpack.c.b16 %v614, %v610
    %v1055 = vpack.c.b16 %v615, %v611
    %v1056 = vpack.c.b16 %v616, %v612
    %v1057 = vpack.c.b16 %v617, %v613
    %v1058 = vpack.c.b16 %v622, %v618
    %v1059 = vpack.c.b16 %v623, %v619
    %v1060 = vpack.c.b16 %v624, %v620
    %v1061 = vpack.c.b16 %v625, %v621
    %v1062 = vpack.c.b16 %v630, %v626
    %v1063 = vpack.c.b16 %v631, %v627
    %v1064 = vpack.c.b16 %v632, %v628
    %v1065 = vpack.c.b16 %v633, %v629
    %v1066 = vpack.c.b16 %v638, %v634
    %v1067 = vpack.c.b16 %v639, %v635
    %v1068 = vpack.c.b16 %v640, %v636
    %v1069 = vpack.c.b16 %v641, %v637
    %v1070 = vpack.c.b16 %v646, %v642
    %v1071 = vpack.c.b16 %v647, %v643
    %v1072 = vpack.c.b16 %v648, %v644
    %v1073 = vpack.c.b16 %v649, %v645
    %v1074 = vpack.c.b16 %v654, %v650
    %v1075 = vpack.c.b16 %v655, %v651
    %v1076 = vpack.c.b16 %v656, %v652
    %v1077 = vpack.c.b16 %v657, %v653
    %v1078 = vpack.c.b16 %v662, %v658
    %v1079 = vpack.c.b16 %v663, %v659
    %v1080 = vpack.c.b16 %v664, %v660
    %v1081 = vpack.c.b16 %v665, %v661
    %v1082 = vpack.c.b16 %v670, %v666
    %v1083 = vpack.c.b16 %v671, %v667
    %v1084 = vpack.c.b16 %v672, %v668
    %v1085 = vpack.c.b16 %v673, %v669
    %v1086 = vpack.c.b16 %v678, %v674
    %v1087 = vpack.c.b16 %v679, %v675
    %v1088 = vpack.c.b16 %v680, %v676
    %v1089 = vpack.c.b16 %v681, %v677
    %v1090 = vpack.c.b16 %v686, %v682
    %v1091 = vpack.c.b16 %v687, %v683
    %v1092 = vpack.c.b16 %v688, %v684
    %v1093 = vpack.c.b16 %v689, %v685
    %v1094 = vpack.c.b16 %v694, %v690
    %v1095 = vpack.c.b16 %v695, %v691
    %v1096 = vpack.c.b16 %v696, %v692
    %v1097 = vpack.c.b16 %v697, %v693
    %v1098 = vpack.c.b16 %v702, %v698
    %v1099 = vpack.c.b16 %v703, %v699
    %v1100 = vpack.c.b16 %v704, %v700
    %v1101 = vpack.c.b16 %v705, %v701
    %v1102 = vpack.c.b16 %v710, %v706
    %v1103 = vpack.c.b16 %v711, %v707
    %v1104 = vpack.c.b16 %v712, %v708
    %v1105 = vpack.c.b16 %v713, %v709
    %v1106 = vpack.c.b16 %v718, %v714
    %v1107 = vpack.c.b16 %v719, %v715
    %v1108 = vpack.c.b16 %v720, %v716
    %v1109 = vpack.c.b16 %v721, %v717
    %v1110 = vpack.c.b16 %v726, %v722
    %v1111 = vpack.c.b16 %v727, %v723
    %v1112 = vpack.c.b16 %v728, %v724
    %v1113 = vpack.c.b16 %v729, %v725
    %v1114 = vpack.c.b16 %v734, %v730
    %v1115 = vpack.c.b16 %v735, %v731
    %v1116 = vpack.c.b16 %v736, %v732
    %v1117 = vpack.c.b16 %v737, %v733
    %v1118 = vpack.c.b16 %v742, %v738
    %v1119 = vpack.c.b16 %v743, %v739
    %v1120 = vpack.c.b16 %v744, %v740
    %v1121 = vpack.c.b16 %v745, %v741
    %v1122 = vpack.c.b16 %v750, %v746
    %v1123 = vpack.c.b16 %v751, %v747
    %v1124 = vpack.c.b16 %v752, %v748
    %v1125 = vpack.c.b16 %v753, %v749
    %v1126 = vpack.c.b16 %v758, %v754
    %v1127 = vpack.c.b16 %v759, %v755
    %v1128 = vpack.c.b16 %v760, %v756
    %v1129 = vpack.c.b16 %v761, %v757
    %v1130 = vpack.c.b16 %v766, %v762
    %v1131 = vpack.c.b16 %v767, %v763
    %v1132 = vpack.c.b16 %v768, %v764
    %v1133 = vpack.c.b16 %v769, %v765
    %v1134 = vpack.c.b16 %v774, %v770
    %v1135 = vpack.c.b16 %v775, %v771
    %v1136 = vpack.c.b16 %v776, %v772
    %v1137 = vpack.c.b16 %v777, %v773
    %v1138 = vpack.c.b16 %v782, %v778
    %v1139 = vpack.c.b16 %v783, %v779
    %v1140 = vpack.c.b16 %v784, %v780
    %v1141 = vpack.c.b16 %v785, %v781
    %v1142 = vpack.c.b16 %v790, %v786
    %v1143 = vpack.c.b16 %v791, %v787
    %v1144 = vpack.c.b16 %v792, %v788
    %v1145 = vpack.c.b16 %v793, %v789
    %v1146 = vpack.c.b16 %v798, %v794
    %v1147 = vpack.c.b16 %v799, %v795
    %v1148 = vpack.c.b16 %v800, %v796
    %v1149 = vpack.c.b16 %v801, %v797
    %v1150 = vpack.c.b16 %v806, %v802
    %v1151 = vpack.c.b16 %v807, %v803
    %v1152 = vpack.c.b16 %v808, %v804
    %v1153 = vpack.c.b16 %v809, %v805
    %v1154 = vpack.c.b16 %v814, %v810
    %v1155 = vpack.c.b16 %v815, %v811
    %v1156 = vpack.c.b16 %v816, %v812
    %v1157 = vpack.c.b16 %v817, %v813
    %v1158 = vpack.c.b16 %v822, %v818
    %v1159 = vpack.c.b16 %v823, %v819
    %v1160 = vpack.c.b16 %v824, %v820
    %v1161 = vpack.c.b16 %v825, %v821
    %v1162 = vpack.c.b16 %v830, %v826
    %v1163 = vpack.c.b16 %v831, %v827
    %v1164 = vpack.c.b16 %v832, %v828
    %v1165 = vpack.c.b16 %v833, %v829
    %v1166 = vpack.c.b16 %v838, %v834
    %v1167 = vpack.c.b16 %v839, %v835
    %v1168 = vpack.c.b16 %v840, %v836
    %v1169 = vpack.c.b16 %v841, %v837
    %v1170 = vpack.c.b16 %v846, %v842
    %v1171 = vpack.c.b16 %v847, %v843
    %v1172 = vpack.c.b16 %v848, %v844
    %v1173 = vpack.c.b16 %v849, %v845
    %v1174 = vpack.c.b16 %v854, %v850
    %v1175 = vpack.c.b16 %v855, %v851
    %v1176 = vpack.c.b16 %v856, %v852
    %v1177 = vpack.c.b16 %v857, %v853
    %v1178 = vpack.c.b16 %v862, %v858
    %v1179 = vpack.c.b16 %v863, %v859
    %v1180 = vpack.c.b16 %v864, %v860
    %v1181 = vpack.c.b16 %v865, %v861
    %v1182 = vpack.c.b16 %v870, %v866
    %v1183 = vpack.c.b16 %v871, %v867
    %v1184 = vpack.c.b16 %v872, %v868
    %v1185 = vpack.c.b16 %v873, %v869
    %v1186 = vpack.c.b16 %v878, %v874
    %v1187 = vpack.c.b16 %v879, %v875
    %v1188 = vpack.c.b16 %v880, %v876
    %v1189 = vpack.c.b16 %v881, %v877
    %v1190 = vpack.c.b16 %v886, %v882
    %v1191 = vpack.c.b16 %v887, %v883
    %v1192 = vpack.c.b16 %v888, %v884
    %v1193 = vpack.c.b16 %v889, %v885
    %v1194 = vpack.c.b16 %v894, %v890
    %v1195 = vpack.c.b16 %v895, %v891
    %v1196 = vpack.c.b16 %v896, %v892
    %v1197 = vpack.c.b16 %v897, %v893
    %v1198 = vpack.c.b16 %v902, %v898
    %v1199 = vpack.c.b16 %v903, %v899
    %v1200 = vpack.c.b16 %v904, %v900
    %v1201 = vpack.c.b16 %v905, %v901
    %v1202 = vpack.c.b16 %v910, %v906
    %v1203 = vpack.c.b16 %v911, %v907
    %v1204 = vpack.c.b16 %v912, %v908
    %v1205 = vpack.c.b16 %v913, %v909
    %v1206 = vpack.c.b16 %v918, %v914
    %v1207 = vpack.c.b16 %v919, %v915
    %v1208 = vpack.c.b16 %v920, %v916
    %v1209 = vpack.c.b16 %v921, %v917
    %v1210 = vpack.c.b16 %v926, %v922
    %v1211 = vpack.c.b16 %v927, %v923
    %v1212 = vpack.c.b16 %v928, %v924
    %v1213 = vpack.c.b16 %v929, %v925
    %v1214 = vpack.c.b16 %v934, %v930
    %v1215 = vpack.c.b16 %v935, %v931
    %v1216 = vpack.c.b16 %v936, %v932
    %v1217 = vpack.c.b16 %v937, %v933
    %v1218 = vpack.c.b16 %v942, %v938
    %v1219 = vpack.c.b16 %v943, %v939
    %v1220 = vpack.c.b16 %v944, %v940
    %v1221 = vpack.c.b16 %v945, %v941
    %v1222 = vpack.c.b16 %v950, %v946
    %v1223 = vpack.c.b16 %v951, %v947
    %v1224 = vpack.c.b16 %v952, %v948
    %v1225 = vpack.c.b16 %v953, %v949
    %v1226 = vpack.c.b16 %v958, %v954
    %v1227 = vpack.c.b16 %v959, %v955
    %v1228 = vpack.c.b16 %v960, %v956
    %v1229 = vpack.c.b16 %v961, %v957
    %v1230 = vpack.c.b16 %v966, %v962
    %v1231 = vpack.c.b16 %v967, %v963
    %v1232 = vpack.c.b16 %v968, %v964
    %v1233 = vpack.c.b16 %v969, %v965
    %v1234 = vpack.c.b16 %v974, %v970
    %v1235 = vpack.c.b16 %v975, %v971
    %v1236 = vpack.c.b16 %v976, %v972
    %v1237 = vpack.c.b16 %v977, %v973
    %v1238 = vpack.c.b16 %v982, %v978
    %v1239 = vpack.c.b16 %v983, %v979
    %v1240 = vpack.c.b16 %v984, %v980
    %v1241 = vpack.c.b16 %v985, %v981
    %v1242 = vpack.c.b16 %v990, %v986
    %v1243 = vpack.c.b16 %v991, %v987
    %v1244 = vpack.c.b16 %v992, %v988
    %v1245 = vpack.c.b16 %v993, %v989
    %v1246 = vpack.c.b16 %v998, %v994
    %v1247 = vpack.c.b16 %v999, %v995
    %v1248 = vpack.c.b16 %v1000, %v996
    %v1249 = vpack.c.b16 %v1001, %v997
    %v1250 = vpack.c.b16 %v1006, %v1002
    %v1251 = vpack.c.b16 %v1007, %v1003
    %v1252 = vpack.c.b16 %v1008, %v1004
    %v1253 = vpack.c.b16 %v1009, %v1005
    %v1254 = vpack.c.b16 %v1014, %v1010
    %v1255 = vpack.c.b16 %v1015, %v1011
    %v1256 = vpack.c.b16 %v1016, %v1012
    %v1257 = vpack.c.b16 %v1017, %v1013
    %v1258 = vpack.c.b16 %v1022, %v1018
    %v1259 = vpack.c.b16 %v1023, %v1019
    %v1260 = vpack.c.b16 %v1024, %v1020
    %v1261 = vpack.c.b16 %v1025, %v1021
    %v1262 = vpack.c.b16 %v1030, %v1026
    %v1263 = vpack.c.b16 %v1031, %v1027
    %v1264 = vpack.c.b16 %v1032, %v1028
    %v1265 = vpack.c.b16 %v1033, %v1029
    %v1266 = vpack.c.b16 %v1038, %v1034
    %v1267 = vpack.c.b16 %v1039, %v1035
    %v1268 = vpack.c.b16 %v1040, %v1036
    %v1269 = vpack.c.b16 %v1041, %v1037
    %v1270 = vpack.c.b16 %v1046, %v1042
    %v1271 = vpack.c.b16 %v1047, %v1043
    %v1272 = vpack.c.b16 %v1048, %v1044
    %v1273 = vpack.c.b16 %v1049, %v1045
    %1498 = vmatpush.bf16.msra.mxu0 %v1078
    %1499 = vmatpush.bf16.msra.mxu0 %v1074
    %1500 = vmatpush.bf16.msra.mxu0 %v1070
    %1501 = vmatpush.bf16.msra.mxu0 %v1066
    %1502 = vmatpush.bf16.msra.mxu0 %v1062
    %1503 = vmatpush.bf16.msra.mxu0 %v1058
    %1504 = vmatpush.bf16.msra.mxu0 %v1054
    %1505 = vmatpush.bf16.msra.mxu0 %v1050
    %1506 = vmatmul.bf16.gmra.mxu0 %v364
    %v1507 = vpop.f32.mrf.mxu0
    %v1508 = vadd.f32 %v334, %v1507
    %v1509 = vpop.f32.mrf.mxu0
    %v1510 = vadd.f32 %v334, %v1509
    %1511 = vdwg.mxu0
    %1512 = vmatpush.bf16.msra.mxu0 %v1110
    %1513 = vmatpush.bf16.msra.mxu0 %v1106
    %1514 = vmatpush.bf16.msra.mxu0 %v1102
    %1515 = vmatpush.bf16.msra.mxu0 %v1098
    %1516 = vmatpush.bf16.msra.mxu0 %v1094
    %1517 = vmatpush.bf16.msra.mxu0 %v1090
    %1518 = vmatpush.bf16.msra.mxu0 %v1086
    %1519 = vmatpush.bf16.msra.mxu0 %v1082
    %1520 = vmatmul.bf16.gmra.mxu0 %v365
    %v1521 = vpop.f32.mrf.mxu0
    %v1522 = vadd.f32 %v1508, %v1521
    %v1523 = vpop.f32.mrf.mxu0
    %v1524 = vadd.f32 %v1510, %v1523
    %1525 = vdwg.mxu0
    %1526 = vmatpush.bf16.msra.mxu0 %v1142
    %1527 = vmatpush.bf16.msra.mxu0 %v1138
    %1528 = vmatpush.bf16.msra.mxu0 %v1134
    %1529 = vmatpush.bf16.msra.mxu0 %v1130
    %1530 = vmatpush.bf16.msra.mxu0 %v1126
    %1531 = vmatpush.bf16.msra.mxu0 %v1122
    %1532 = vmatpush.bf16.msra.mxu0 %v1118
    %1533 = vmatpush.bf16.msra.mxu0 %v1114
    %1534 = vmatmul.bf16.gmra.mxu0 %v366
    %v1535 = vpop.f32.mrf.mxu0
    %v1536 = vadd.f32 %v1522, %v1535
    %v1537 = vpop.f32.mrf.mxu0
    %v1538 = vadd.f32 %v1524, %v1537
    %1539 = vdwg.mxu0
    %1540 = vmatpush.bf16.msra.mxu0 %v1174
    %1541 = vmatpush.bf16.msra.mxu0 %v1170
    %1542 = vmatpush.bf16.msra.mxu0 %v1166
    %1543 = vmatpush.bf16.msra.mxu0 %v1162
    %1544 = vmatpush.bf16.msra.mxu0 %v1158
    %1545 = vmatpush.bf16.msra.mxu0 %v1154
    %1546 = vmatpush.bf16.msra.mxu0 %v1150
    %1547 = vmatpush.bf16.msra.mxu0 %v1146
    %1548 = vmatmul.bf16.gmra.mxu0 %v367
    %v1549 = vpop.f32.mrf.mxu0
    %v1550 = vadd.f32 %v1536, %v1549
    %v1551 = vpop.f32.mrf.mxu0
    %v1552 = vadd.f32 %v1538, %v1551
    %1553 = vdwg.mxu0
    %1554 = vmatpush.bf16.msra.mxu0 %v1206
    %1555 = vmatpush.bf16.msra.mxu0 %v1202
    %1556 = vmatpush.bf16.msra.mxu0 %v1198
    %1557 = vmatpush.bf16.msra.mxu0 %v1194
    %1558 = vmatpush.bf16.msra.mxu0 %v1190
    %1559 = vmatpush.bf16.msra.mxu0 %v1186
    %1560 = vmatpush.bf16.msra.mxu0 %v1182
    %1561 = vmatpush.bf16.msra.mxu0 %v1178
    %1562 = vmatmul.bf16.gmra.mxu0 %v368
    %v1563 = vpop.f32.mrf.mxu0
    %v1564 = vadd.f32 %v1550, %v1563
    %v1565 = vpop.f32.mrf.mxu0
    %v1566 = vadd.f32 %v1552, %v1565
    %1567 = vdwg.mxu0
    %1568 = vmatpush.bf16.msra.mxu0 %v1238
    %1569 = vmatpush.bf16.msra.mxu0 %v1234
    %1570 = vmatpush.bf16.msra.mxu0 %v1230
    %1571 = vmatpush.bf16.msra.mxu0 %v1226
    %1572 = vmatpush.bf16.msra.mxu0 %v1222
    %1573 = vmatpush.bf16.msra.mxu0 %v1218
    %1574 = vmatpush.bf16.msra.mxu0 %v1214
    %1575 = vmatpush.bf16.msra.mxu0 %v1210
    %1576 = vmatmul.bf16.gmra.mxu0 %v369
    %v1577 = vpop.f32.mrf.mxu0
    %v1578 = vadd.f32 %v1564, %v1577
    %v1579 = vpop.f32.mrf.mxu0
    %v1580 = vadd.f32 %v1566, %v1579
    %1581 = vdwg.mxu0
    %1582 = vmatpush.bf16.msra.mxu0 %v1270
    %1583 = vmatpush.bf16.msra.mxu0 %v1266
    %1584 = vmatpush.bf16.msra.mxu0 %v1262
    %1585 = vmatpush.bf16.msra.mxu0 %v1258
    %1586 = vmatpush.bf16.msra.mxu0 %v1254
    %1587 = vmatpush.bf16.msra.mxu0 %v1250
    %1588 = vmatpush.bf16.msra.mxu0 %v1246
    %1589 = vmatpush.bf16.msra.mxu0 %v1242
    %1590 = vmatmul.bf16.gmra.mxu0 %v370
    %v1591 = vpop.f32.mrf.mxu0
    %v1592 = vadd.f32 %v1578, %v1591
    %v1593 = vpop.f32.mrf.mxu0
    %v1594 = vadd.f32 %v1580, %v1593
    %1595 = vdwg.mxu0
    %1596 = vmatpush.bf16.msra.mxu0 %v1079
    %1597 = vmatpush.bf16.msra.mxu0 %v1075
    %1598 = vmatpush.bf16.msra.mxu0 %v1071
    %1599 = vmatpush.bf16.msra.mxu0 %v1067
    %1600 = vmatpush.bf16.msra.mxu0 %v1063
    %1601 = vmatpush.bf16.msra.mxu0 %v1059
    %1602 = vmatpush.bf16.msra.mxu0 %v1055
    %1603 = vmatpush.bf16.msra.mxu0 %v1051
    %1604 = vmatmul.bf16.gmra.mxu0 %v364
    %v1605 = vpop.f32.mrf.mxu0
    %v1606 = vadd.f32 %v335, %v1605
    %v1607 = vpop.f32.mrf.mxu0
    %v1608 = vadd.f32 %v335, %v1607
    %1609 = vdwg.mxu0
    %1610 = vmatpush.bf16.msra.mxu0 %v1111
    %1611 = vmatpush.bf16.msra.mxu0 %v1107
    %1612 = vmatpush.bf16.msra.mxu0 %v1103
    %1613 = vmatpush.bf16.msra.mxu0 %v1099
    %1614 = vmatpush.bf16.msra.mxu0 %v1095
    %1615 = vmatpush.bf16.msra.mxu0 %v1091
    %1616 = vmatpush.bf16.msra.mxu0 %v1087
    %1617 = vmatpush.bf16.msra.mxu0 %v1083
    %1618 = vmatmul.bf16.gmra.mxu0 %v365
    %v1619 = vpop.f32.mrf.mxu0
    %v1620 = vadd.f32 %v1606, %v1619
    %v1621 = vpop.f32.mrf.mxu0
    %v1622 = vadd.f32 %v1608, %v1621
    %1623 = vdwg.mxu0
    %1624 = vmatpush.bf16.msra.mxu0 %v1143
    %1625 = vmatpush.bf16.msra.mxu0 %v1139
    %1626 = vmatpush.bf16.msra.mxu0 %v1135
    %1627 = vmatpush.bf16.msra.mxu0 %v1131
    %1628 = vmatpush.bf16.msra.mxu0 %v1127
    %1629 = vmatpush.bf16.msra.mxu0 %v1123
    %1630 = vmatpush.bf16.msra.mxu0 %v1119
    %1631 = vmatpush.bf16.msra.mxu0 %v1115
    %1632 = vmatmul.bf16.gmra.mxu0 %v366
    %v1633 = vpop.f32.mrf.mxu0
    %v1634 = vadd.f32 %v1620, %v1633
    %v1635 = vpop.f32.mrf.mxu0
    %v1636 = vadd.f32 %v1622, %v1635
    %1637 = vdwg.mxu0
    %1638 = vmatpush.bf16.msra.mxu0 %v1175
    %1639 = vmatpush.bf16.msra.mxu0 %v1171
    %1640 = vmatpush.bf16.msra.mxu0 %v1167
    %1641 = vmatpush.bf16.msra.mxu0 %v1163
    %1642 = vmatpush.bf16.msra.mxu0 %v1159
    %1643 = vmatpush.bf16.msra.mxu0 %v1155
    %1644 = vmatpush.bf16.msra.mxu0 %v1151
    %1645 = vmatpush.bf16.msra.mxu0 %v1147
    %1646 = vmatmul.bf16.gmra.mxu0 %v367
    %v1647 = vpop.f32.mrf.mxu0
    %v1648 = vadd.f32 %v1634, %v1647
    %v1649 = vpop.f32.mrf.mxu0
    %v1650 = vadd.f32 %v1636, %v1649
    %1651 = vdwg.mxu0
    %1652 = vmatpush.bf16.msra.mxu0 %v1207
    %1653 = vmatpush.bf16.msra.mxu0 %v1203
    %1654 = vmatpush.bf16.msra.mxu0 %v1199
    %1655 = vmatpush.bf16.msra.mxu0 %v1195
    %1656 = vmatpush.bf16.msra.mxu0 %v1191
    %1657 = vmatpush.bf16.msra.mxu0 %v1187
    %1658 = vmatpush.bf16.msra.mxu0 %v1183
    %1659 = vmatpush.bf16.msra.mxu0 %v1179
    %1660 = vmatmul.bf16.gmra.mxu0 %v368
    %v1661 = vpop.f32.mrf.mxu0
    %v1662 = vadd.f32 %v1648, %v1661
    %v1663 = vpop.f32.mrf.mxu0
    %v1664 = vadd.f32 %v1650, %v1663
    %1665 = vdwg.mxu0
    %1666 = vmatpush.bf16.msra.mxu0 %v1239
    %1667 = vmatpush.bf16.msra.mxu0 %v1235
    %1668 = vmatpush.bf16.msra.mxu0 %v1231
    %1669 = vmatpush.bf16.msra.mxu0 %v1227
    %1670 = vmatpush.bf16.msra.mxu0 %v1223
    %1671 = vmatpush.bf16.msra.mxu0 %v1219
    %1672 = vmatpush.bf16.msra.mxu0 %v1215
    %1673 = vmatpush.bf16.msra.mxu0 %v1211
    %1674 = vmatmul.bf16.gmra.mxu0 %v369
    %v1675 = vpop.f32.mrf.mxu0
    %v1676 = vadd.f32 %v1662, %v1675
    %v1677 = vpop.f32.mrf.mxu0
    %v1678 = vadd.f32 %v1664, %v1677
    %1679 = vdwg.mxu0
    %1680 = vmatpush.bf16.msra.mxu0 %v1271
    %1681 = vmatpush.bf16.msra.mxu0 %v1267
    %1682 = vmatpush.bf16.msra.mxu0 %v1263
    %1683 = vmatpush.bf16.msra.mxu0 %v1259
    %1684 = vmatpush.bf16.msra.mxu0 %v1255
    %1685 = vmatpush.bf16.msra.mxu0 %v1251
    %1686 = vmatpush.bf16.msra.mxu0 %v1247
    %1687 = vmatpush.bf16.msra.mxu0 %v1243
    %1688 = vmatmul.bf16.gmra.mxu0 %v370
    %v1689 = vpop.f32.mrf.mxu0
    %v1690 = vadd.f32 %v1676, %v1689
    %v1691 = vpop.f32.mrf.mxu0
    %v1692 = vadd.f32 %v1678, %v1691
    %1693 = vdwg.mxu0
    %1694 = vmatpush.bf16.msra.mxu0 %v1080
    %1695 = vmatpush.bf16.msra.mxu0 %v1076
    %1696 = vmatpush.bf16.msra.mxu0 %v1072
    %1697 = vmatpush.bf16.msra.mxu0 %v1068
    %1698 = vmatpush.bf16.msra.mxu0 %v1064
    %1699 = vmatpush.bf16.msra.mxu0 %v1060
    %1700 = vmatpush.bf16.msra.mxu0 %v1056
    %1701 = vmatpush.bf16.msra.mxu0 %v1052
    %1702 = vmatmul.bf16.gmra.mxu0 %v364
    %v1703 = vpop.f32.mrf.mxu0
    %v1704 = vadd.f32 %v336, %v1703
    %v1705 = vpop.f32.mrf.mxu0
    %v1706 = vadd.f32 %v336, %v1705
    %1707 = vdwg.mxu0
    %1708 = vmatpush.bf16.msra.mxu0 %v1112
    %1709 = vmatpush.bf16.msra.mxu0 %v1108
    %1710 = vmatpush.bf16.msra.mxu0 %v1104
    %1711 = vmatpush.bf16.msra.mxu0 %v1100
    %1712 = vmatpush.bf16.msra.mxu0 %v1096
    %1713 = vmatpush.bf16.msra.mxu0 %v1092
    %1714 = vmatpush.bf16.msra.mxu0 %v1088
    %1715 = vmatpush.bf16.msra.mxu0 %v1084
    %1716 = vmatmul.bf16.gmra.mxu0 %v365
    %v1717 = vpop.f32.mrf.mxu0
    %v1718 = vadd.f32 %v1704, %v1717
    %v1719 = vpop.f32.mrf.mxu0
    %v1720 = vadd.f32 %v1706, %v1719
    %1721 = vdwg.mxu0
    %1722 = vmatpush.bf16.msra.mxu0 %v1144
    %1723 = vmatpush.bf16.msra.mxu0 %v1140
    %1724 = vmatpush.bf16.msra.mxu0 %v1136
    %1725 = vmatpush.bf16.msra.mxu0 %v1132
    %1726 = vmatpush.bf16.msra.mxu0 %v1128
    %1727 = vmatpush.bf16.msra.mxu0 %v1124
    %1728 = vmatpush.bf16.msra.mxu0 %v1120
    %1729 = vmatpush.bf16.msra.mxu0 %v1116
    %1730 = vmatmul.bf16.gmra.mxu0 %v366
    %v1731 = vpop.f32.mrf.mxu0
    %v1732 = vadd.f32 %v1718, %v1731
    %v1733 = vpop.f32.mrf.mxu0
    %v1734 = vadd.f32 %v1720, %v1733
    %1735 = vdwg.mxu0
    %1736 = vmatpush.bf16.msra.mxu0 %v1176
    %1737 = vmatpush.bf16.msra.mxu0 %v1172
    %1738 = vmatpush.bf16.msra.mxu0 %v1168
    %1739 = vmatpush.bf16.msra.mxu0 %v1164
    %1740 = vmatpush.bf16.msra.mxu0 %v1160
    %1741 = vmatpush.bf16.msra.mxu0 %v1156
    %1742 = vmatpush.bf16.msra.mxu0 %v1152
    %1743 = vmatpush.bf16.msra.mxu0 %v1148
    %1744 = vmatmul.bf16.gmra.mxu0 %v367
    %v1745 = vpop.f32.mrf.mxu0
    %v1746 = vadd.f32 %v1732, %v1745
    %v1747 = vpop.f32.mrf.mxu0
    %v1748 = vadd.f32 %v1734, %v1747
    %1749 = vdwg.mxu0
    %1750 = vmatpush.bf16.msra.mxu0 %v1208
    %1751 = vmatpush.bf16.msra.mxu0 %v1204
    %1752 = vmatpush.bf16.msra.mxu0 %v1200
    %1753 = vmatpush.bf16.msra.mxu0 %v1196
    %1754 = vmatpush.bf16.msra.mxu0 %v1192
    %1755 = vmatpush.bf16.msra.mxu0 %v1188
    %1756 = vmatpush.bf16.msra.mxu0 %v1184
    %1757 = vmatpush.bf16.msra.mxu0 %v1180
    %1758 = vmatmul.bf16.gmra.mxu0 %v368
    %v1759 = vpop.f32.mrf.mxu0
    %v1760 = vadd.f32 %v1746, %v1759
    %v1761 = vpop.f32.mrf.mxu0
    %v1762 = vadd.f32 %v1748, %v1761
    %1763 = vdwg.mxu0
    %1764 = vmatpush.bf16.msra.mxu0 %v1240
    %1765 = vmatpush.bf16.msra.mxu0 %v1236
    %1766 = vmatpush.bf16.msra.mxu0 %v1232
    %1767 = vmatpush.bf16.msra.mxu0 %v1228
    %1768 = vmatpush.bf16.msra.mxu0 %v1224
    %1769 = vmatpush.bf16.msra.mxu0 %v1220
    %1770 = vmatpush.bf16.msra.mxu0 %v1216
    %1771 = vmatpush.bf16.msra.mxu0 %v1212
    %1772 = vmatmul.bf16.gmra.mxu0 %v369
    %v1773 = vpop.f32.mrf.mxu0
    %v1774 = vadd.f32 %v1760, %v1773
    %v1775 = vpop.f32.mrf.mxu0
    %v1776 = vadd.f32 %v1762, %v1775
    %1777 = vdwg.mxu0
    %1778 = vmatpush.bf16.msra.mxu0 %v1272
    %1779 = vmatpush.bf16.msra.mxu0 %v1268
    %1780 = vmatpush.bf16.msra.mxu0 %v1264
    %1781 = vmatpush.bf16.msra.mxu0 %v1260
    %1782 = vmatpush.bf16.msra.mxu0 %v1256
    %1783 = vmatpush.bf16.msra.mxu0 %v1252
    %1784 = vmatpush.bf16.msra.mxu0 %v1248
    %1785 = vmatpush.bf16.msra.mxu0 %v1244
    %1786 = vmatmul.bf16.gmra.mxu0 %v370
    %v1787 = vpop.f32.mrf.mxu0
    %v1788 = vadd.f32 %v1774, %v1787
    %v1789 = vpop.f32.mrf.mxu0
    %v1790 = vadd.f32 %v1776, %v1789
    %1791 = vdwg.mxu0
    %1792 = vmatpush.bf16.msra.mxu0 %v1081
    %1793 = vmatpush.bf16.msra.mxu0 %v1077
    %1794 = vmatpush.bf16.msra.mxu0 %v1073
    %1795 = vmatpush.bf16.msra.mxu0 %v1069
    %1796 = vmatpush.bf16.msra.mxu0 %v1065
    %1797 = vmatpush.bf16.msra.mxu0 %v1061
    %1798 = vmatpush.bf16.msra.mxu0 %v1057
    %1799 = vmatpush.bf16.msra.mxu0 %v1053
    %1800 = vmatmul.bf16.gmra.mxu0 %v364
    %v1801 = vpop.f32.mrf.mxu0
    %v1802 = vadd.f32 %v337, %v1801
    %v1803 = vpop.f32.mrf.mxu0
    %v1804 = vadd.f32 %v337, %v1803
    %1805 = vdwg.mxu0
    %1806 = vmatpush.bf16.msra.mxu0 %v1113
    %1807 = vmatpush.bf16.msra.mxu0 %v1109
    %1808 = vmatpush.bf16.msra.mxu0 %v1105
    %1809 = vmatpush.bf16.msra.mxu0 %v1101
    %1810 = vmatpush.bf16.msra.mxu0 %v1097
    %1811 = vmatpush.bf16.msra.mxu0 %v1093
    %1812 = vmatpush.bf16.msra.mxu0 %v1089
    %1813 = vmatpush.bf16.msra.mxu0 %v1085
    %1814 = vmatmul.bf16.gmra.mxu0 %v365
    %v1815 = vpop.f32.mrf.mxu0
    %v1816 = vadd.f32 %v1802, %v1815
    %v1817 = vpop.f32.mrf.mxu0
    %v1818 = vadd.f32 %v1804, %v1817
    %1819 = vdwg.mxu0
    %1820 = vmatpush.bf16.msra.mxu0 %v1145
    %1821 = vmatpush.bf16.msra.mxu0 %v1141
    %1822 = vmatpush.bf16.msra.mxu0 %v1137
    %1823 = vmatpush.bf16.msra.mxu0 %v1133
    %1824 = vmatpush.bf16.msra.mxu0 %v1129
    %1825 = vmatpush.bf16.msra.mxu0 %v1125
    %1826 = vmatpush.bf16.msra.mxu0 %v1121
    %1827 = vmatpush.bf16.msra.mxu0 %v1117
    %1828 = vmatmul.bf16.gmra.mxu0 %v366
    %v1829 = vpop.f32.mrf.mxu0
    %v1830 = vadd.f32 %v1816, %v1829
    %v1831 = vpop.f32.mrf.mxu0
    %v1832 = vadd.f32 %v1818, %v1831
    %1833 = vdwg.mxu0
    %1834 = vmatpush.bf16.msra.mxu0 %v1177
    %1835 = vmatpush.bf16.msra.mxu0 %v1173
    %1836 = vmatpush.bf16.msra.mxu0 %v1169
    %1837 = vmatpush.bf16.msra.mxu0 %v1165
    %1838 = vmatpush.bf16.msra.mxu0 %v1161
    %1839 = vmatpush.bf16.msra.mxu0 %v1157
    %1840 = vmatpush.bf16.msra.mxu0 %v1153
    %1841 = vmatpush.bf16.msra.mxu0 %v1149
    %1842 = vmatmul.bf16.gmra.mxu0 %v367
    %v1843 = vpop.f32.mrf.mxu0
    %v1844 = vadd.f32 %v1830, %v1843
    %v1845 = vpop.f32.mrf.mxu0
    %v1846 = vadd.f32 %v1832, %v1845
    %1847 = vdwg.mxu0
    %1848 = vmatpush.bf16.msra.mxu0 %v1209
    %1849 = vmatpush.bf16.msra.mxu0 %v1205
    %1850 = vmatpush.bf16.msra.mxu0 %v1201
    %1851 = vmatpush.bf16.msra.mxu0 %v1197
    %1852 = vmatpush.bf16.msra.mxu0 %v1193
    %1853 = vmatpush.bf16.msra.mxu0 %v1189
    %1854 = vmatpush.bf16.msra.mxu0 %v1185
    %1855 = vmatpush.bf16.msra.mxu0 %v1181
    %1856 = vmatmul.bf16.gmra.mxu0 %v368
    %v1857 = vpop.f32.mrf.mxu0
    %v1858 = vadd.f32 %v1844, %v1857
    %v1859 = vpop.f32.mrf.mxu0
    %v1860 = vadd.f32 %v1846, %v1859
    %1861 = vdwg.mxu0
    %1862 = vmatpush.bf16.msra.mxu0 %v1241
    %1863 = vmatpush.bf16.msra.mxu0 %v1237
    %1864 = vmatpush.bf16.msra.mxu0 %v1233
    %1865 = vmatpush.bf16.msra.mxu0 %v1229
    %1866 = vmatpush.bf16.msra.mxu0 %v1225
    %1867 = vmatpush.bf16.msra.mxu0 %v1221
    %1868 = vmatpush.bf16.msra.mxu0 %v1217
    %1869 = vmatpush.bf16.msra.mxu0 %v1213
    %1870 = vmatmul.bf16.gmra.mxu0 %v369
    %v1871 = vpop.f32.mrf.mxu0
    %v1872 = vadd.f32 %v1858, %v1871
    %v1873 = vpop.f32.mrf.mxu0
    %v1874 = vadd.f32 %v1860, %v1873
    %1875 = vdwg.mxu0
    %1876 = vmatpush.bf16.msra.mxu0 %v1273
    %1877 = vmatpush.bf16.msra.mxu0 %v1269
    %1878 = vmatpush.bf16.msra.mxu0 %v1265
    %1879 = vmatpush.bf16.msra.mxu0 %v1261
    %1880 = vmatpush.bf16.msra.mxu0 %v1257
    %1881 = vmatpush.bf16.msra.mxu0 %v1253
    %1882 = vmatpush.bf16.msra.mxu0 %v1249
    %1883 = vmatpush.bf16.msra.mxu0 %v1245
    %1884 = vmatmul.bf16.gmra.mxu0 %v370
    %v1885 = vpop.f32.mrf.mxu0
    %v1886 = vadd.f32 %v1872, %v1885
    %v1887 = vpop.f32.mrf.mxu0
    %v1888 = vadd.f32 %v1874, %v1887
    %1889 = vdwg.mxu0
    %v1890 = vmax.f32 %v1592, 0.0
    %v1891 = vmax.f32 %v1690, 0.0
    %v1892 = vmax.f32 %v1788, 0.0
    %v1893 = vmax.f32 %v1886, 0.0
    %v1894 = vmax.f32 %v1594, 0.0
    %v1895 = vmax.f32 %v1692, 0.0
    %v1896 = vmax.f32 %v1790, 0.0
    %v1897 = vmax.f32 %v1888, 0.0
    %v1898 = vpack.c.bf16 %v1894, %v1890
    %v1899 = vpack.c.bf16 %v1895, %v1891
    %v1900 = vpack.c.bf16 %v1896, %v1892
    %v1901 = vpack.c.bf16 %v1897, %v1893
    %v1902 = vld [vmem:[#allocation4] sm:$0xff]
    %v1903 = vld [vmem:[#allocation4 + $0x8] sm:$0xff]
    %v1904 = vld [vmem:[#allocation4 + $0x10] sm:$0xff]
    %v1905 = vld [vmem:[#allocation4 + $0x18] sm:$0xff]
    %v1906 = vld [vmem:[#allocation4 + $0x20] sm:$0xff]
    %v1907 = vld [vmem:[#allocation4 + $0x28] sm:$0xff]
    %v1908 = vld [vmem:[#allocation4 + $0x30] sm:$0xff]
    %v1909 = vld [vmem:[#allocation4 + $0x38] sm:$0xff]
    %v1910 = vld [vmem:[#allocation4 + $0x40] sm:$0xff]
    %v1911 = vld [vmem:[#allocation4 + $0x48] sm:$0xff]
    %v1912 = vld [vmem:[#allocation4 + $0x50] sm:$0xff]
    %v1913 = vld [vmem:[#allocation4 + $0x58] sm:$0xff]
    %v1914 = vld [vmem:[#allocation4 + $0x60] sm:$0xff]
    %v1915 = vld [vmem:[#allocation4 + $0x68] sm:$0xff]
    %v1916 = vld [vmem:[#allocation4 + $0x70] sm:$0xff]
    %v1917 = vld [vmem:[#allocation4 + $0x78] sm:$0xff]
    %v1918 = vld [vmem:[#allocation4 + $0x80] sm:$0xff]
    %v1919 = vld [vmem:[#allocation4 + $0x88] sm:$0xff]
    %v1920 = vld [vmem:[#allocation4 + $0x90] sm:$0xff]
    %v1921 = vld [vmem:[#allocation4 + $0x98] sm:$0xff]
    %v1922 = vld [vmem:[#allocation4 + $0xa0] sm:$0xff]
    %v1923 = vld [vmem:[#allocation4 + $0xa8] sm:$0xff]
    %v1924 = vld [vmem:[#allocation4 + $0xb0] sm:$0xff]
    %v1925 = vld [vmem:[#allocation4 + $0xb8] sm:$0xff]
    %v1926 = vld [vmem:[#allocation4 + $0xc0] sm:$0xff]
    %v1927 = vld [vmem:[#allocation4 + $0xc8] sm:$0xff]
    %v1928 = vld [vmem:[#allocation4 + $0xd0] sm:$0xff]
    %v1929 = vld [vmem:[#allocation4 + $0xd8] sm:$0xff]
    %v1930 = vld [vmem:[#allocation4 + $0xe0] sm:$0xff]
    %v1931 = vld [vmem:[#allocation4 + $0xe8] sm:$0xff]
    %v1932 = vld [vmem:[#allocation4 + $0xf0] sm:$0xff]
    %v1933 = vld [vmem:[#allocation4 + $0xf8] sm:$0xff]
    %v1934 = vld [vmem:[#allocation4 + $0x100] sm:$0xff]
    %v1935 = vld [vmem:[#allocation4 + $0x108] sm:$0xff]
    %v1936 = vld [vmem:[#allocation4 + $0x110] sm:$0xff]
    %v1937 = vld [vmem:[#allocation4 + $0x118] sm:$0xff]
    %v1938 = vld [vmem:[#allocation4 + $0x120] sm:$0xff]
    %v1939 = vld [vmem:[#allocation4 + $0x128] sm:$0xff]
    %v1940 = vld [vmem:[#allocation4 + $0x130] sm:$0xff]
    %v1941 = vld [vmem:[#allocation4 + $0x138] sm:$0xff]
    %v1942 = vld [vmem:[#allocation4 + $0x140] sm:$0xff]
    %v1943 = vld [vmem:[#allocation4 + $0x148] sm:$0xff]
    %v1944 = vld [vmem:[#allocation4 + $0x150] sm:$0xff]
    %v1945 = vld [vmem:[#allocation4 + $0x158] sm:$0xff]
    %v1946 = vld [vmem:[#allocation4 + $0x160] sm:$0xff]
    %v1947 = vld [vmem:[#allocation4 + $0x168] sm:$0xff]
    %v1948 = vld [vmem:[#allocation4 + $0x170] sm:$0xff]
    %v1949 = vld [vmem:[#allocation4 + $0x178] sm:$0xff]
    %v1950 = vld [vmem:[#allocation4 + $0x180] sm:$0xff]
    %v1951 = vld [vmem:[#allocation4 + $0x188] sm:$0xff]
    %v1952 = vld [vmem:[#allocation4 + $0x190] sm:$0xff]
    %v1953 = vld [vmem:[#allocation4 + $0x198] sm:$0xff]
    %v1954 = vld [vmem:[#allocation4 + $0x1a0] sm:$0xff]
    %v1955 = vld [vmem:[#allocation4 + $0x1a8] sm:$0xff]
    %v1956 = vld [vmem:[#allocation4 + $0x1b0] sm:$0xff]
    %v1957 = vld [vmem:[#allocation4 + $0x1b8] sm:$0xff]
    %v1958 = vld [vmem:[#allocation4 + $0x1c0] sm:$0xff]
    %v1959 = vld [vmem:[#allocation4 + $0x1c8] sm:$0xff]
    %v1960 = vld [vmem:[#allocation4 + $0x1d0] sm:$0xff]
    %v1961 = vld [vmem:[#allocation4 + $0x1d8] sm:$0xff]
    %v1962 = vld [vmem:[#allocation4 + $0x1e0] sm:$0xff]
    %v1963 = vld [vmem:[#allocation4 + $0x1e8] sm:$0xff]
    %v1964 = vld [vmem:[#allocation4 + $0x1f0] sm:$0xff]
    %v1965 = vld [vmem:[#allocation4 + $0x1f8] sm:$0xff]
    %v1966 = vld [vmem:[%s5] sm:$0x3]
    %v1968 = vperm.slane %v1966, 0
    %v1969 = vperm.slane %v1966, 1
    %v2036 = vunpack.c.l.b16 %v1902
    %v2037 = vunpack.c.h.b16 %v1902
    %v2038 = vunpack.c.l.b16 %v1903
    %v2039 = vunpack.c.h.b16 %v1903
    %v2040 = vunpack.c.l.b16 %v1904
    %v2041 = vunpack.c.h.b16 %v1904
    %v2042 = vunpack.c.l.b16 %v1905
    %v2043 = vunpack.c.h.b16 %v1905
    %v2044 = vunpack.c.l.b16 %v1906
    %v2045 = vunpack.c.h.b16 %v1906
    %v2046 = vunpack.c.l.b16 %v1907
    %v2047 = vunpack.c.h.b16 %v1907
    %v2048 = vunpack.c.l.b16 %v1908
    %v2049 = vunpack.c.h.b16 %v1908
    %v2050 = vunpack.c.l.b16 %v1909
    %v2051 = vunpack.c.h.b16 %v1909
    %v2052 = vunpack.c.l.b16 %v1910
    %v2053 = vunpack.c.h.b16 %v1910
    %v2054 = vunpack.c.l.b16 %v1911
    %v2055 = vunpack.c.h.b16 %v1911
    %v2056 = vunpack.c.l.b16 %v1912
    %v2057 = vunpack.c.h.b16 %v1912
    %v2058 = vunpack.c.l.b16 %v1913
    %v2059 = vunpack.c.h.b16 %v1913
    %v2060 = vunpack.c.l.b16 %v1914
    %v2061 = vunpack.c.h.b16 %v1914
    %v2062 = vunpack.c.l.b16 %v1915
    %v2063 = vunpack.c.h.b16 %v1915
    %v2064 = vunpack.c.l.b16 %v1916
    %v2065 = vunpack.c.h.b16 %v1916
    %v2066 = vunpack.c.l.b16 %v1917
    %v2067 = vunpack.c.h.b16 %v1917
    %v2068 = vunpack.c.l.b16 %v1918
    %v2069 = vunpack.c.h.b16 %v1918
    %v2070 = vunpack.c.l.b16 %v1919
    %v2071 = vunpack.c.h.b16 %v1919
    %v2072 = vunpack.c.l.b16 %v1920
    %v2073 = vunpack.c.h.b16 %v1920
    %v2074 = vunpack.c.l.b16 %v1921
    %v2075 = vunpack.c.h.b16 %v1921
    %v2076 = vunpack.c.l.b16 %v1922
    %v2077 = vunpack.c.h.b16 %v1922
    %v2078 = vunpack.c.l.b16 %v1923
    %v2079 = vunpack.c.h.b16 %v1923
    %v2080 = vunpack.c.l.b16 %v1924
    %v2081 = vunpack.c.h.b16 %v1924
    %v2082 = vunpack.c.l.b16 %v1925
    %v2083 = vunpack.c.h.b16 %v1925
    %v2084 = vunpack.c.l.b16 %v1926
    %v2085 = vunpack.c.h.b16 %v1926
    %v2086 = vunpack.c.l.b16 %v1927
    %v2087 = vunpack.c.h.b16 %v1927
    %v2088 = vunpack.c.l.b16 %v1928
    %v2089 = vunpack.c.h.b16 %v1928
    %v2090 = vunpack.c.l.b16 %v1929
    %v2091 = vunpack.c.h.b16 %v1929
    %v2092 = vunpack.c.l.b16 %v1930
    %v2093 = vunpack.c.h.b16 %v1930
    %v2094 = vunpack.c.l.b16 %v1931
    %v2095 = vunpack.c.h.b16 %v1931
    %v2096 = vunpack.c.l.b16 %v1932
    %v2097 = vunpack.c.h.b16 %v1932
    %v2098 = vunpack.c.l.b16 %v1933
    %v2099 = vunpack.c.h.b16 %v1933
    %v2100 = vunpack.c.l.b16 %v1934
    %v2101 = vunpack.c.h.b16 %v1934
    %v2102 = vunpack.c.l.b16 %v1935
    %v2103 = vunpack.c.h.b16 %v1935
    %v2104 = vunpack.c.l.b16 %v1936
    %v2105 = vunpack.c.h.b16 %v1936
    %v2106 = vunpack.c.l.b16 %v1937
    %v2107 = vunpack.c.h.b16 %v1937
    %v2108 = vunpack.c.l.b16 %v1938
    %v2109 = vunpack.c.h.b16 %v1938
    %v2110 = vunpack.c.l.b16 %v1939
    %v2111 = vunpack.c.h.b16 %v1939
    %v2112 = vunpack.c.l.b16 %v1940
    %v2113 = vunpack.c.h.b16 %v1940
    %v2114 = vunpack.c.l.b16 %v1941
    %v2115 = vunpack.c.h.b16 %v1941
    %v2116 = vunpack.c.l.b16 %v1942
    %v2117 = vunpack.c.h.b16 %v1942
    %v2118 = vunpack.c.l.b16 %v1943
    %v2119 = vunpack.c.h.b16 %v1943
    %v2120 = vunpack.c.l.b16 %v1944
    %v2121 = vunpack.c.h.b16 %v1944
    %v2122 = vunpack.c.l.b16 %v1945
    %v2123 = vunpack.c.h.b16 %v1945
    %v2124 = vunpack.c.l.b16 %v1946
    %v2125 = vunpack.c.h.b16 %v1946
    %v2126 = vunpack.c.l.b16 %v1947
    %v2127 = vunpack.c.h.b16 %v1947
    %v2128 = vunpack.c.l.b16 %v1948
    %v2129 = vunpack.c.h.b16 %v1948
    %v2130 = vunpack.c.l.b16 %v1949
    %v2131 = vunpack.c.h.b16 %v1949
    %v2132 = vunpack.c.l.b16 %v1950
    %v2133 = vunpack.c.h.b16 %v1950
    %v2134 = vunpack.c.l.b16 %v1951
    %v2135 = vunpack.c.h.b16 %v1951
    %v2136 = vunpack.c.l.b16 %v1952
    %v2137 = vunpack.c.h.b16 %v1952
    %v2138 = vunpack.c.l.b16 %v1953
    %v2139 = vunpack.c.h.b16 %v1953
    %v2140 = vunpack.c.l.b16 %v1954
    %v2141 = vunpack.c.h.b16 %v1954
    %v2142 = vunpack.c.l.b16 %v1955
    %v2143 = vunpack.c.h.b16 %v1955
    %v2144 = vunpack.c.l.b16 %v1956
    %v2145 = vunpack.c.h.b16 %v1956
    %v2146 = vunpack.c.l.b16 %v1957
    %v2147 = vunpack.c.h.b16 %v1957
    %v2148 = vunpack.c.l.b16 %v1958
    %v2149 = vunpack.c.h.b16 %v1958
    %v2150 = vunpack.c.l.b16 %v1959
    %v2151 = vunpack.c.h.b16 %v1959
    %v2152 = vunpack.c.l.b16 %v1960
    %v2153 = vunpack.c.h.b16 %v1960
    %v2154 = vunpack.c.l.b16 %v1961
    %v2155 = vunpack.c.h.b16 %v1961
    %v2156 = vunpack.c.l.b16 %v1962
    %v2157 = vunpack.c.h.b16 %v1962
    %v2158 = vunpack.c.l.b16 %v1963
    %v2159 = vunpack.c.h.b16 %v1963
    %v2160 = vunpack.c.l.b16 %v1964
    %v2161 = vunpack.c.h.b16 %v1964
    %v2162 = vunpack.c.l.b16 %v1965
    %v2163 = vunpack.c.h.b16 %v1965
    %v2164 = vpack.c.b16 %v2038, %v2036
    %v2165 = vpack.c.b16 %v2039, %v2037
    %v2166 = vpack.c.b16 %v2042, %v2040
    %v2167 = vpack.c.b16 %v2043, %v2041
    %v2168 = vpack.c.b16 %v2046, %v2044
    %v2169 = vpack.c.b16 %v2047, %v2045
    %v2170 = vpack.c.b16 %v2050, %v2048
    %v2171 = vpack.c.b16 %v2051, %v2049
    %v2172 = vpack.c.b16 %v2054, %v2052
    %v2173 = vpack.c.b16 %v2055, %v2053
    %v2174 = vpack.c.b16 %v2058, %v2056
    %v2175 = vpack.c.b16 %v2059, %v2057
    %v2176 = vpack.c.b16 %v2062, %v2060
    %v2177 = vpack.c.b16 %v2063, %v2061
    %v2178 = vpack.c.b16 %v2066, %v2064
    %v2179 = vpack.c.b16 %v2067, %v2065
    %v2180 = vpack.c.b16 %v2070, %v2068
    %v2181 = vpack.c.b16 %v2071, %v2069
    %v2182 = vpack.c.b16 %v2074, %v2072
    %v2183 = vpack.c.b16 %v2075, %v2073
    %v2184 = vpack.c.b16 %v2078, %v2076
    %v2185 = vpack.c.b16 %v2079, %v2077
    %v2186 = vpack.c.b16 %v2082, %v2080
    %v2187 = vpack.c.b16 %v2083, %v2081
    %v2188 = vpack.c.b16 %v2086, %v2084
    %v2189 = vpack.c.b16 %v2087, %v2085
    %v2190 = vpack.c.b16 %v2090, %v2088
    %v2191 = vpack.c.b16 %v2091, %v2089
    %v2192 = vpack.c.b16 %v2094, %v2092
    %v2193 = vpack.c.b16 %v2095, %v2093
    %v2194 = vpack.c.b16 %v2098, %v2096
    %v2195 = vpack.c.b16 %v2099, %v2097
    %v2196 = vpack.c.b16 %v2102, %v2100
    %v2197 = vpack.c.b16 %v2103, %v2101
    %v2198 = vpack.c.b16 %v2106, %v2104
    %v2199 = vpack.c.b16 %v2107, %v2105
    %v2200 = vpack.c.b16 %v2110, %v2108
    %v2201 = vpack.c.b16 %v2111, %v2109
    %v2202 = vpack.c.b16 %v2114, %v2112
    %v2203 = vpack.c.b16 %v2115, %v2113
    %v2204 = vpack.c.b16 %v2118, %v2116
    %v2205 = vpack.c.b16 %v2119, %v2117
    %v2206 = vpack.c.b16 %v2122, %v2120
    %v2207 = vpack.c.b16 %v2123, %v2121
    %v2208 = vpack.c.b16 %v2126, %v2124
    %v2209 = vpack.c.b16 %v2127, %v2125
    %v2210 = vpack.c.b16 %v2130, %v2128
    %v2211 = vpack.c.b16 %v2131, %v2129
    %v2212 = vpack.c.b16 %v2134, %v2132
    %v2213 = vpack.c.b16 %v2135, %v2133
    %v2214 = vpack.c.b16 %v2138, %v2136
    %v2215 = vpack.c.b16 %v2139, %v2137
    %v2216 = vpack.c.b16 %v2142, %v2140
    %v2217 = vpack.c.b16 %v2143, %v2141
    %v2218 = vpack.c.b16 %v2146, %v2144
    %v2219 = vpack.c.b16 %v2147, %v2145
    %v2220 = vpack.c.b16 %v2150, %v2148
    %v2221 = vpack.c.b16 %v2151, %v2149
    %v2222 = vpack.c.b16 %v2154, %v2152
    %v2223 = vpack.c.b16 %v2155, %v2153
    %v2224 = vpack.c.b16 %v2158, %v2156
    %v2225 = vpack.c.b16 %v2159, %v2157
    %v2226 = vpack.c.b16 %v2162, %v2160
    %v2227 = vpack.c.b16 %v2163, %v2161
    %2292 = vmatpush.bf16.msra.mxu0 %v2178
    %2293 = vmatpush.bf16.msra.mxu0 %v2176
    %2294 = vmatpush.bf16.msra.mxu0 %v2174
    %2295 = vmatpush.bf16.msra.mxu0 %v2172
    %2296 = vmatpush.bf16.msra.mxu0 %v2170
    %2297 = vmatpush.bf16.msra.mxu0 %v2168
    %2298 = vmatpush.bf16.msra.mxu0 %v2166
    %2299 = vmatpush.bf16.msra.mxu0 %v2164
    %2300 = vmatmul.bf16.gmra.mxu0 %v1898
    %v2301 = vpop.f32.mrf.mxu0
    %v2302 = vadd.f32 %v1968, %v2301
    %v2303 = vpop.f32.mrf.mxu0
    %v2304 = vadd.f32 %v1968, %v2303
    %2305 = vdwg.mxu0
    %2306 = vmatpush.bf16.msra.mxu0 %v2194
    %2307 = vmatpush.bf16.msra.mxu0 %v2192
    %2308 = vmatpush.bf16.msra.mxu0 %v2190
    %2309 = vmatpush.bf16.msra.mxu0 %v2188
    %2310 = vmatpush.bf16.msra.mxu0 %v2186
    %2311 = vmatpush.bf16.msra.mxu0 %v2184
    %2312 = vmatpush.bf16.msra.mxu0 %v2182
    %2313 = vmatpush.bf16.msra.mxu0 %v2180
    %2314 = vmatmul.bf16.gmra.mxu0 %v1899
    %v2315 = vpop.f32.mrf.mxu0
    %v2316 = vadd.f32 %v2302, %v2315
    %v2317 = vpop.f32.mrf.mxu0
    %v2318 = vadd.f32 %v2304, %v2317
    %2319 = vdwg.mxu0
    %2320 = vmatpush.bf16.msra.mxu0 %v2210
    %2321 = vmatpush.bf16.msra.mxu0 %v2208
    %2322 = vmatpush.bf16.msra.mxu0 %v2206
    %2323 = vmatpush.bf16.msra.mxu0 %v2204
    %2324 = vmatpush.bf16.msra.mxu0 %v2202
    %2325 = vmatpush.bf16.msra.mxu0 %v2200
    %2326 = vmatpush.bf16.msra.mxu0 %v2198
    %2327 = vmatpush.bf16.msra.mxu0 %v2196
    %2328 = vmatmul.bf16.gmra.mxu0 %v1900
    %v2329 = vpop.f32.mrf.mxu0
    %v2330 = vadd.f32 %v2316, %v2329
    %v2331 = vpop.f32.mrf.mxu0
    %v2332 = vadd.f32 %v2318, %v2331
    %2333 = vdwg.mxu0
    %2334 = vmatpush.bf16.msra.mxu0 %v2226
    %2335 = vmatpush.bf16.msra.mxu0 %v2224
    %2336 = vmatpush.bf16.msra.mxu0 %v2222
    %2337 = vmatpush.bf16.msra.mxu0 %v2220
    %2338 = vmatpush.bf16.msra.mxu0 %v2218
    %2339 = vmatpush.bf16.msra.mxu0 %v2216
    %2340 = vmatpush.bf16.msra.mxu0 %v2214
    %2341 = vmatpush.bf16.msra.mxu0 %v2212
    %2342 = vmatmul.bf16.gmra.mxu0 %v1901
    %v2343 = vpop.f32.mrf.mxu0
    %v2344 = vadd.f32 %v2330, %v2343
    %v2345 = vpop.f32.mrf.mxu0
    %v2346 = vadd.f32 %v2332, %v2345
    %2347 = vdwg.mxu0
    %2348 = vmatpush.bf16.msra.mxu0 %v2179
    %2349 = vmatpush.bf16.msra.mxu0 %v2177
    %2350 = vmatpush.bf16.msra.mxu0 %v2175
    %2351 = vmatpush.bf16.msra.mxu0 %v2173
    %2352 = vmatpush.bf16.msra.mxu0 %v2171
    %2353 = vmatpush.bf16.msra.mxu0 %v2169
    %2354 = vmatpush.bf16.msra.mxu0 %v2167
    %2355 = vmatpush.bf16.msra.mxu0 %v2165
    %2356 = vmatmul.bf16.gmra.mxu0 %v1898
    %v2357 = vpop.f32.mrf.mxu0
    %v2358 = vadd.f32 %v1969, %v2357
    %v2359 = vpop.f32.mrf.mxu0
    %v2360 = vadd.f32 %v1969, %v2359
    %2361 = vdwg.mxu0
    %2362 = vmatpush.bf16.msra.mxu0 %v2195
    %2363 = vmatpush.bf16.msra.mxu0 %v2193
    %2364 = vmatpush.bf16.msra.mxu0 %v2191
    %2365 = vmatpush.bf16.msra.mxu0 %v2189
    %2366 = vmatpush.bf16.msra.mxu0 %v2187
    %2367 = vmatpush.bf16.msra.mxu0 %v2185
    %2368 = vmatpush.bf16.msra.mxu0 %v2183
    %2369 = vmatpush.bf16.msra.mxu0 %v2181
    %2370 = vmatmul.bf16.gmra.mxu0 %v1899
    %v2371 = vpop.f32.mrf.mxu0
    %v2372 = vadd.f32 %v2358, %v2371
    %v2373 = vpop.f32.mrf.mxu0
    %v2374 = vadd.f32 %v2360, %v2373
    %2375 = vdwg.mxu0
    %2376 = vmatpush.bf16.msra.mxu0 %v2211
    %2377 = vmatpush.bf16.msra.mxu0 %v2209
    %2378 = vmatpush.bf16.msra.mxu0 %v2207
    %2379 = vmatpush.bf16.msra.mxu0 %v2205
    %2380 = vmatpush.bf16.msra.mxu0 %v2203
    %2381 = vmatpush.bf16.msra.mxu0 %v2201
    %2382 = vmatpush.bf16.msra.mxu0 %v2199
    %2383 = vmatpush.bf16.msra.mxu0 %v2197
    %2384 = vmatmul.bf16.gmra.mxu0 %v1900
    %v2385 = vpop.f32.mrf.mxu0
    %v2386 = vadd.f32 %v2372, %v2385
    %v2387 = vpop.f32.mrf.mxu0
    %v2388 = vadd.f32 %v2374, %v2387
    %2389 = vdwg.mxu0
    %2390 = vmatpush.bf16.msra.mxu0 %v2227
    %2391 = vmatpush.bf16.msra.mxu0 %v2225
    %2392 = vmatpush.bf16.msra.mxu0 %v2223
    %2393 = vmatpush.bf16.msra.mxu0 %v2221
    %2394 = vmatpush.bf16.msra.mxu0 %v2219
    %2395 = vmatpush.bf16.msra.mxu0 %v2217
    %2396 = vmatpush.bf16.msra.mxu0 %v2215
    %2397 = vmatpush.bf16.msra.mxu0 %v2213
    %2398 = vmatmul.bf16.gmra.mxu0 %v1901
    %v2399 = vpop.f32.mrf.mxu0
    %v2400 = vadd.f32 %v2386, %v2399
    %v2401 = vpop.f32.mrf.mxu0
    %v2402 = vadd.f32 %v2388, %v2401
    %2403 = vdwg.mxu0
    %v2404 = vmul.f32 %v2400, 0.5
    %v2405 = vmul.f32 %v2402, 0.5
    %v2406 = vmul.f32 %v2404, 1.442695
    %v2407 = vpow.pop %v2406
    %v2408 = vmul.f32 %v2405, 1.442695
    %v2409 = vpow.pop %v2408
    %v2410 = vld [vmem:[%s1] sm:$0xff]
    %v2411 = vld [vmem:[%s1 + $0x8] sm:$0xff]
    %v2412 = vmul.f32 %v2410, %v2407
    %v2413 = vmul.f32 %v2411, %v2409
    %v2414 = vadd.f32 %v2344, %v2412
    %v2415 = vadd.f32 %v2346, %v2413
    %v2416 = vpack.c.bf16 %v2415, %v2414
    %v2417 = vld [vmem:[#allocation6] sm:$0xff]
    %v2418 = vld [vmem:[#allocation6 + $0x8] sm:$0xff]
    %v2419 = vld [vmem:[#allocation6 + $0x10] sm:$0xff]
    %v2420 = vld [vmem:[#allocation6 + $0x18] sm:$0xff]
    %v2421 = vld [vmem:[#allocation6 + $0x20] sm:$0xff]
    %v2422 = vld [vmem:[#allocation6 + $0x28] sm:$0xff]
    %v2423 = vld [vmem:[#allocation6 + $0x30] sm:$0xff]
    %v2424 = vld [vmem:[#allocation6 + $0x38] sm:$0xff]
    %v2425 = vld [vmem:[#allocation6 + $0x40] sm:$0xff]
    %v2426 = vld [vmem:[#allocation6 + $0x48] sm:$0xff]
    %v2427 = vld [vmem:[#allocation6 + $0x50] sm:$0xff]
    %v2428 = vld [vmem:[#allocation6 + $0x58] sm:$0xff]
    %v2429 = vld [vmem:[#allocation6 + $0x60] sm:$0xff]
    %v2430 = vld [vmem:[#allocation6 + $0x68] sm:$0xff]
    %v2431 = vld [vmem:[#allocation6 + $0x70] sm:$0xff]
    %v2432 = vld [vmem:[#allocation6 + $0x78] sm:$0xff]
    %v2433 = vld [vmem:[#allocation6 + $0x80] sm:$0xff]
    %v2434 = vld [vmem:[#allocation6 + $0x88] sm:$0xff]
    %v2435 = vld [vmem:[#allocation6 + $0x90] sm:$0xff]
    %v2436 = vld [vmem:[#allocation6 + $0x98] sm:$0xff]
    %v2437 = vld [vmem:[#allocation6 + $0xa0] sm:$0xff]
    %v2438 = vld [vmem:[#allocation6 + $0xa8] sm:$0xff]
    %v2439 = vld [vmem:[#allocation6 + $0xb0] sm:$0xff]
    %v2440 = vld [vmem:[#allocation6 + $0xb8] sm:$0xff]
    %v2441 = vld [vmem:[#allocation6 + $0xc0] sm:$0xff]
    %v2442 = vld [vmem:[#allocation6 + $0xc8] sm:$0xff]
    %v2443 = vld [vmem:[#allocation6 + $0xd0] sm:$0xff]
    %v2444 = vld [vmem:[#allocation6 + $0xd8] sm:$0xff]
    %v2445 = vld [vmem:[#allocation6 + $0xe0] sm:$0xff]
    %v2446 = vld [vmem:[#allocation6 + $0xe8] sm:$0xff]
    %v2447 = vld [vmem:[#allocation6 + $0xf0] sm:$0xff]
    %v2448 = vld [vmem:[#allocation6 + $0xf8] sm:$0xff]
    %v2449 = vld [vmem:[%s7] sm:$0xf]
    %v2451 = vperm.slane %v2449, 0
    %v2452 = vperm.slane %v2449, 1
    %v2453 = vperm.slane %v2449, 2
    %v2454 = vperm.slane %v2449, 3
    %v2491 = vunpack.c.l.b16 %v2417
    %v2492 = vunpack.c.h.b16 %v2417
    %v2493 = vunpack.c.l.b16 %v2418
    %v2494 = vunpack.c.h.b16 %v2418
    %v2495 = vunpack.c.l.b16 %v2419
    %v2496 = vunpack.c.h.b16 %v2419
    %v2497 = vunpack.c.l.b16 %v2420
    %v2498 = vunpack.c.h.b16 %v2420
    %v2499 = vunpack.c.l.b16 %v2421
    %v2500 = vunpack.c.h.b16 %v2421
    %v2501 = vunpack.c.l.b16 %v2422
    %v2502 = vunpack.c.h.b16 %v2422
    %v2503 = vunpack.c.l.b16 %v2423
    %v2504 = vunpack.c.h.b16 %v2423
    %v2505 = vunpack.c.l.b16 %v2424
    %v2506 = vunpack.c.h.b16 %v2424
    %v2507 = vunpack.c.l.b16 %v2425
    %v2508 = vunpack.c.h.b16 %v2425
    %v2509 = vunpack.c.l.b16 %v2426
    %v2510 = vunpack.c.h.b16 %v2426
    %v2511 = vunpack.c.l.b16 %v2427
    %v2512 = vunpack.c.h.b16 %v2427
    %v2513 = vunpack.c.l.b16 %v2428
    %v2514 = vunpack.c.h.b16 %v2428
    %v2515 = vunpack.c.l.b16 %v2429
    %v2516 = vunpack.c.h.b16 %v2429
    %v2517 = vunpack.c.l.b16 %v2430
    %v2518 = vunpack.c.h.b16 %v2430
    %v2519 = vunpack.c.l.b16 %v2431
    %v2520 = vunpack.c.h.b16 %v2431
    %v2521 = vunpack.c.l.b16 %v2432
    %v2522 = vunpack.c.h.b16 %v2432
    %v2523 = vunpack.c.l.b16 %v2433
    %v2524 = vunpack.c.h.b16 %v2433
    %v2525 = vunpack.c.l.b16 %v2434
    %v2526 = vunpack.c.h.b16 %v2434
    %v2527 = vunpack.c.l.b16 %v2435
    %v2528 = vunpack.c.h.b16 %v2435
    %v2529 = vunpack.c.l.b16 %v2436
    %v2530 = vunpack.c.h.b16 %v2436
    %v2531 = vunpack.c.l.b16 %v2437
    %v2532 = vunpack.c.h.b16 %v2437
    %v2533 = vunpack.c.l.b16 %v2438
    %v2534 = vunpack.c.h.b16 %v2438
    %v2535 = vunpack.c.l.b16 %v2439
    %v2536 = vunpack.c.h.b16 %v2439
    %v2537 = vunpack.c.l.b16 %v2440
    %v2538 = vunpack.c.h.b16 %v2440
    %v2539 = vunpack.c.l.b16 %v2441
    %v2540 = vunpack.c.h.b16 %v2441
    %v2541 = vunpack.c.l.b16 %v2442
    %v2542 = vunpack.c.h.b16 %v2442
    %v2543 = vunpack.c.l.b16 %v2443
    %v2544 = vunpack.c.h.b16 %v2443
    %v2545 = vunpack.c.l.b16 %v2444
    %v2546 = vunpack.c.h.b16 %v2444
    %v2547 = vunpack.c.l.b16 %v2445
    %v2548 = vunpack.c.h.b16 %v2445
    %v2549 = vunpack.c.l.b16 %v2446
    %v2550 = vunpack.c.h.b16 %v2446
    %v2551 = vunpack.c.l.b16 %v2447
    %v2552 = vunpack.c.h.b16 %v2447
    %v2553 = vunpack.c.l.b16 %v2448
    %v2554 = vunpack.c.h.b16 %v2448
    %v2555 = vpack.c.b16 %v2495, %v2491
    %v2556 = vpack.c.b16 %v2496, %v2492
    %v2557 = vpack.c.b16 %v2497, %v2493
    %v2558 = vpack.c.b16 %v2498, %v2494
    %v2559 = vpack.c.b16 %v2503, %v2499
    %v2560 = vpack.c.b16 %v2504, %v2500
    %v2561 = vpack.c.b16 %v2505, %v2501
    %v2562 = vpack.c.b16 %v2506, %v2502
    %v2563 = vpack.c.b16 %v2511, %v2507
    %v2564 = vpack.c.b16 %v2512, %v2508
    %v2565 = vpack.c.b16 %v2513, %v2509
    %v2566 = vpack.c.b16 %v2514, %v2510
    %v2567 = vpack.c.b16 %v2519, %v2515
    %v2568 = vpack.c.b16 %v2520, %v2516
    %v2569 = vpack.c.b16 %v2521, %v2517
    %v2570 = vpack.c.b16 %v2522, %v2518
    %v2571 = vpack.c.b16 %v2527, %v2523
    %v2572 = vpack.c.b16 %v2528, %v2524
    %v2573 = vpack.c.b16 %v2529, %v2525
    %v2574 = vpack.c.b16 %v2530, %v2526
    %v2575 = vpack.c.b16 %v2535, %v2531
    %v2576 = vpack.c.b16 %v2536, %v2532
    %v2577 = vpack.c.b16 %v2537, %v2533
    %v2578 = vpack.c.b16 %v2538, %v2534
    %v2579 = vpack.c.b16 %v2543, %v2539
    %v2580 = vpack.c.b16 %v2544, %v2540
    %v2581 = vpack.c.b16 %v2545, %v2541
    %v2582 = vpack.c.b16 %v2546, %v2542
    %v2583 = vpack.c.b16 %v2551, %v2547
    %v2584 = vpack.c.b16 %v2552, %v2548
    %v2585 = vpack.c.b16 %v2553, %v2549
    %v2586 = vpack.c.b16 %v2554, %v2550
    %2619 = vmatpush.bf16.msra.mxu0 %v2583
    %2620 = vmatpush.bf16.msra.mxu0 %v2579
    %2621 = vmatpush.bf16.msra.mxu0 %v2575
    %2622 = vmatpush.bf16.msra.mxu0 %v2571
    %2623 = vmatpush.bf16.msra.mxu0 %v2567
    %2624 = vmatpush.bf16.msra.mxu0 %v2563
    %2625 = vmatpush.bf16.msra.mxu0 %v2559
    %2626 = vmatpush.bf16.msra.mxu0 %v2555
    %2627 = vmatmul.bf16.gmra.mxu0 %v2416
    %v2628 = vpop.f32.mrf.mxu0
    %v2629 = vadd.f32 %v2451, %v2628
    %v2630 = vpop.f32.mrf.mxu0
    %v2631 = vadd.f32 %v2451, %v2630
    %2632 = vdwg.mxu0
    %2633 = vmatpush.bf16.msra.mxu0 %v2584
    %2634 = vmatpush.bf16.msra.mxu0 %v2580
    %2635 = vmatpush.bf16.msra.mxu0 %v2576
    %2636 = vmatpush.bf16.msra.mxu0 %v2572
    %2637 = vmatpush.bf16.msra.mxu0 %v2568
    %2638 = vmatpush.bf16.msra.mxu0 %v2564
    %2639 = vmatpush.bf16.msra.mxu0 %v2560
    %2640 = vmatpush.bf16.msra.mxu0 %v2556
    %2641 = vmatmul.bf16.gmra.mxu0 %v2416
    %v2642 = vpop.f32.mrf.mxu0
    %v2643 = vadd.f32 %v2452, %v2642
    %v2644 = vpop.f32.mrf.mxu0
    %v2645 = vadd.f32 %v2452, %v2644
    %2646 = vdwg.mxu0
    %2647 = vmatpush.bf16.msra.mxu0 %v2585
    %2648 = vmatpush.bf16.msra.mxu0 %v2581
    %2649 = vmatpush.bf16.msra.mxu0 %v2577
    %2650 = vmatpush.bf16.msra.mxu0 %v2573
    %2651 = vmatpush.bf16.msra.mxu0 %v2569
    %2652 = vmatpush.bf16.msra.mxu0 %v2565
    %2653 = vmatpush.bf16.msra.mxu0 %v2561
    %2654 = vmatpush.bf16.msra.mxu0 %v2557
    %2655 = vmatmul.bf16.gmra.mxu0 %v2416
    %v2656 = vpop.f32.mrf.mxu0
    %v2657 = vadd.f32 %v2453, %v2656
    %v2658 = vpop.f32.mrf.mxu0
    %v2659 = vadd.f32 %v2453, %v2658
    %2660 = vdwg.mxu0
    %2661 = vmatpush.bf16.msra.mxu0 %v2586
    %2662 = vmatpush.bf16.msra.mxu0 %v2582
    %2663 = vmatpush.bf16.msra.mxu0 %v2578
    %2664 = vmatpush.bf16.msra.mxu0 %v2574
    %2665 = vmatpush.bf16.msra.mxu0 %v2570
    %2666 = vmatpush.bf16.msra.mxu0 %v2566
    %2667 = vmatpush.bf16.msra.mxu0 %v2562
    %2668 = vmatpush.bf16.msra.mxu0 %v2558
    %2669 = vmatmul.bf16.gmra.mxu0 %v2416
    %v2670 = vpop.f32.mrf.mxu0
    %v2671 = vadd.f32 %v2454, %v2670
    %v2672 = vpop.f32.mrf.mxu0
    %v2673 = vadd.f32 %v2454, %v2672
    %2674 = vdwg.mxu0
    %v2675 = vmax.f32 %v2629, 0.0
    %v2676 = vmax.f32 %v2643, 0.0
    %v2677 = vmax.f32 %v2657, 0.0
    %v2678 = vmax.f32 %v2671, 0.0
    %v2679 = vmax.f32 %v2631, 0.0
    %v2680 = vmax.f32 %v2645, 0.0
    %v2681 = vmax.f32 %v2659, 0.0
    %v2682 = vmax.f32 %v2673, 0.0
    %v2683 = vpack.c.bf16 %v2679, %v2675
    %v2684 = vpack.c.bf16 %v2680, %v2676
    %v2685 = vpack.c.bf16 %v2681, %v2677
    %v2686 = vpack.c.bf16 %v2682, %v2678
    %v2687 = vld [vmem:[#allocation7] sm:$0xff]
    %v2688 = vld [vmem:[#allocation7 + $0x8] sm:$0xff]
    %v2689 = vld [vmem:[#allocation7 + $0x10] sm:$0xff]
    %v2690 = vld [vmem:[#allocation7 + $0x18] sm:$0xf]
    %v2691 = vld [vmem:[#allocation7 + $0x1c] sm:$0xff]
    %v2692 = vld [vmem:[#allocation7 + $0x24] sm:$0xff]
    %v2693 = vld [vmem:[#allocation7 + $0x2c] sm:$0xff]
    %v2694 = vld [vmem:[#allocation7 + $0x34] sm:$0xf]
    %v2695 = vld [vmem:[#allocation7 + $0x38] sm:$0xff]
    %v2696 = vld [vmem:[#allocation7 + $0x40] sm:$0xff]
    %v2697 = vld [vmem:[#allocation7 + $0x48] sm:$0xff]
    %v2698 = vld [vmem:[#allocation7 + $0x50] sm:$0xf]
    %v2699 = vld [vmem:[#allocation7 + $0x54] sm:$0xff]
    %v2700 = vld [vmem:[#allocation7 + $0x5c] sm:$0xff]
    %v2701 = vld [vmem:[#allocation7 + $0x64] sm:$0xff]
    %v2702 = vld [vmem:[#allocation7 + $0x6c] sm:$0xf]
    %v2703 = vld [vmem:[#allocation7 + $0x70] sm:$0xff]
    %v2704 = vld [vmem:[#allocation7 + $0x78] sm:$0xff]
    %v2705 = vld [vmem:[#allocation7 + $0x80] sm:$0xff]
    %v2706 = vld [vmem:[#allocation7 + $0x88] sm:$0xf]
    %v2707 = vld [vmem:[#allocation7 + $0x8c] sm:$0xff]
    %v2708 = vld [vmem:[#allocation7 + $0x94] sm:$0xff]
    %v2709 = vld [vmem:[#allocation7 + $0x9c] sm:$0xff]
    %v2710 = vld [vmem:[#allocation7 + $0xa4] sm:$0xf]
    %v2711 = vld [vmem:[#allocation7 + $0xa8] sm:$0xff]
    %v2712 = vld [vmem:[#allocation7 + $0xb0] sm:$0xff]
    %v2713 = vld [vmem:[#allocation7 + $0xb8] sm:$0xff]
    %v2714 = vld [vmem:[#allocation7 + $0xc0] sm:$0xf]
    %v2715 = vld [vmem:[#allocation7 + $0xc4] sm:$0xff]
    %v2716 = vld [vmem:[#allocation7 + $0xcc] sm:$0xff]
    %v2717 = vld [vmem:[#allocation7 + $0xd4] sm:$0xff]
    %v2718 = vld [vmem:[#allocation7 + $0xdc] sm:$0xf]
    %v2719 = vld [vmem:[#allocation7 + $0xe0] sm:$0xff]
    %v2720 = vld [vmem:[#allocation7 + $0xe8] sm:$0xff]
    %v2721 = vld [vmem:[#allocation7 + $0xf0] sm:$0xff]
    %v2722 = vld [vmem:[#allocation7 + $0xf8] sm:$0xf]
    %v2723 = vld [vmem:[#allocation7 + $0xfc] sm:$0xff]
    %v2724 = vld [vmem:[#allocation7 + $0x104] sm:$0xff]
    %v2725 = vld [vmem:[#allocation7 + $0x10c] sm:$0xff]
    %v2726 = vld [vmem:[#allocation7 + $0x114] sm:$0xf]
    %v2727 = vld [vmem:[#allocation7 + $0x118] sm:$0xff]
    %v2728 = vld [vmem:[#allocation7 + $0x120] sm:$0xff]
    %v2729 = vld [vmem:[#allocation7 + $0x128] sm:$0xff]
    %v2730 = vld [vmem:[#allocation7 + $0x130] sm:$0xf]
    %v2731 = vld [vmem:[#allocation7 + $0x134] sm:$0xff]
    %v2732 = vld [vmem:[#allocation7 + $0x13c] sm:$0xff]
    %v2733 = vld [vmem:[#allocation7 + $0x144] sm:$0xff]
    %v2734 = vld [vmem:[#allocation7 + $0x14c] sm:$0xf]
    %v2735 = vld [vmem:[#allocation7 + $0x150] sm:$0xff]
    %v2736 = vld [vmem:[#allocation7 + $0x158] sm:$0xff]
    %v2737 = vld [vmem:[#allocation7 + $0x160] sm:$0xff]
    %v2738 = vld [vmem:[#allocation7 + $0x168] sm:$0xf]
    %v2739 = vld [vmem:[#allocation7 + $0x16c] sm:$0xff]
    %v2740 = vld [vmem:[#allocation7 + $0x174] sm:$0xff]
    %v2741 = vld [vmem:[#allocation7 + $0x17c] sm:$0xff]
    %v2742 = vld [vmem:[#allocation7 + $0x184] sm:$0xf]
    %v2743 = vld [vmem:[#allocation7 + $0x188] sm:$0xff]
    %v2744 = vld [vmem:[#allocation7 + $0x190] sm:$0xff]
    %v2745 = vld [vmem:[#allocation7 + $0x198] sm:$0xff]
    %v2746 = vld [vmem:[#allocation7 + $0x1a0] sm:$0xf]
    %v2747 = vld [vmem:[#allocation7 + $0x1a4] sm:$0xff]
    %v2748 = vld [vmem:[#allocation7 + $0x1ac] sm:$0xff]
    %v2749 = vld [vmem:[#allocation7 + $0x1b4] sm:$0xff]
    %v2750 = vld [vmem:[#allocation7 + $0x1bc] sm:$0xf]
    %v2751 = vld [vmem:[#allocation7 + $0x1c0] sm:$0xff]
    %v2752 = vld [vmem:[#allocation7 + $0x1c8] sm:$0xff]
    %v2753 = vld [vmem:[#allocation7 + $0x1d0] sm:$0xff]
    %v2754 = vld [vmem:[#allocation7 + $0x1d8] sm:$0xf]
    %v2755 = vld [vmem:[#allocation7 + $0x1dc] sm:$0xff]
    %v2756 = vld [vmem:[#allocation7 + $0x1e4] sm:$0xff]
    %v2757 = vld [vmem:[#allocation7 + $0x1ec] sm:$0xff]
    %v2758 = vld [vmem:[#allocation7 + $0x1f4] sm:$0xf]
    %v2759 = vld [vmem:[#allocation7 + $0x1f8] sm:$0xff]
    %v2760 = vld [vmem:[#allocation7 + $0x200] sm:$0xff]
    %v2761 = vld [vmem:[#allocation7 + $0x208] sm:$0xff]
    %v2762 = vld [vmem:[#allocation7 + $0x210] sm:$0xf]
    %v2763 = vld [vmem:[#allocation7 + $0x214] sm:$0xff]
    %v2764 = vld [vmem:[#allocation7 + $0x21c] sm:$0xff]
    %v2765 = vld [vmem:[#allocation7 + $0x224] sm:$0xff]
    %v2766 = vld [vmem:[#allocation7 + $0x22c] sm:$0xf]
    %v2767 = vld [vmem:[#allocation7 + $0x230] sm:$0xff]
    %v2768 = vld [vmem:[#allocation7 + $0x238] sm:$0xff]
    %v2769 = vld [vmem:[#allocation7 + $0x240] sm:$0xff]
    %v2770 = vld [vmem:[#allocation7 + $0x248] sm:$0xf]
    %v2771 = vld [vmem:[#allocation7 + $0x24c] sm:$0xff]
    %v2772 = vld [vmem:[#allocation7 + $0x254] sm:$0xff]
    %v2773 = vld [vmem:[#allocation7 + $0x25c] sm:$0xff]
    %v2774 = vld [vmem:[#allocation7 + $0x264] sm:$0xf]
    %v2775 = vld [vmem:[#allocation7 + $0x268] sm:$0xff]
    %v2776 = vld [vmem:[#allocation7 + $0x270] sm:$0xff]
    %v2777 = vld [vmem:[#allocation7 + $0x278] sm:$0xff]
    %v2778 = vld [vmem:[#allocation7 + $0x280] sm:$0xf]
    %v2779 = vld [vmem:[#allocation7 + $0x284] sm:$0xff]
    %v2780 = vld [vmem:[#allocation7 + $0x28c] sm:$0xff]
    %v2781 = vld [vmem:[#allocation7 + $0x294] sm:$0xff]
    %v2782 = vld [vmem:[#allocation7 + $0x29c] sm:$0xf]
    %v2783 = vld [vmem:[#allocation7 + $0x2a0] sm:$0xff]
    %v2784 = vld [vmem:[#allocation7 + $0x2a8] sm:$0xff]
    %v2785 = vld [vmem:[#allocation7 + $0x2b0] sm:$0xff]
    %v2786 = vld [vmem:[#allocation7 + $0x2b8] sm:$0xf]
    %v2787 = vld [vmem:[#allocation7 + $0x2bc] sm:$0xff]
    %v2788 = vld [vmem:[#allocation7 + $0x2c4] sm:$0xff]
    %v2789 = vld [vmem:[#allocation7 + $0x2cc] sm:$0xff]
    %v2790 = vld [vmem:[#allocation7 + $0x2d4] sm:$0xf]
    %v2791 = vld [vmem:[#allocation7 + $0x2d8] sm:$0xff]
    %v2792 = vld [vmem:[#allocation7 + $0x2e0] sm:$0xff]
    %v2793 = vld [vmem:[#allocation7 + $0x2e8] sm:$0xff]
    %v2794 = vld [vmem:[#allocation7 + $0x2f0] sm:$0xf]
    %v2795 = vld [vmem:[#allocation7 + $0x2f4] sm:$0xff]
    %v2796 = vld [vmem:[#allocation7 + $0x2fc] sm:$0xff]
    %v2797 = vld [vmem:[#allocation7 + $0x304] sm:$0xff]
    %v2798 = vld [vmem:[#allocation7 + $0x30c] sm:$0xf]
    %v2799 = vld [vmem:[#allocation7 + $0x310] sm:$0xff]
    %v2800 = vld [vmem:[#allocation7 + $0x318] sm:$0xff]
    %v2801 = vld [vmem:[#allocation7 + $0x320] sm:$0xff]
    %v2802 = vld [vmem:[#allocation7 + $0x328] sm:$0xf]
    %v2803 = vld [vmem:[#allocation7 + $0x32c] sm:$0xff]
    %v2804 = vld [vmem:[#allocation7 + $0x334] sm:$0xff]
    %v2805 = vld [vmem:[#allocation7 + $0x33c] sm:$0xff]
    %v2806 = vld [vmem:[#allocation7 + $0x344] sm:$0xf]
    %v2807 = vld [vmem:[#allocation7 + $0x348] sm:$0xff]
    %v2808 = vld [vmem:[#allocation7 + $0x350] sm:$0xff]
    %v2809 = vld [vmem:[#allocation7 + $0x358] sm:$0xff]
    %v2810 = vld [vmem:[#allocation7 + $0x360] sm:$0xf]
    %v2811 = vld [vmem:[#allocation7 + $0x364] sm:$0xff]
    %v2812 = vld [vmem:[#allocation7 + $0x36c] sm:$0xff]
    %v2813 = vld [vmem:[#allocation7 + $0x374] sm:$0xff]
    %v2814 = vld [vmem:[#allocation7 + $0x37c] sm:$0xf]
    %v2815 = vld [vmem:[#allocation7 + $0x380] sm:$0xff]
    %v2816 = vld [vmem:[#allocation7 + $0x388] sm:$0xff]
    %v2817 = vld [vmem:[#allocation7 + $0x390] sm:$0xff]
    %v2818 = vld [vmem:[#allocation7 + $0x398] sm:$0xf]
    %v2819 = vld [vmem:[#allocation7 + $0x39c] sm:$0xff]
    %v2820 = vld [vmem:[#allocation7 + $0x3a4] sm:$0xff]
    %v2821 = vld [vmem:[#allocation7 + $0x3ac] sm:$0xff]
    %v2822 = vld [vmem:[#allocation7 + $0x3b4] sm:$0xf]
    %v2823 = vld [vmem:[#allocation7 + $0x3b8] sm:$0xff]
    %v2824 = vld [vmem:[#allocation7 + $0x3c0] sm:$0xff]
    %v2825 = vld [vmem:[#allocation7 + $0x3c8] sm:$0xff]
    %v2826 = vld [vmem:[#allocation7 + $0x3d0] sm:$0xf]
    %v2827 = vld [vmem:[#allocation7 + $0x3d4] sm:$0xff]
    %v2828 = vld [vmem:[#allocation7 + $0x3dc] sm:$0xff]
    %v2829 = vld [vmem:[#allocation7 + $0x3e4] sm:$0xff]
    %v2830 = vld [vmem:[#allocation7 + $0x3ec] sm:$0xf]
    %v2831 = vld [vmem:[#allocation7 + $0x3f0] sm:$0xff]
    %v2832 = vld [vmem:[#allocation7 + $0x3f8] sm:$0xff]
    %v2833 = vld [vmem:[#allocation7 + $0x400] sm:$0xff]
    %v2834 = vld [vmem:[#allocation7 + $0x408] sm:$0xf]
    %v2835 = vld [vmem:[#allocation7 + $0x40c] sm:$0xff]
    %v2836 = vld [vmem:[#allocation7 + $0x414] sm:$0xff]
    %v2837 = vld [vmem:[#allocation7 + $0x41c] sm:$0xff]
    %v2838 = vld [vmem:[#allocation7 + $0x424] sm:$0xf]
    %v2839 = vld [vmem:[#allocation7 + $0x428] sm:$0xff]
    %v2840 = vld [vmem:[#allocation7 + $0x430] sm:$0xff]
    %v2841 = vld [vmem:[#allocation7 + $0x438] sm:$0xff]
    %v2842 = vld [vmem:[#allocation7 + $0x440] sm:$0xf]
    %v2843 = vld [vmem:[#allocation7 + $0x444] sm:$0xff]
    %v2844 = vld [vmem:[#allocation7 + $0x44c] sm:$0xff]
    %v2845 = vld [vmem:[#allocation7 + $0x454] sm:$0xff]
    %v2846 = vld [vmem:[#allocation7 + $0x45c] sm:$0xf]
    %v2847 = vld [vmem:[#allocation7 + $0x460] sm:$0xff]
    %v2848 = vld [vmem:[#allocation7 + $0x468] sm:$0xff]
    %v2849 = vld [vmem:[#allocation7 + $0x470] sm:$0xff]
    %v2850 = vld [vmem:[#allocation7 + $0x478] sm:$0xf]
    %v2851 = vld [vmem:[#allocation7 + $0x47c] sm:$0xff]
    %v2852 = vld [vmem:[#allocation7 + $0x484] sm:$0xff]
    %v2853 = vld [vmem:[#allocation7 + $0x48c] sm:$0xff]
    %v2854 = vld [vmem:[#allocation7 + $0x494] sm:$0xf]
    %v2855 = vld [vmem:[#allocation7 + $0x498] sm:$0xff]
    %v2856 = vld [vmem:[#allocation7 + $0x4a0] sm:$0xff]
    %v2857 = vld [vmem:[#allocation7 + $0x4a8] sm:$0xff]
    %v2858 = vld [vmem:[#allocation7 + $0x4b0] sm:$0xf]
    %v2859 = vld [vmem:[#allocation7 + $0x4b4] sm:$0xff]
    %v2860 = vld [vmem:[#allocation7 + $0x4bc] sm:$0xff]
    %v2861 = vld [vmem:[#allocation7 + $0x4c4] sm:$0xff]
    %v2862 = vld [vmem:[#allocation7 + $0x4cc] sm:$0xf]
    %v2863 = vld [vmem:[#allocation7 + $0x4d0] sm:$0xff]
    %v2864 = vld [vmem:[#allocation7 + $0x4d8] sm:$0xff]
    %v2865 = vld [vmem:[#allocation7 + $0x4e0] sm:$0xff]
    %v2866 = vld [vmem:[#allocation7 + $0x4e8] sm:$0xf]
    %v2867 = vld [vmem:[#allocation7 + $0x4ec] sm:$0xff]
    %v2868 = vld [vmem:[#allocation7 + $0x4f4] sm:$0xff]
    %v2869 = vld [vmem:[#allocation7 + $0x4fc] sm:$0xff]
    %v2870 = vld [vmem:[#allocation7 + $0x504] sm:$0xf]
    %v2871 = vld [vmem:[#allocation7 + $0x508] sm:$0xff]
    %v2872 = vld [vmem:[#allocation7 + $0x510] sm:$0xff]
    %v2873 = vld [vmem:[#allocation7 + $0x518] sm:$0xff]
    %v2874 = vld [vmem:[#allocation7 + $0x520] sm:$0xf]
    %v2875 = vld [vmem:[#allocation7 + $0x524] sm:$0xff]
    %v2876 = vld [vmem:[#allocation7 + $0x52c] sm:$0xff]
    %v2877 = vld [vmem:[#allocation7 + $0x534] sm:$0xff]
    %v2878 = vld [vmem:[#allocation7 + $0x53c] sm:$0xf]
    %v2879 = vld [vmem:[#allocation7 + $0x540] sm:$0xff]
    %v2880 = vld [vmem:[#allocation7 + $0x548] sm:$0xff]
    %v2881 = vld [vmem:[#allocation7 + $0x550] sm:$0xff]
    %v2882 = vld [vmem:[#allocation7 + $0x558] sm:$0xf]
    %v2883 = vld [vmem:[#allocation7 + $0x55c] sm:$0xff]
    %v2884 = vld [vmem:[#allocation7 + $0x564] sm:$0xff]
    %v2885 = vld [vmem:[#allocation7 + $0x56c] sm:$0xff]
    %v2886 = vld [vmem:[#allocation7 + $0x574] sm:$0xf]
    %v2887 = vld [vmem:[#allocation7 + $0x578] sm:$0xff]
    %v2888 = vld [vmem:[#allocation7 + $0x580] sm:$0xff]
    %v2889 = vld [vmem:[#allocation7 + $0x588] sm:$0xff]
    %v2890 = vld [vmem:[#allocation7 + $0x590] sm:$0xf]
    %v2891 = vld [vmem:[#allocation7 + $0x594] sm:$0xff]
    %v2892 = vld [vmem:[#allocation7 + $0x59c] sm:$0xff]
    %v2893 = vld [vmem:[#allocation7 + $0x5a4] sm:$0xff]
    %v2894 = vld [vmem:[#allocation7 + $0x5ac] sm:$0xf]
    %v2895 = vld [vmem:[#allocation7 + $0x5b0] sm:$0xff]
    %v2896 = vld [vmem:[#allocation7 + $0x5b8] sm:$0xff]
    %v2897 = vld [vmem:[#allocation7 + $0x5c0] sm:$0xff]
    %v2898 = vld [vmem:[#allocation7 + $0x5c8] sm:$0xf]
    %v2899 = vld [vmem:[#allocation7 + $0x5cc] sm:$0xff]
    %v2900 = vld [vmem:[#allocation7 + $0x5d4] sm:$0xff]
    %v2901 = vld [vmem:[#allocation7 + $0x5dc] sm:$0xff]
    %v2902 = vld [vmem:[#allocation7 + $0x5e4] sm:$0xf]
    %v2903 = vld [vmem:[#allocation7 + $0x5e8] sm:$0xff]
    %v2904 = vld [vmem:[#allocation7 + $0x5f0] sm:$0xff]
    %v2905 = vld [vmem:[#allocation7 + $0x5f8] sm:$0xff]
    %v2906 = vld [vmem:[#allocation7 + $0x600] sm:$0xf]
    %v2907 = vld [vmem:[#allocation7 + $0x604] sm:$0xff]
    %v2908 = vld [vmem:[#allocation7 + $0x60c] sm:$0xff]
    %v2909 = vld [vmem:[#allocation7 + $0x614] sm:$0xff]
    %v2910 = vld [vmem:[#allocation7 + $0x61c] sm:$0xf]
    %v2911 = vld [vmem:[#allocation7 + $0x620] sm:$0xff]
    %v2912 = vld [vmem:[#allocation7 + $0x628] sm:$0xff]
    %v2913 = vld [vmem:[#allocation7 + $0x630] sm:$0xff]
    %v2914 = vld [vmem:[#allocation7 + $0x638] sm:$0xf]
    %v2915 = vld [vmem:[#allocation7 + $0x63c] sm:$0xff]
    %v2916 = vld [vmem:[#allocation7 + $0x644] sm:$0xff]
    %v2917 = vld [vmem:[#allocation7 + $0x64c] sm:$0xff]
    %v2918 = vld [vmem:[#allocation7 + $0x654] sm:$0xf]
    %v2919 = vld [vmem:[#allocation7 + $0x658] sm:$0xff]
    %v2920 = vld [vmem:[#allocation7 + $0x660] sm:$0xff]
    %v2921 = vld [vmem:[#allocation7 + $0x668] sm:$0xff]
    %v2922 = vld [vmem:[#allocation7 + $0x670] sm:$0xf]
    %v2923 = vld [vmem:[#allocation7 + $0x674] sm:$0xff]
    %v2924 = vld [vmem:[#allocation7 + $0x67c] sm:$0xff]
    %v2925 = vld [vmem:[#allocation7 + $0x684] sm:$0xff]
    %v2926 = vld [vmem:[#allocation7 + $0x68c] sm:$0xf]
    %v2927 = vld [vmem:[#allocation7 + $0x690] sm:$0xff]
    %v2928 = vld [vmem:[#allocation7 + $0x698] sm:$0xff]
    %v2929 = vld [vmem:[#allocation7 + $0x6a0] sm:$0xff]
    %v2930 = vld [vmem:[#allocation7 + $0x6a8] sm:$0xf]
    %v2931 = vld [vmem:[#allocation7 + $0x6ac] sm:$0xff]
    %v2932 = vld [vmem:[#allocation7 + $0x6b4] sm:$0xff]
    %v2933 = vld [vmem:[#allocation7 + $0x6bc] sm:$0xff]
    %v2934 = vld [vmem:[#allocation7 + $0x6c4] sm:$0xf]
    %v2935 = vld [vmem:[#allocation7 + $0x6c8] sm:$0xff]
    %v2936 = vld [vmem:[#allocation7 + $0x6d0] sm:$0xff]
    %v2937 = vld [vmem:[#allocation7 + $0x6d8] sm:$0xff]
    %v2938 = vld [vmem:[#allocation7 + $0x6e0] sm:$0xf]
    %v2939 = vld [vmem:[#allocation7 + $0x6e4] sm:$0xff]
    %v2940 = vld [vmem:[#allocation7 + $0x6ec] sm:$0xff]
    %v2941 = vld [vmem:[#allocation7 + $0x6f4] sm:$0xff]
    %v2942 = vld [vmem:[#allocation7 + $0x6fc] sm:$0xf]
    %v2943 = vld [vmem:[%s9] sm:$0xff]
    %v2945 = vperm.slane %v2943, 0
    %v2946 = vperm.slane %v2943, 1
    %v2947 = vperm.slane %v2943, 2
    %v2948 = vperm.slane %v2943, 3
    %v2949 = vperm.slane %v2943, 4
    %v2950 = vperm.slane %v2943, 5
    %v2951 = vperm.slane %v2943, 6
    %v3215 = vunpack.c.l.b16 %v2687
    %v3216 = vunpack.c.h.b16 %v2687
    %v3217 = vunpack.c.l.b16 %v2688
    %v3218 = vunpack.c.h.b16 %v2688
    %v3219 = vunpack.c.l.b16 %v2689
    %v3220 = vunpack.c.h.b16 %v2689
    %v3221 = vunpack.c.l.b16 %v2690
    %v3222 = vunpack.c.l.b16 %v2691
    %v3223 = vunpack.c.h.b16 %v2691
    %v3224 = vunpack.c.l.b16 %v2692
    %v3225 = vunpack.c.h.b16 %v2692
    %v3226 = vunpack.c.l.b16 %v2693
    %v3227 = vunpack.c.h.b16 %v2693
    %v3228 = vunpack.c.l.b16 %v2694
    %v3229 = vunpack.c.l.b16 %v2695
    %v3230 = vunpack.c.h.b16 %v2695
    %v3231 = vunpack.c.l.b16 %v2696
    %v3232 = vunpack.c.h.b16 %v2696
    %v3233 = vunpack.c.l.b16 %v2697
    %v3234 = vunpack.c.h.b16 %v2697
    %v3235 = vunpack.c.l.b16 %v2698
    %v3236 = vunpack.c.l.b16 %v2699
    %v3237 = vunpack.c.h.b16 %v2699
    %v3238 = vunpack.c.l.b16 %v2700
    %v3239 = vunpack.c.h.b16 %v2700
    %v3240 = vunpack.c.l.b16 %v2701
    %v3241 = vunpack.c.h.b16 %v2701
    %v3242 = vunpack.c.l.b16 %v2702
    %v3243 = vunpack.c.l.b16 %v2703
    %v3244 = vunpack.c.h.b16 %v2703
    %v3245 = vunpack.c.l.b16 %v2704
    %v3246 = vunpack.c.h.b16 %v2704
    %v3247 = vunpack.c.l.b16 %v2705
    %v3248 = vunpack.c.h.b16 %v2705
    %v3249 = vunpack.c.l.b16 %v2706
    %v3250 = vunpack.c.l.b16 %v2707
    %v3251 = vunpack.c.h.b16 %v2707
    %v3252 = vunpack.c.l.b16 %v2708
    %v3253 = vunpack.c.h.b16 %v2708
    %v3254 = vunpack.c.l.b16 %v2709
    %v3255 = vunpack.c.h.b16 %v2709
    %v3256 = vunpack.c.l.b16 %v2710
    %v3257 = vunpack.c.l.b16 %v2711
    %v3258 = vunpack.c.h.b16 %v2711
    %v3259 = vunpack.c.l.b16 %v2712
    %v3260 = vunpack.c.h.b16 %v2712
    %v3261 = vunpack.c.l.b16 %v2713
    %v3262 = vunpack.c.h.b16 %v2713
    %v3263 = vunpack.c.l.b16 %v2714
    %v3264 = vunpack.c.l.b16 %v2715
    %v3265 = vunpack.c.h.b16 %v2715
    %v3266 = vunpack.c.l.b16 %v2716
    %v3267 = vunpack.c.h.b16 %v2716
    %v3268 = vunpack.c.l.b16 %v2717
    %v3269 = vunpack.c.h.b16 %v2717
    %v3270 = vunpack.c.l.b16 %v2718
    %v3271 = vunpack.c.l.b16 %v2719
    %v3272 = vunpack.c.h.b16 %v2719
    %v3273 = vunpack.c.l.b16 %v2720
    %v3274 = vunpack.c.h.b16 %v2720
    %v3275 = vunpack.c.l.b16 %v2721
    %v3276 = vunpack.c.h.b16 %v2721
    %v3277 = vunpack.c.l.b16 %v2722
    %v3278 = vunpack.c.l.b16 %v2723
    %v3279 = vunpack.c.h.b16 %v2723
    %v3280 = vunpack.c.l.b16 %v2724
    %v3281 = vunpack.c.h.b16 %v2724
    %v3282 = vunpack.c.l.b16 %v2725
    %v3283 = vunpack.c.h.b16 %v2725
    %v3284 = vunpack.c.l.b16 %v2726
    %v3285 = vunpack.c.l.b16 %v2727
    %v3286 = vunpack.c.h.b16 %v2727
    %v3287 = vunpack.c.l.b16 %v2728
    %v3288 = vunpack.c.h.b16 %v2728
    %v3289 = vunpack.c.l.b16 %v2729
    %v3290 = vunpack.c.h.b16 %v2729
    %v3291 = vunpack.c.l.b16 %v2730
    %v3292 = vunpack.c.l.b16 %v2731
    %v3293 = vunpack.c.h.b16 %v2731
    %v3294 = vunpack.c.l.b16 %v2732
    %v3295 = vunpack.c.h.b16 %v2732
    %v3296 = vunpack.c.l.b16 %v2733
    %v3297 = vunpack.c.h.b16 %v2733
    %v3298 = vunpack.c.l.b16 %v2734
    %v3299 = vunpack.c.l.b16 %v2735
    %v3300 = vunpack.c.h.b16 %v2735
    %v3301 = vunpack.c.l.b16 %v2736
    %v3302 = vunpack.c.h.b16 %v2736
    %v3303 = vunpack.c.l.b16 %v2737
    %v3304 = vunpack.c.h.b16 %v2737
    %v3305 = vunpack.c.l.b16 %v2738
    %v3306 = vunpack.c.l.b16 %v2739
    %v3307 = vunpack.c.h.b16 %v2739
    %v3308 = vunpack.c.l.b16 %v2740
    %v3309 = vunpack.c.h.b16 %v2740
    %v3310 = vunpack.c.l.b16 %v2741
    %v3311 = vunpack.c.h.b16 %v2741
    %v3312 = vunpack.c.l.b16 %v2742
    %v3313 = vunpack.c.l.b16 %v2743
    %v3314 = vunpack.c.h.b16 %v2743
    %v3315 = vunpack.c.l.b16 %v2744
    %v3316 = vunpack.c.h.b16 %v2744
    %v3317 = vunpack.c.l.b16 %v2745
    %v3318 = vunpack.c.h.b16 %v2745
    %v3319 = vunpack.c.l.b16 %v2746
    %v3320 = vunpack.c.l.b16 %v2747
    %v3321 = vunpack.c.h.b16 %v2747
    %v3322 = vunpack.c.l.b16 %v2748
    %v3323 = vunpack.c.h.b16 %v2748
    %v3324 = vunpack.c.l.b16 %v2749
    %v3325 = vunpack.c.h.b16 %v2749
    %v3326 = vunpack.c.l.b16 %v2750
    %v3327 = vunpack.c.l.b16 %v2751
    %v3328 = vunpack.c.h.b16 %v2751
    %v3329 = vunpack.c.l.b16 %v2752
    %v3330 = vunpack.c.h.b16 %v2752
    %v3331 = vunpack.c.l.b16 %v2753
    %v3332 = vunpack.c.h.b16 %v2753
    %v3333 = vunpack.c.l.b16 %v2754
    %v3334 = vunpack.c.l.b16 %v2755
    %v3335 = vunpack.c.h.b16 %v2755
    %v3336 = vunpack.c.l.b16 %v2756
    %v3337 = vunpack.c.h.b16 %v2756
    %v3338 = vunpack.c.l.b16 %v2757
    %v3339 = vunpack.c.h.b16 %v2757
    %v3340 = vunpack.c.l.b16 %v2758
    %v3341 = vunpack.c.l.b16 %v2759
    %v3342 = vunpack.c.h.b16 %v2759
    %v3343 = vunpack.c.l.b16 %v2760
    %v3344 = vunpack.c.h.b16 %v2760
    %v3345 = vunpack.c.l.b16 %v2761
    %v3346 = vunpack.c.h.b16 %v2761
    %v3347 = vunpack.c.l.b16 %v2762
    %v3348 = vunpack.c.l.b16 %v2763
    %v3349 = vunpack.c.h.b16 %v2763
    %v3350 = vunpack.c.l.b16 %v2764
    %v3351 = vunpack.c.h.b16 %v2764
    %v3352 = vunpack.c.l.b16 %v2765
    %v3353 = vunpack.c.h.b16 %v2765
    %v3354 = vunpack.c.l.b16 %v2766
    %v3355 = vunpack.c.l.b16 %v2767
    %v3356 = vunpack.c.h.b16 %v2767
    %v3357 = vunpack.c.l.b16 %v2768
    %v3358 = vunpack.c.h.b16 %v2768
    %v3359 = vunpack.c.l.b16 %v2769
    %v3360 = vunpack.c.h.b16 %v2769
    %v3361 = vunpack.c.l.b16 %v2770
    %v3362 = vunpack.c.l.b16 %v2771
    %v3363 = vunpack.c.h.b16 %v2771
    %v3364 = vunpack.c.l.b16 %v2772
    %v3365 = vunpack.c.h.b16 %v2772
    %v3366 = vunpack.c.l.b16 %v2773
    %v3367 = vunpack.c.h.b16 %v2773
    %v3368 = vunpack.c.l.b16 %v2774
    %v3369 = vunpack.c.l.b16 %v2775
    %v3370 = vunpack.c.h.b16 %v2775
    %v3371 = vunpack.c.l.b16 %v2776
    %v3372 = vunpack.c.h.b16 %v2776
    %v3373 = vunpack.c.l.b16 %v2777
    %v3374 = vunpack.c.h.b16 %v2777
    %v3375 = vunpack.c.l.b16 %v2778
    %v3376 = vunpack.c.l.b16 %v2779
    %v3377 = vunpack.c.h.b16 %v2779
    %v3378 = vunpack.c.l.b16 %v2780
    %v3379 = vunpack.c.h.b16 %v2780
    %v3380 = vunpack.c.l.b16 %v2781
    %v3381 = vunpack.c.h.b16 %v2781
    %v3382 = vunpack.c.l.b16 %v2782
    %v3383 = vunpack.c.l.b16 %v2783
    %v3384 = vunpack.c.h.b16 %v2783
    %v3385 = vunpack.c.l.b16 %v2784
    %v3386 = vunpack.c.h.b16 %v2784
    %v3387 = vunpack.c.l.b16 %v2785
    %v3388 = vunpack.c.h.b16 %v2785
    %v3389 = vunpack.c.l.b16 %v2786
    %v3390 = vunpack.c.l.b16 %v2787
    %v3391 = vunpack.c.h.b16 %v2787
    %v3392 = vunpack.c.l.b16 %v2788
    %v3393 = vunpack.c.h.b16 %v2788
    %v3394 = vunpack.c.l.b16 %v2789
    %v3395 = vunpack.c.h.b16 %v2789
    %v3396 = vunpack.c.l.b16 %v2790
    %v3397 = vunpack.c.l.b16 %v2791
    %v3398 = vunpack.c.h.b16 %v2791
    %v3399 = vunpack.c.l.b16 %v2792
    %v3400 = vunpack.c.h.b16 %v2792
    %v3401 = vunpack.c.l.b16 %v2793
    %v3402 = vunpack.c.h.b16 %v2793
    %v3403 = vunpack.c.l.b16 %v2794
    %v3404 = vunpack.c.l.b16 %v2795
    %v3405 = vunpack.c.h.b16 %v2795
    %v3406 = vunpack.c.l.b16 %v2796
    %v3407 = vunpack.c.h.b16 %v2796
    %v3408 = vunpack.c.l.b16 %v2797
    %v3409 = vunpack.c.h.b16 %v2797
    %v3410 = vunpack.c.l.b16 %v2798
    %v3411 = vunpack.c.l.b16 %v2799
    %v3412 = vunpack.c.h.b16 %v2799
    %v3413 = vunpack.c.l.b16 %v2800
    %v3414 = vunpack.c.h.b16 %v2800
    %v3415 = vunpack.c.l.b16 %v2801
    %v3416 = vunpack.c.h.b16 %v2801
    %v3417 = vunpack.c.l.b16 %v2802
    %v3418 = vunpack.c.l.b16 %v2803
    %v3419 = vunpack.c.h.b16 %v2803
    %v3420 = vunpack.c.l.b16 %v2804
    %v3421 = vunpack.c.h.b16 %v2804
    %v3422 = vunpack.c.l.b16 %v2805
    %v3423 = vunpack.c.h.b16 %v2805
    %v3424 = vunpack.c.l.b16 %v2806
    %v3425 = vunpack.c.l.b16 %v2807
    %v3426 = vunpack.c.h.b16 %v2807
    %v3427 = vunpack.c.l.b16 %v2808
    %v3428 = vunpack.c.h.b16 %v2808
    %v3429 = vunpack.c.l.b16 %v2809
    %v3430 = vunpack.c.h.b16 %v2809
    %v3431 = vunpack.c.l.b16 %v2810
    %v3432 = vunpack.c.l.b16 %v2811
    %v3433 = vunpack.c.h.b16 %v2811
    %v3434 = vunpack.c.l.b16 %v2812
    %v3435 = vunpack.c.h.b16 %v2812
    %v3436 = vunpack.c.l.b16 %v2813
    %v3437 = vunpack.c.h.b16 %v2813
    %v3438 = vunpack.c.l.b16 %v2814
    %v3439 = vunpack.c.l.b16 %v2815
    %v3440 = vunpack.c.h.b16 %v2815
    %v3441 = vunpack.c.l.b16 %v2816
    %v3442 = vunpack.c.h.b16 %v2816
    %v3443 = vunpack.c.l.b16 %v2817
    %v3444 = vunpack.c.h.b16 %v2817
    %v3445 = vunpack.c.l.b16 %v2818
    %v3446 = vunpack.c.l.b16 %v2819
    %v3447 = vunpack.c.h.b16 %v2819
    %v3448 = vunpack.c.l.b16 %v2820
    %v3449 = vunpack.c.h.b16 %v2820
    %v3450 = vunpack.c.l.b16 %v2821
    %v3451 = vunpack.c.h.b16 %v2821
    %v3452 = vunpack.c.l.b16 %v2822
    %v3453 = vunpack.c.l.b16 %v2823
    %v3454 = vunpack.c.h.b16 %v2823
    %v3455 = vunpack.c.l.b16 %v2824
    %v3456 = vunpack.c.h.b16 %v2824
    %v3457 = vunpack.c.l.b16 %v2825
    %v3458 = vunpack.c.h.b16 %v2825
    %v3459 = vunpack.c.l.b16 %v2826
    %v3460 = vunpack.c.l.b16 %v2827
    %v3461 = vunpack.c.h.b16 %v2827
    %v3462 = vunpack.c.l.b16 %v2828
    %v3463 = vunpack.c.h.b16 %v2828
    %v3464 = vunpack.c.l.b16 %v2829
    %v3465 = vunpack.c.h.b16 %v2829
    %v3466 = vunpack.c.l.b16 %v2830
    %v3467 = vunpack.c.l.b16 %v2831
    %v3468 = vunpack.c.h.b16 %v2831
    %v3469 = vunpack.c.l.b16 %v2832
    %v3470 = vunpack.c.h.b16 %v2832
    %v3471 = vunpack.c.l.b16 %v2833
    %v3472 = vunpack.c.h.b16 %v2833
    %v3473 = vunpack.c.l.b16 %v2834
    %v3474 = vunpack.c.l.b16 %v2835
    %v3475 = vunpack.c.h.b16 %v2835
    %v3476 = vunpack.c.l.b16 %v2836
    %v3477 = vunpack.c.h.b16 %v2836
    %v3478 = vunpack.c.l.b16 %v2837
    %v3479 = vunpack.c.h.b16 %v2837
    %v3480 = vunpack.c.l.b16 %v2838
    %v3481 = vunpack.c.l.b16 %v2839
    %v3482 = vunpack.c.h.b16 %v2839
    %v3483 = vunpack.c.l.b16 %v2840
    %v3484 = vunpack.c.h.b16 %v2840
    %v3485 = vunpack.c.l.b16 %v2841
    %v3486 = vunpack.c.h.b16 %v2841
    %v3487 = vunpack.c.l.b16 %v2842
    %v3488 = vunpack.c.l.b16 %v2843
    %v3489 = vunpack.c.h.b16 %v2843
    %v3490 = vunpack.c.l.b16 %v2844
    %v3491 = vunpack.c.h.b16 %v2844
    %v3492 = vunpack.c.l.b16 %v2845
    %v3493 = vunpack.c.h.b16 %v2845
    %v3494 = vunpack.c.l.b16 %v2846
    %v3495 = vunpack.c.l.b16 %v2847
    %v3496 = vunpack.c.h.b16 %v2847
    %v3497 = vunpack.c.l.b16 %v2848
    %v3498 = vunpack.c.h.b16 %v2848
    %v3499 = vunpack.c.l.b16 %v2849
    %v3500 = vunpack.c.h.b16 %v2849
    %v3501 = vunpack.c.l.b16 %v2850
    %v3502 = vunpack.c.l.b16 %v2851
    %v3503 = vunpack.c.h.b16 %v2851
    %v3504 = vunpack.c.l.b16 %v2852
    %v3505 = vunpack.c.h.b16 %v2852
    %v3506 = vunpack.c.l.b16 %v2853
    %v3507 = vunpack.c.h.b16 %v2853
    %v3508 = vunpack.c.l.b16 %v2854
    %v3509 = vunpack.c.l.b16 %v2855
    %v3510 = vunpack.c.h.b16 %v2855
    %v3511 = vunpack.c.l.b16 %v2856
    %v3512 = vunpack.c.h.b16 %v2856
    %v3513 = vunpack.c.l.b16 %v2857
    %v3514 = vunpack.c.h.b16 %v2857
    %v3515 = vunpack.c.l.b16 %v2858
    %v3516 = vunpack.c.l.b16 %v2859
    %v3517 = vunpack.c.h.b16 %v2859
    %v3518 = vunpack.c.l.b16 %v2860
    %v3519 = vunpack.c.h.b16 %v2860
    %v3520 = vunpack.c.l.b16 %v2861
    %v3521 = vunpack.c.h.b16 %v2861
    %v3522 = vunpack.c.l.b16 %v2862
    %v3523 = vunpack.c.l.b16 %v2863
    %v3524 = vunpack.c.h.b16 %v2863
    %v3525 = vunpack.c.l.b16 %v2864
    %v3526 = vunpack.c.h.b16 %v2864
    %v3527 = vunpack.c.l.b16 %v2865
    %v3528 = vunpack.c.h.b16 %v2865
    %v3529 = vunpack.c.l.b16 %v2866
    %v3530 = vunpack.c.l.b16 %v2867
    %v3531 = vunpack.c.h.b16 %v2867
    %v3532 = vunpack.c.l.b16 %v2868
    %v3533 = vunpack.c.h.b16 %v2868
    %v3534 = vunpack.c.l.b16 %v2869
    %v3535 = vunpack.c.h.b16 %v2869
    %v3536 = vunpack.c.l.b16 %v2870
    %v3537 = vunpack.c.l.b16 %v2871
    %v3538 = vunpack.c.h.b16 %v2871
    %v3539 = vunpack.c.l.b16 %v2872
    %v3540 = vunpack.c.h.b16 %v2872
    %v3541 = vunpack.c.l.b16 %v2873
    %v3542 = vunpack.c.h.b16 %v2873
    %v3543 = vunpack.c.l.b16 %v2874
    %v3544 = vunpack.c.l.b16 %v2875
    %v3545 = vunpack.c.h.b16 %v2875
    %v3546 = vunpack.c.l.b16 %v2876
    %v3547 = vunpack.c.h.b16 %v2876
    %v3548 = vunpack.c.l.b16 %v2877
    %v3549 = vunpack.c.h.b16 %v2877
    %v3550 = vunpack.c.l.b16 %v2878
    %v3551 = vunpack.c.l.b16 %v2879
    %v3552 = vunpack.c.h.b16 %v2879
    %v3553 = vunpack.c.l.b16 %v2880
    %v3554 = vunpack.c.h.b16 %v2880
    %v3555 = vunpack.c.l.b16 %v2881
    %v3556 = vunpack.c.h.b16 %v2881
    %v3557 = vunpack.c.l.b16 %v2882
    %v3558 = vunpack.c.l.b16 %v2883
    %v3559 = vunpack.c.h.b16 %v2883
    %v3560 = vunpack.c.l.b16 %v2884
    %v3561 = vunpack.c.h.b16 %v2884
    %v3562 = vunpack.c.l.b16 %v2885
    %v3563 = vunpack.c.h.b16 %v2885
    %v3564 = vunpack.c.l.b16 %v2886
    %v3565 = vunpack.c.l.b16 %v2887
    %v3566 = vunpack.c.h.b16 %v2887
    %v3567 = vunpack.c.l.b16 %v2888
    %v3568 = vunpack.c.h.b16 %v2888
    %v3569 = vunpack.c.l.b16 %v2889
    %v3570 = vunpack.c.h.b16 %v2889
    %v3571 = vunpack.c.l.b16 %v2890
    %v3572 = vunpack.c.l.b16 %v2891
    %v3573 = vunpack.c.h.b16 %v2891
    %v3574 = vunpack.c.l.b16 %v2892
    %v3575 = vunpack.c.h.b16 %v2892
    %v3576 = vunpack.c.l.b16 %v2893
    %v3577 = vunpack.c.h.b16 %v2893
    %v3578 = vunpack.c.l.b16 %v2894
    %v3579 = vunpack.c.l.b16 %v2895
    %v3580 = vunpack.c.h.b16 %v2895
    %v3581 = vunpack.c.l.b16 %v2896
    %v3582 = vunpack.c.h.b16 %v2896
    %v3583 = vunpack.c.l.b16 %v2897
    %v3584 = vunpack.c.h.b16 %v2897
    %v3585 = vunpack.c.l.b16 %v2898
    %v3586 = vunpack.c.l.b16 %v2899
    %v3587 = vunpack.c.h.b16 %v2899
    %v3588 = vunpack.c.l.b16 %v2900
    %v3589 = vunpack.c.h.b16 %v2900
    %v3590 = vunpack.c.l.b16 %v2901
    %v3591 = vunpack.c.h.b16 %v2901
    %v3592 = vunpack.c.l.b16 %v2902
    %v3593 = vunpack.c.l.b16 %v2903
    %v3594 = vunpack.c.h.b16 %v2903
    %v3595 = vunpack.c.l.b16 %v2904
    %v3596 = vunpack.c.h.b16 %v2904
    %v3597 = vunpack.c.l.b16 %v2905
    %v3598 = vunpack.c.h.b16 %v2905
    %v3599 = vunpack.c.l.b16 %v2906
    %v3600 = vunpack.c.l.b16 %v2907
    %v3601 = vunpack.c.h.b16 %v2907
    %v3602 = vunpack.c.l.b16 %v2908
    %v3603 = vunpack.c.h.b16 %v2908
    %v3604 = vunpack.c.l.b16 %v2909
    %v3605 = vunpack.c.h.b16 %v2909
    %v3606 = vunpack.c.l.b16 %v2910
    %v3607 = vunpack.c.l.b16 %v2911
    %v3608 = vunpack.c.h.b16 %v2911
    %v3609 = vunpack.c.l.b16 %v2912
    %v3610 = vunpack.c.h.b16 %v2912
    %v3611 = vunpack.c.l.b16 %v2913
    %v3612 = vunpack.c.h.b16 %v2913
    %v3613 = vunpack.c.l.b16 %v2914
    %v3614 = vunpack.c.l.b16 %v2915
    %v3615 = vunpack.c.h.b16 %v2915
    %v3616 = vunpack.c.l.b16 %v2916
    %v3617 = vunpack.c.h.b16 %v2916
    %v3618 = vunpack.c.l.b16 %v2917
    %v3619 = vunpack.c.h.b16 %v2917
    %v3620 = vunpack.c.l.b16 %v2918
    %v3621 = vunpack.c.l.b16 %v2919
    %v3622 = vunpack.c.h.b16 %v2919
    %v3623 = vunpack.c.l.b16 %v2920
    %v3624 = vunpack.c.h.b16 %v2920
    %v3625 = vunpack.c.l.b16 %v2921
    %v3626 = vunpack.c.h.b16 %v2921
    %v3627 = vunpack.c.l.b16 %v2922
    %v3628 = vunpack.c.l.b16 %v2923
    %v3629 = vunpack.c.h.b16 %v2923
    %v3630 = vunpack.c.l.b16 %v2924
    %v3631 = vunpack.c.h.b16 %v2924
    %v3632 = vunpack.c.l.b16 %v2925
    %v3633 = vunpack.c.h.b16 %v2925
    %v3634 = vunpack.c.l.b16 %v2926
    %v3635 = vunpack.c.l.b16 %v2927
    %v3636 = vunpack.c.h.b16 %v2927
    %v3637 = vunpack.c.l.b16 %v2928
    %v3638 = vunpack.c.h.b16 %v2928
    %v3639 = vunpack.c.l.b16 %v2929
    %v3640 = vunpack.c.h.b16 %v2929
    %v3641 = vunpack.c.l.b16 %v2930
    %v3642 = vunpack.c.l.b16 %v2931
    %v3643 = vunpack.c.h.b16 %v2931
    %v3644 = vunpack.c.l.b16 %v2932
    %v3645 = vunpack.c.h.b16 %v2932
    %v3646 = vunpack.c.l.b16 %v2933
    %v3647 = vunpack.c.h.b16 %v2933
    %v3648 = vunpack.c.l.b16 %v2934
    %v3649 = vunpack.c.l.b16 %v2935
    %v3650 = vunpack.c.h.b16 %v2935
    %v3651 = vunpack.c.l.b16 %v2936
    %v3652 = vunpack.c.h.b16 %v2936
    %v3653 = vunpack.c.l.b16 %v2937
    %v3654 = vunpack.c.h.b16 %v2937
    %v3655 = vunpack.c.l.b16 %v2938
    %v3656 = vunpack.c.l.b16 %v2939
    %v3657 = vunpack.c.h.b16 %v2939
    %v3658 = vunpack.c.l.b16 %v2940
    %v3659 = vunpack.c.h.b16 %v2940
    %v3660 = vunpack.c.l.b16 %v2941
    %v3661 = vunpack.c.h.b16 %v2941
    %v3662 = vunpack.c.l.b16 %v2942
    %v3663 = vpack.c.b16 %v3222, %v3215
    %v3664 = vpack.c.b16 %v3223, %v3216
    %v3665 = vpack.c.b16 %v3224, %v3217
    %v3666 = vpack.c.b16 %v3225, %v3218
    %v3667 = vpack.c.b16 %v3226, %v3219
    %v3668 = vpack.c.b16 %v3227, %v3220
    %v3669 = vpack.c.b16 %v3228, %v3221
    %v3670 = vpack.c.b16 %v3236, %v3229
    %v3671 = vpack.c.b16 %v3237, %v3230
    %v3672 = vpack.c.b16 %v3238, %v3231
    %v3673 = vpack.c.b16 %v3239, %v3232
    %v3674 = vpack.c.b16 %v3240, %v3233
    %v3675 = vpack.c.b16 %v3241, %v3234
    %v3676 = vpack.c.b16 %v3242, %v3235
    %v3677 = vpack.c.b16 %v3250, %v3243
    %v3678 = vpack.c.b16 %v3251, %v3244
    %v3679 = vpack.c.b16 %v3252, %v3245
    %v3680 = vpack.c.b16 %v3253, %v3246
    %v3681 = vpack.c.b16 %v3254, %v3247
    %v3682 = vpack.c.b16 %v3255, %v3248
    %v3683 = vpack.c.b16 %v3256, %v3249
    %v3684 = vpack.c.b16 %v3264, %v3257
    %v3685 = vpack.c.b16 %v3265, %v3258
    %v3686 = vpack.c.b16 %v3266, %v3259
    %v3687 = vpack.c.b16 %v3267, %v3260
    %v3688 = vpack.c.b16 %v3268, %v3261
    %v3689 = vpack.c.b16 %v3269, %v3262
    %v3690 = vpack.c.b16 %v3270, %v3263
    %v3691 = vpack.c.b16 %v3278, %v3271
    %v3692 = vpack.c.b16 %v3279, %v3272
    %v3693 = vpack.c.b16 %v3280, %v3273
    %v3694 = vpack.c.b16 %v3281, %v3274
    %v3695 = vpack.c.b16 %v3282, %v3275
    %v3696 = vpack.c.b16 %v3283, %v3276
    %v3697 = vpack.c.b16 %v3284, %v3277
    %v3698 = vpack.c.b16 %v3292, %v3285
    %v3699 = vpack.c.b16 %v3293, %v3286
    %v3700 = vpack.c.b16 %v3294, %v3287
    %v3701 = vpack.c.b16 %v3295, %v3288
    %v3702 = vpack.c.b16 %v3296, %v3289
    %v3703 = vpack.c.b16 %v3297, %v3290
    %v3704 = vpack.c.b16 %v3298, %v3291
    %v3705 = vpack.c.b16 %v3306, %v3299
    %v3706 = vpack.c.b16 %v3307, %v3300
    %v3707 = vpack.c.b16 %v3308, %v3301
    %v3708 = vpack.c.b16 %v3309, %v3302
    %v3709 = vpack.c.b16 %v3310, %v3303
    %v3710 = vpack.c.b16 %v3311, %v3304
    %v3711 = vpack.c.b16 %v3312, %v3305
    %v3712 = vpack.c.b16 %v3320, %v3313
    %v3713 = vpack.c.b16 %v3321, %v3314
    %v3714 = vpack.c.b16 %v3322, %v3315
    %v3715 = vpack.c.b16 %v3323, %v3316
    %v3716 = vpack.c.b16 %v3324, %v3317
    %v3717 = vpack.c.b16 %v3325, %v3318
    %v3718 = vpack.c.b16 %v3326, %v3319
    %v3719 = vpack.c.b16 %v3334, %v3327
    %v3720 = vpack.c.b16 %v3335, %v3328
    %v3721 = vpack.c.b16 %v3336, %v3329
    %v3722 = vpack.c.b16 %v3337, %v3330
    %v3723 = vpack.c.b16 %v3338, %v3331
    %v3724 = vpack.c.b16 %v3339, %v3332
    %v3725 = vpack.c.b16 %v3340, %v3333
    %v3726 = vpack.c.b16 %v3348, %v3341
    %v3727 = vpack.c.b16 %v3349, %v3342
    %v3728 = vpack.c.b16 %v3350, %v3343
    %v3729 = vpack.c.b16 %v3351, %v3344
    %v3730 = vpack.c.b16 %v3352, %v3345
    %v3731 = vpack.c.b16 %v3353, %v3346
    %v3732 = vpack.c.b16 %v3354, %v3347
    %v3733 = vpack.c.b16 %v3362, %v3355
    %v3734 = vpack.c.b16 %v3363, %v3356
    %v3735 = vpack.c.b16 %v3364, %v3357
    %v3736 = vpack.c.b16 %v3365, %v3358
    %v3737 = vpack.c.b16 %v3366, %v3359
    %v3738 = vpack.c.b16 %v3367, %v3360
    %v3739 = vpack.c.b16 %v3368, %v3361
    %v3740 = vpack.c.b16 %v3376, %v3369
    %v3741 = vpack.c.b16 %v3377, %v3370
    %v3742 = vpack.c.b16 %v3378, %v3371
    %v3743 = vpack.c.b16 %v3379, %v3372
    %v3744 = vpack.c.b16 %v3380, %v3373
    %v3745 = vpack.c.b16 %v3381, %v3374
    %v3746 = vpack.c.b16 %v3382, %v3375
    %v3747 = vpack.c.b16 %v3390, %v3383
    %v3748 = vpack.c.b16 %v3391, %v3384
    %v3749 = vpack.c.b16 %v3392, %v3385
    %v3750 = vpack.c.b16 %v3393, %v3386
    %v3751 = vpack.c.b16 %v3394, %v3387
    %v3752 = vpack.c.b16 %v3395, %v3388
    %v3753 = vpack.c.b16 %v3396, %v3389
    %v3754 = vpack.c.b16 %v3404, %v3397
    %v3755 = vpack.c.b16 %v3405, %v3398
    %v3756 = vpack.c.b16 %v3406, %v3399
    %v3757 = vpack.c.b16 %v3407, %v3400
    %v3758 = vpack.c.b16 %v3408, %v3401
    %v3759 = vpack.c.b16 %v3409, %v3402
    %v3760 = vpack.c.b16 %v3410, %v3403
    %v3761 = vpack.c.b16 %v3418, %v3411
    %v3762 = vpack.c.b16 %v3419, %v3412
    %v3763 = vpack.c.b16 %v3420, %v3413
    %v3764 = vpack.c.b16 %v3421, %v3414
    %v3765 = vpack.c.b16 %v3422, %v3415
    %v3766 = vpack.c.b16 %v3423, %v3416
    %v3767 = vpack.c.b16 %v3424, %v3417
    %v3768 = vpack.c.b16 %v3432, %v3425
    %v3769 = vpack.c.b16 %v3433, %v3426
    %v3770 = vpack.c.b16 %v3434, %v3427
    %v3771 = vpack.c.b16 %v3435, %v3428
    %v3772 = vpack.c.b16 %v3436, %v3429
    %v3773 = vpack.c.b16 %v3437, %v3430
    %v3774 = vpack.c.b16 %v3438, %v3431
    %v3775 = vpack.c.b16 %v3446, %v3439
    %v3776 = vpack.c.b16 %v3447, %v3440
    %v3777 = vpack.c.b16 %v3448, %v3441
    %v3778 = vpack.c.b16 %v3449, %v3442
    %v3779 = vpack.c.b16 %v3450, %v3443
    %v3780 = vpack.c.b16 %v3451, %v3444
    %v3781 = vpack.c.b16 %v3452, %v3445
    %v3782 = vpack.c.b16 %v3460, %v3453
    %v3783 = vpack.c.b16 %v3461, %v3454
    %v3784 = vpack.c.b16 %v3462, %v3455
    %v3785 = vpack.c.b16 %v3463, %v3456
    %v3786 = vpack.c.b16 %v3464, %v3457
    %v3787 = vpack.c.b16 %v3465, %v3458
    %v3788 = vpack.c.b16 %v3466, %v3459
    %v3789 = vpack.c.b16 %v3474, %v3467
    %v3790 = vpack.c.b16 %v3475, %v3468
    %v3791 = vpack.c.b16 %v3476, %v3469
    %v3792 = vpack.c.b16 %v3477, %v3470
    %v3793 = vpack.c.b16 %v3478, %v3471
    %v3794 = vpack.c.b16 %v3479, %v3472
    %v3795 = vpack.c.b16 %v3480, %v3473
    %v3796 = vpack.c.b16 %v3488, %v3481
    %v3797 = vpack.c.b16 %v3489, %v3482
    %v3798 = vpack.c.b16 %v3490, %v3483
    %v3799 = vpack.c.b16 %v3491, %v3484
    %v3800 = vpack.c.b16 %v3492, %v3485
    %v3801 = vpack.c.b16 %v3493, %v3486
    %v3802 = vpack.c.b16 %v3494, %v3487
    %v3803 = vpack.c.b16 %v3502, %v3495
    %v3804 = vpack.c.b16 %v3503, %v3496
    %v3805 = vpack.c.b16 %v3504, %v3497
    %v3806 = vpack.c.b16 %v3505, %v3498
    %v3807 = vpack.c.b16 %v3506, %v3499
    %v3808 = vpack.c.b16 %v3507, %v3500
    %v3809 = vpack.c.b16 %v3508, %v3501
    %v3810 = vpack.c.b16 %v3516, %v3509
    %v3811 = vpack.c.b16 %v3517, %v3510
    %v3812 = vpack.c.b16 %v3518, %v3511
    %v3813 = vpack.c.b16 %v3519, %v3512
    %v3814 = vpack.c.b16 %v3520, %v3513
    %v3815 = vpack.c.b16 %v3521, %v3514
    %v3816 = vpack.c.b16 %v3522, %v3515
    %v3817 = vpack.c.b16 %v3530, %v3523
    %v3818 = vpack.c.b16 %v3531, %v3524
    %v3819 = vpack.c.b16 %v3532, %v3525
    %v3820 = vpack.c.b16 %v3533, %v3526
    %v3821 = vpack.c.b16 %v3534, %v3527
    %v3822 = vpack.c.b16 %v3535, %v3528
    %v3823 = vpack.c.b16 %v3536, %v3529
    %v3824 = vpack.c.b16 %v3544, %v3537
    %v3825 = vpack.c.b16 %v3545, %v3538
    %v3826 = vpack.c.b16 %v3546, %v3539
    %v3827 = vpack.c.b16 %v3547, %v3540
    %v3828 = vpack.c.b16 %v3548, %v3541
    %v3829 = vpack.c.b16 %v3549, %v3542
    %v3830 = vpack.c.b16 %v3550, %v3543
    %v3831 = vpack.c.b16 %v3558, %v3551
    %v3832 = vpack.c.b16 %v3559, %v3552
    %v3833 = vpack.c.b16 %v3560, %v3553
    %v3834 = vpack.c.b16 %v3561, %v3554
    %v3835 = vpack.c.b16 %v3562, %v3555
    %v3836 = vpack.c.b16 %v3563, %v3556
    %v3837 = vpack.c.b16 %v3564, %v3557
    %v3838 = vpack.c.b16 %v3572, %v3565
    %v3839 = vpack.c.b16 %v3573, %v3566
    %v3840 = vpack.c.b16 %v3574, %v3567
    %v3841 = vpack.c.b16 %v3575, %v3568
    %v3842 = vpack.c.b16 %v3576, %v3569
    %v3843 = vpack.c.b16 %v3577, %v3570
    %v3844 = vpack.c.b16 %v3578, %v3571
    %v3845 = vpack.c.b16 %v3586, %v3579
    %v3846 = vpack.c.b16 %v3587, %v3580
    %v3847 = vpack.c.b16 %v3588, %v3581
    %v3848 = vpack.c.b16 %v3589, %v3582
    %v3849 = vpack.c.b16 %v3590, %v3583
    %v3850 = vpack.c.b16 %v3591, %v3584
    %v3851 = vpack.c.b16 %v3592, %v3585
    %v3852 = vpack.c.b16 %v3600, %v3593
    %v3853 = vpack.c.b16 %v3601, %v3594
    %v3854 = vpack.c.b16 %v3602, %v3595
    %v3855 = vpack.c.b16 %v3603, %v3596
    %v3856 = vpack.c.b16 %v3604, %v3597
    %v3857 = vpack.c.b16 %v3605, %v3598
    %v3858 = vpack.c.b16 %v3606, %v3599
    %v3859 = vpack.c.b16 %v3614, %v3607
    %v3860 = vpack.c.b16 %v3615, %v3608
    %v3861 = vpack.c.b16 %v3616, %v3609
    %v3862 = vpack.c.b16 %v3617, %v3610
    %v3863 = vpack.c.b16 %v3618, %v3611
    %v3864 = vpack.c.b16 %v3619, %v3612
    %v3865 = vpack.c.b16 %v3620, %v3613
    %v3866 = vpack.c.b16 %v3628, %v3621
    %v3867 = vpack.c.b16 %v3629, %v3622
    %v3868 = vpack.c.b16 %v3630, %v3623
    %v3869 = vpack.c.b16 %v3631, %v3624
    %v3870 = vpack.c.b16 %v3632, %v3625
    %v3871 = vpack.c.b16 %v3633, %v3626
    %v3872 = vpack.c.b16 %v3634, %v3627
    %v3873 = vpack.c.b16 %v3642, %v3635
    %v3874 = vpack.c.b16 %v3643, %v3636
    %v3875 = vpack.c.b16 %v3644, %v3637
    %v3876 = vpack.c.b16 %v3645, %v3638
    %v3877 = vpack.c.b16 %v3646, %v3639
    %v3878 = vpack.c.b16 %v3647, %v3640
    %v3879 = vpack.c.b16 %v3648, %v3641
    %v3880 = vpack.c.b16 %v3656, %v3649
    %v3881 = vpack.c.b16 %v3657, %v3650
    %v3882 = vpack.c.b16 %v3658, %v3651
    %v3883 = vpack.c.b16 %v3659, %v3652
    %v3884 = vpack.c.b16 %v3660, %v3653
    %v3885 = vpack.c.b16 %v3661, %v3654
    %v3886 = vpack.c.b16 %v3662, %v3655
    %4111 = vmatpush.bf16.msra.mxu0 %v3712
    %4112 = vmatpush.bf16.msra.mxu0 %v3705
    %4113 = vmatpush.bf16.msra.mxu0 %v3698
    %4114 = vmatpush.bf16.msra.mxu0 %v3691
    %4115 = vmatpush.bf16.msra.mxu0 %v3684
    %4116 = vmatpush.bf16.msra.mxu0 %v3677
    %4117 = vmatpush.bf16.msra.mxu0 %v3670
    %4118 = vmatpush.bf16.msra.mxu0 %v3663
    %4119 = vmatmul.bf16.gmra.mxu0 %v2683
    %v4120 = vpop.f32.mrf.mxu0
    %v4121 = vadd.f32 %v2945, %v4120
    %v4122 = vpop.f32.mrf.mxu0
    %v4123 = vadd.f32 %v2945, %v4122
    %4124 = vdwg.mxu0
    %4125 = vmatpush.bf16.msra.mxu0 %v3768
    %4126 = vmatpush.bf16.msra.mxu0 %v3761
    %4127 = vmatpush.bf16.msra.mxu0 %v3754
    %4128 = vmatpush.bf16.msra.mxu0 %v3747
    %4129 = vmatpush.bf16.msra.mxu0 %v3740
    %4130 = vmatpush.bf16.msra.mxu0 %v3733
    %4131 = vmatpush.bf16.msra.mxu0 %v3726
    %4132 = vmatpush.bf16.msra.mxu0 %v3719
    %4133 = vmatmul.bf16.gmra.mxu0 %v2684
    %v4134 = vpop.f32.mrf.mxu0
    %v4135 = vadd.f32 %v4121, %v4134
    %v4136 = vpop.f32.mrf.mxu0
    %v4137 = vadd.f32 %v4123, %v4136
    %4138 = vdwg.mxu0
    %4139 = vmatpush.bf16.msra.mxu0 %v3824
    %4140 = vmatpush.bf16.msra.mxu0 %v3817
    %4141 = vmatpush.bf16.msra.mxu0 %v3810
    %4142 = vmatpush.bf16.msra.mxu0 %v3803
    %4143 = vmatpush.bf16.msra.mxu0 %v3796
    %4144 = vmatpush.bf16.msra.mxu0 %v3789
    %4145 = vmatpush.bf16.msra.mxu0 %v3782
    %4146 = vmatpush.bf16.msra.mxu0 %v3775
    %4147 = vmatmul.bf16.gmra.mxu0 %v2685
    %v4148 = vpop.f32.mrf.mxu0
    %v4149 = vadd.f32 %v4135, %v4148
    %v4150 = vpop.f32.mrf.mxu0
    %v4151 = vadd.f32 %v4137, %v4150
    %4152 = vdwg.mxu0
    %4153 = vmatpush.bf16.msra.mxu0 %v3880
    %4154 = vmatpush.bf16.msra.mxu0 %v3873
    %4155 = vmatpush.bf16.msra.mxu0 %v3866
    %4156 = vmatpush.bf16.msra.mxu0 %v3859
    %4157 = vmatpush.bf16.msra.mxu0 %v3852
    %4158 = vmatpush.bf16.msra.mxu0 %v3845
    %4159 = vmatpush.bf16.msra.mxu0 %v3838
    %4160 = vmatpush.bf16.msra.mxu0 %v3831
    %4161 = vmatmul.bf16.gmra.mxu0 %v2686
    %v4162 = vpop.f32.mrf.mxu0
    %v4163 = vadd.f32 %v4149, %v4162
    %v4164 = vpop.f32.mrf.mxu0
    %v4165 = vadd.f32 %v4151, %v4164
    %4166 = vdwg.mxu0
    %4167 = vmatpush.bf16.msra.mxu0 %v3713
    %4168 = vmatpush.bf16.msra.mxu0 %v3706
    %4169 = vmatpush.bf16.msra.mxu0 %v3699
    %4170 = vmatpush.bf16.msra.mxu0 %v3692
    %4171 = vmatpush.bf16.msra.mxu0 %v3685
    %4172 = vmatpush.bf16.msra.mxu0 %v3678
    %4173 = vmatpush.bf16.msra.mxu0 %v3671
    %4174 = vmatpush.bf16.msra.mxu0 %v3664
    %4175 = vmatmul.bf16.gmra.mxu0 %v2683
    %v4176 = vpop.f32.mrf.mxu0
    %v4177 = vadd.f32 %v2946, %v4176
    %v4178 = vpop.f32.mrf.mxu0
    %v4179 = vadd.f32 %v2946, %v4178
    %4180 = vdwg.mxu0
    %4181 = vmatpush.bf16.msra.mxu0 %v3769
    %4182 = vmatpush.bf16.msra.mxu0 %v3762
    %4183 = vmatpush.bf16.msra.mxu0 %v3755
    %4184 = vmatpush.bf16.msra.mxu0 %v3748
    %4185 = vmatpush.bf16.msra.mxu0 %v3741
    %4186 = vmatpush.bf16.msra.mxu0 %v3734
    %4187 = vmatpush.bf16.msra.mxu0 %v3727
    %4188 = vmatpush.bf16.msra.mxu0 %v3720
    %4189 = vmatmul.bf16.gmra.mxu0 %v2684
    %v4190 = vpop.f32.mrf.mxu0
    %v4191 = vadd.f32 %v4177, %v4190
    %v4192 = vpop.f32.mrf.mxu0
    %v4193 = vadd.f32 %v4179, %v4192
    %4194 = vdwg.mxu0
    %4195 = vmatpush.bf16.msra.mxu0 %v3825
    %4196 = vmatpush.bf16.msra.mxu0 %v3818
    %4197 = vmatpush.bf16.msra.mxu0 %v3811
    %4198 = vmatpush.bf16.msra.mxu0 %v3804
    %4199 = vmatpush.bf16.msra.mxu0 %v3797
    %4200 = vmatpush.bf16.msra.mxu0 %v3790
    %4201 = vmatpush.bf16.msra.mxu0 %v3783
    %4202 = vmatpush.bf16.msra.mxu0 %v3776
    %4203 = vmatmul.bf16.gmra.mxu0 %v2685
    %v4204 = vpop.f32.mrf.mxu0
    %v4205 = vadd.f32 %v4191, %v4204
    %v4206 = vpop.f32.mrf.mxu0
    %v4207 = vadd.f32 %v4193, %v4206
    %4208 = vdwg.mxu0
    %4209 = vmatpush.bf16.msra.mxu0 %v3881
    %4210 = vmatpush.bf16.msra.mxu0 %v3874
    %4211 = vmatpush.bf16.msra.mxu0 %v3867
    %4212 = vmatpush.bf16.msra.mxu0 %v3860
    %4213 = vmatpush.bf16.msra.mxu0 %v3853
    %4214 = vmatpush.bf16.msra.mxu0 %v3846
    %4215 = vmatpush.bf16.msra.mxu0 %v3839
    %4216 = vmatpush.bf16.msra.mxu0 %v3832
    %4217 = vmatmul.bf16.gmra.mxu0 %v2686
    %v4218 = vpop.f32.mrf.mxu0
    %v4219 = vadd.f32 %v4205, %v4218
    %v4220 = vpop.f32.mrf.mxu0
    %v4221 = vadd.f32 %v4207, %v4220
    %4222 = vdwg.mxu0
    %4223 = vmatpush.bf16.msra.mxu0 %v3714
    %4224 = vmatpush.bf16.msra.mxu0 %v3707
    %4225 = vmatpush.bf16.msra.mxu0 %v3700
    %4226 = vmatpush.bf16.msra.mxu0 %v3693
    %4227 = vmatpush.bf16.msra.mxu0 %v3686
    %4228 = vmatpush.bf16.msra.mxu0 %v3679
    %4229 = vmatpush.bf16.msra.mxu0 %v3672
    %4230 = vmatpush.bf16.msra.mxu0 %v3665
    %4231 = vmatmul.bf16.gmra.mxu0 %v2683
    %v4232 = vpop.f32.mrf.mxu0
    %v4233 = vadd.f32 %v2947, %v4232
    %v4234 = vpop.f32.mrf.mxu0
    %v4235 = vadd.f32 %v2947, %v4234
    %4236 = vdwg.mxu0
    %4237 = vmatpush.bf16.msra.mxu0 %v3770
    %4238 = vmatpush.bf16.msra.mxu0 %v3763
    %4239 = vmatpush.bf16.msra.mxu0 %v3756
    %4240 = vmatpush.bf16.msra.mxu0 %v3749
    %4241 = vmatpush.bf16.msra.mxu0 %v3742
    %4242 = vmatpush.bf16.msra.mxu0 %v3735
    %4243 = vmatpush.bf16.msra.mxu0 %v3728
    %4244 = vmatpush.bf16.msra.mxu0 %v3721
    %4245 = vmatmul.bf16.gmra.mxu0 %v2684
    %v4246 = vpop.f32.mrf.mxu0
    %v4247 = vadd.f32 %v4233, %v4246
    %v4248 = vpop.f32.mrf.mxu0
    %v4249 = vadd.f32 %v4235, %v4248
    %4250 = vdwg.mxu0
    %4251 = vmatpush.bf16.msra.mxu0 %v3826
    %4252 = vmatpush.bf16.msra.mxu0 %v3819
    %4253 = vmatpush.bf16.msra.mxu0 %v3812
    %4254 = vmatpush.bf16.msra.mxu0 %v3805
    %4255 = vmatpush.bf16.msra.mxu0 %v3798
    %4256 = vmatpush.bf16.msra.mxu0 %v3791
    %4257 = vmatpush.bf16.msra.mxu0 %v3784
    %4258 = vmatpush.bf16.msra.mxu0 %v3777
    %4259 = vmatmul.bf16.gmra.mxu0 %v2685
    %v4260 = vpop.f32.mrf.mxu0
    %v4261 = vadd.f32 %v4247, %v4260
    %v4262 = vpop.f32.mrf.mxu0
    %v4263 = vadd.f32 %v4249, %v4262
    %4264 = vdwg.mxu0
    %4265 = vmatpush.bf16.msra.mxu0 %v3882
    %4266 = vmatpush.bf16.msra.mxu0 %v3875
    %4267 = vmatpush.bf16.msra.mxu0 %v3868
    %4268 = vmatpush.bf16.msra.mxu0 %v3861
    %4269 = vmatpush.bf16.msra.mxu0 %v3854
    %4270 = vmatpush.bf16.msra.mxu0 %v3847
    %4271 = vmatpush.bf16.msra.mxu0 %v3840
    %4272 = vmatpush.bf16.msra.mxu0 %v3833
    %4273 = vmatmul.bf16.gmra.mxu0 %v2686
    %v4274 = vpop.f32.mrf.mxu0
    %v4275 = vadd.f32 %v4261, %v4274
    %v4276 = vpop.f32.mrf.mxu0
    %v4277 = vadd.f32 %v4263, %v4276
    %4278 = vdwg.mxu0
    %4279 = vmatpush.bf16.msra.mxu0 %v3715
    %4280 = vmatpush.bf16.msra.mxu0 %v3708
    %4281 = vmatpush.bf16.msra.mxu0 %v3701
    %4282 = vmatpush.bf16.msra.mxu0 %v3694
    %4283 = vmatpush.bf16.msra.mxu0 %v3687
    %4284 = vmatpush.bf16.msra.mxu0 %v3680
    %4285 = vmatpush.bf16.msra.mxu0 %v3673
    %4286 = vmatpush.bf16.msra.mxu0 %v3666
    %4287 = vmatmul.bf16.gmra.mxu0 %v2683
    %v4288 = vpop.f32.mrf.mxu0
    %v4289 = vadd.f32 %v2948, %v4288
    %v4290 = vpop.f32.mrf.mxu0
    %v4291 = vadd.f32 %v2948, %v4290
    %4292 = vdwg.mxu0
    %4293 = vmatpush.bf16.msra.mxu0 %v3771
    %4294 = vmatpush.bf16.msra.mxu0 %v3764
    %4295 = vmatpush.bf16.msra.mxu0 %v3757
    %4296 = vmatpush.bf16.msra.mxu0 %v3750
    %4297 = vmatpush.bf16.msra.mxu0 %v3743
    %4298 = vmatpush.bf16.msra.mxu0 %v3736
    %4299 = vmatpush.bf16.msra.mxu0 %v3729
    %4300 = vmatpush.bf16.msra.mxu0 %v3722
    %4301 = vmatmul.bf16.gmra.mxu0 %v2684
    %v4302 = vpop.f32.mrf.mxu0
    %v4303 = vadd.f32 %v4289, %v4302
    %v4304 = vpop.f32.mrf.mxu0
    %v4305 = vadd.f32 %v4291, %v4304
    %4306 = vdwg.mxu0
    %4307 = vmatpush.bf16.msra.mxu0 %v3827
    %4308 = vmatpush.bf16.msra.mxu0 %v3820
    %4309 = vmatpush.bf16.msra.mxu0 %v3813
    %4310 = vmatpush.bf16.msra.mxu0 %v3806
    %4311 = vmatpush.bf16.msra.mxu0 %v3799
    %4312 = vmatpush.bf16.msra.mxu0 %v3792
    %4313 = vmatpush.bf16.msra.mxu0 %v3785
    %4314 = vmatpush.bf16.msra.mxu0 %v3778
    %4315 = vmatmul.bf16.gmra.mxu0 %v2685
    %v4316 = vpop.f32.mrf.mxu0
    %v4317 = vadd.f32 %v4303, %v4316
    %v4318 = vpop.f32.mrf.mxu0
    %v4319 = vadd.f32 %v4305, %v4318
    %4320 = vdwg.mxu0
    %4321 = vmatpush.bf16.msra.mxu0 %v3883
    %4322 = vmatpush.bf16.msra.mxu0 %v3876
    %4323 = vmatpush.bf16.msra.mxu0 %v3869
    %4324 = vmatpush.bf16.msra.mxu0 %v3862
    %4325 = vmatpush.bf16.msra.mxu0 %v3855
    %4326 = vmatpush.bf16.msra.mxu0 %v3848
    %4327 = vmatpush.bf16.msra.mxu0 %v3841
    %4328 = vmatpush.bf16.msra.mxu0 %v3834
    %4329 = vmatmul.bf16.gmra.mxu0 %v2686
    %v4330 = vpop.f32.mrf.mxu0
    %v4331 = vadd.f32 %v4317, %v4330
    %v4332 = vpop.f32.mrf.mxu0
    %v4333 = vadd.f32 %v4319, %v4332
    %4334 = vdwg.mxu0
    %4335 = vmatpush.bf16.msra.mxu0 %v3716
    %4336 = vmatpush.bf16.msra.mxu0 %v3709
    %4337 = vmatpush.bf16.msra.mxu0 %v3702
    %4338 = vmatpush.bf16.msra.mxu0 %v3695
    %4339 = vmatpush.bf16.msra.mxu0 %v3688
    %4340 = vmatpush.bf16.msra.mxu0 %v3681
    %4341 = vmatpush.bf16.msra.mxu0 %v3674
    %4342 = vmatpush.bf16.msra.mxu0 %v3667
    %4343 = vmatmul.bf16.gmra.mxu0 %v2683
    %v4344 = vpop.f32.mrf.mxu0
    %v4345 = vadd.f32 %v2949, %v4344
    %v4346 = vpop.f32.mrf.mxu0
    %v4347 = vadd.f32 %v2949, %v4346
    %4348 = vdwg.mxu0
    %4349 = vmatpush.bf16.msra.mxu0 %v3772
    %4350 = vmatpush.bf16.msra.mxu0 %v3765
    %4351 = vmatpush.bf16.msra.mxu0 %v3758
    %4352 = vmatpush.bf16.msra.mxu0 %v3751
    %4353 = vmatpush.bf16.msra.mxu0 %v3744
    %4354 = vmatpush.bf16.msra.mxu0 %v3737
    %4355 = vmatpush.bf16.msra.mxu0 %v3730
    %4356 = vmatpush.bf16.msra.mxu0 %v3723
    %4357 = vmatmul.bf16.gmra.mxu0 %v2684
    %v4358 = vpop.f32.mrf.mxu0
    %v4359 = vadd.f32 %v4345, %v4358
    %v4360 = vpop.f32.mrf.mxu0
    %v4361 = vadd.f32 %v4347, %v4360
    %4362 = vdwg.mxu0
    %4363 = vmatpush.bf16.msra.mxu0 %v3828
    %4364 = vmatpush.bf16.msra.mxu0 %v3821
    %4365 = vmatpush.bf16.msra.mxu0 %v3814
    %4366 = vmatpush.bf16.msra.mxu0 %v3807
    %4367 = vmatpush.bf16.msra.mxu0 %v3800
    %4368 = vmatpush.bf16.msra.mxu0 %v3793
    %4369 = vmatpush.bf16.msra.mxu0 %v3786
    %4370 = vmatpush.bf16.msra.mxu0 %v3779
    %4371 = vmatmul.bf16.gmra.mxu0 %v2685
    %v4372 = vpop.f32.mrf.mxu0
    %v4373 = vadd.f32 %v4359, %v4372
    %v4374 = vpop.f32.mrf.mxu0
    %v4375 = vadd.f32 %v4361, %v4374
    %4376 = vdwg.mxu0
    %4377 = vmatpush.bf16.msra.mxu0 %v3884
    %4378 = vmatpush.bf16.msra.mxu0 %v3877
    %4379 = vmatpush.bf16.msra.mxu0 %v3870
    %4380 = vmatpush.bf16.msra.mxu0 %v3863
    %4381 = vmatpush.bf16.msra.mxu0 %v3856
    %4382 = vmatpush.bf16.msra.mxu0 %v3849
    %4383 = vmatpush.bf16.msra.mxu0 %v3842
    %4384 = vmatpush.bf16.msra.mxu0 %v3835
    %4385 = vmatmul.bf16.gmra.mxu0 %v2686
    %v4386 = vpop.f32.mrf.mxu0
    %v4387 = vadd.f32 %v4373, %v4386
    %v4388 = vpop.f32.mrf.mxu0
    %v4389 = vadd.f32 %v4375, %v4388
    %4390 = vdwg.mxu0
    %4391 = vmatpush.bf16.msra.mxu0 %v3717
    %4392 = vmatpush.bf16.msra.mxu0 %v3710
    %4393 = vmatpush.bf16.msra.mxu0 %v3703
    %4394 = vmatpush.bf16.msra.mxu0 %v3696
    %4395 = vmatpush.bf16.msra.mxu0 %v3689
    %4396 = vmatpush.bf16.msra.mxu0 %v3682
    %4397 = vmatpush.bf16.msra.mxu0 %v3675
    %4398 = vmatpush.bf16.msra.mxu0 %v3668
    %4399 = vmatmul.bf16.gmra.mxu0 %v2683
    %v4400 = vpop.f32.mrf.mxu0
    %v4401 = vadd.f32 %v2950, %v4400
    %v4402 = vpop.f32.mrf.mxu0
    %v4403 = vadd.f32 %v2950, %v4402
    %4404 = vdwg.mxu0
    %4405 = vmatpush.bf16.msra.mxu0 %v3773
    %4406 = vmatpush.bf16.msra.mxu0 %v3766
    %4407 = vmatpush.bf16.msra.mxu0 %v3759
    %4408 = vmatpush.bf16.msra.mxu0 %v3752
    %4409 = vmatpush.bf16.msra.mxu0 %v3745
    %4410 = vmatpush.bf16.msra.mxu0 %v3738
    %4411 = vmatpush.bf16.msra.mxu0 %v3731
    %4412 = vmatpush.bf16.msra.mxu0 %v3724
    %4413 = vmatmul.bf16.gmra.mxu0 %v2684
    %v4414 = vpop.f32.mrf.mxu0
    %v4415 = vadd.f32 %v4401, %v4414
    %v4416 = vpop.f32.mrf.mxu0
    %v4417 = vadd.f32 %v4403, %v4416
    %4418 = vdwg.mxu0
    %4419 = vmatpush.bf16.msra.mxu0 %v3829
    %4420 = vmatpush.bf16.msra.mxu0 %v3822
    %4421 = vmatpush.bf16.msra.mxu0 %v3815
    %4422 = vmatpush.bf16.msra.mxu0 %v3808
    %4423 = vmatpush.bf16.msra.mxu0 %v3801
    %4424 = vmatpush.bf16.msra.mxu0 %v3794
    %4425 = vmatpush.bf16.msra.mxu0 %v3787
    %4426 = vmatpush.bf16.msra.mxu0 %v3780
    %4427 = vmatmul.bf16.gmra.mxu0 %v2685
    %v4428 = vpop.f32.mrf.mxu0
    %v4429 = vadd.f32 %v4415, %v4428
    %v4430 = vpop.f32.mrf.mxu0
    %v4431 = vadd.f32 %v4417, %v4430
    %4432 = vdwg.mxu0
    %4433 = vmatpush.bf16.msra.mxu0 %v3885
    %4434 = vmatpush.bf16.msra.mxu0 %v3878
    %4435 = vmatpush.bf16.msra.mxu0 %v3871
    %4436 = vmatpush.bf16.msra.mxu0 %v3864
    %4437 = vmatpush.bf16.msra.mxu0 %v3857
    %4438 = vmatpush.bf16.msra.mxu0 %v3850
    %4439 = vmatpush.bf16.msra.mxu0 %v3843
    %4440 = vmatpush.bf16.msra.mxu0 %v3836
    %4441 = vmatmul.bf16.gmra.mxu0 %v2686
    %v4442 = vpop.f32.mrf.mxu0
    %v4443 = vadd.f32 %v4429, %v4442
    %v4444 = vpop.f32.mrf.mxu0
    %v4445 = vadd.f32 %v4431, %v4444
    %4446 = vdwg.mxu0
    %4447 = vmatpush.bf16.msra.mxu0 %v3718
    %4448 = vmatpush.bf16.msra.mxu0 %v3711
    %4449 = vmatpush.bf16.msra.mxu0 %v3704
    %4450 = vmatpush.bf16.msra.mxu0 %v3697
    %4451 = vmatpush.bf16.msra.mxu0 %v3690
    %4452 = vmatpush.bf16.msra.mxu0 %v3683
    %4453 = vmatpush.bf16.msra.mxu0 %v3676
    %4454 = vmatpush.bf16.msra.mxu0 %v3669
    %4455 = vmatmul.bf16.gmra.mxu0 %v2683
    %v4456 = vpop.f32.mrf.mxu0
    %v4457 = vadd.f32 %v2951, %v4456
    %v4458 = vpop.f32.mrf.mxu0
    %v4459 = vadd.f32 %v2951, %v4458
    %4460 = vdwg.mxu0
    %4461 = vmatpush.bf16.msra.mxu0 %v3774
    %4462 = vmatpush.bf16.msra.mxu0 %v3767
    %4463 = vmatpush.bf16.msra.mxu0 %v3760
    %4464 = vmatpush.bf16.msra.mxu0 %v3753
    %4465 = vmatpush.bf16.msra.mxu0 %v3746
    %4466 = vmatpush.bf16.msra.mxu0 %v3739
    %4467 = vmatpush.bf16.msra.mxu0 %v3732
    %4468 = vmatpush.bf16.msra.mxu0 %v3725
    %4469 = vmatmul.bf16.gmra.mxu0 %v2684
    %v4470 = vpop.f32.mrf.mxu0
    %v4471 = vadd.f32 %v4457, %v4470
    %v4472 = vpop.f32.mrf.mxu0
    %v4473 = vadd.f32 %v4459, %v4472
    %4474 = vdwg.mxu0
    %4475 = vmatpush.bf16.msra.mxu0 %v3830
    %4476 = vmatpush.bf16.msra.mxu0 %v3823
    %4477 = vmatpush.bf16.msra.mxu0 %v3816
    %4478 = vmatpush.bf16.msra.mxu0 %v3809
    %4479 = vmatpush.bf16.msra.mxu0 %v3802
    %4480 = vmatpush.bf16.msra.mxu0 %v3795
    %4481 = vmatpush.bf16.msra.mxu0 %v3788
    %4482 = vmatpush.bf16.msra.mxu0 %v3781
    %4483 = vmatmul.bf16.gmra.mxu0 %v2685
    %v4484 = vpop.f32.mrf.mxu0
    %v4485 = vadd.f32 %v4471, %v4484
    %v4486 = vpop.f32.mrf.mxu0
    %v4487 = vadd.f32 %v4473, %v4486
    %4488 = vdwg.mxu0
    %4489 = vmatpush.bf16.msra.mxu0 %v3886
    %4490 = vmatpush.bf16.msra.mxu0 %v3879
    %4491 = vmatpush.bf16.msra.mxu0 %v3872
    %4492 = vmatpush.bf16.msra.mxu0 %v3865
    %4493 = vmatpush.bf16.msra.mxu0 %v3858
    %4494 = vmatpush.bf16.msra.mxu0 %v3851
    %4495 = vmatpush.bf16.msra.mxu0 %v3844
    %4496 = vmatpush.bf16.msra.mxu0 %v3837
    %4497 = vmatmul.bf16.gmra.mxu0 %v2686
    %v4498 = vpop.f32.mrf.mxu0
    %v4499 = vadd.f32 %v4485, %v4498
    %v4500 = vpop.f32.mrf.mxu0
    %v4501 = vadd.f32 %v4487, %v4500
    %4502 = vdwg.mxu0
    %v4503 = vxor.u32 %v4163, 2147483648
    %v4504 = vxor.u32 %v4219, 2147483648
    %v4505 = vxor.u32 %v4275, 2147483648
    %v4506 = vxor.u32 %v4331, 2147483648
    %v4507 = vxor.u32 %v4387, 2147483648
    %v4508 = vxor.u32 %v4443, 2147483648
    %v4509 = vxor.u32 %v4499, 2147483648
    %v4510 = vxor.u32 %v4165, 2147483648
    %v4511 = vxor.u32 %v4221, 2147483648
    %v4512 = vxor.u32 %v4277, 2147483648
    %v4513 = vxor.u32 %v4333, 2147483648
    %v4514 = vxor.u32 %v4389, 2147483648
    %v4515 = vxor.u32 %v4445, 2147483648
    %v4516 = vxor.u32 %v4501, 2147483648
    %v4517 = vmul.f32 %v4503, 1.442695
    %v4518 = vpow.pop %v4517
    %v4519 = vmul.f32 %v4504, 1.442695
    %v4520 = vpow.pop %v4519
    %v4521 = vmul.f32 %v4505, 1.442695
    %v4522 = vpow.pop %v4521
    %v4523 = vmul.f32 %v4506, 1.442695
    %v4524 = vpow.pop %v4523
    %v4525 = vmul.f32 %v4507, 1.442695
    %v4526 = vpow.pop %v4525
    %v4527 = vmul.f32 %v4508, 1.442695
    %v4528 = vpow.pop %v4527
    %v4529 = vmul.f32 %v4509, 1.442695
    %v4530 = vpow.pop %v4529
    %v4531 = vmul.f32 %v4510, 1.442695
    %v4532 = vpow.pop %v4531
    %v4533 = vmul.f32 %v4511, 1.442695
    %v4534 = vpow.pop %v4533
    %v4535 = vmul.f32 %v4512, 1.442695
    %v4536 = vpow.pop %v4535
    %v4537 = vmul.f32 %v4513, 1.442695
    %v4538 = vpow.pop %v4537
    %v4539 = vmul.f32 %v4514, 1.442695
    %v4540 = vpow.pop %v4539
    %v4541 = vmul.f32 %v4515, 1.442695
    %v4542 = vpow.pop %v4541
    %v4543 = vmul.f32 %v4516, 1.442695
    %v4544 = vpow.pop %v4543
    %v4545 = vadd.f32 %v4518, 1.0
    %v4546 = vadd.f32 %v4520, 1.0
    %v4547 = vadd.f32 %v4522, 1.0
    %v4548 = vadd.f32 %v4524, 1.0
    %v4549 = vadd.f32 %v4526, 1.0
    %v4550 = vadd.f32 %v4528, 1.0
    %v4551 = vadd.f32 %v4530, 1.0
    %v4552 = vadd.f32 %v4532, 1.0
    %v4553 = vadd.f32 %v4534, 1.0
    %v4554 = vadd.f32 %v4536, 1.0
    %v4555 = vadd.f32 %v4538, 1.0
    %v4556 = vadd.f32 %v4540, 1.0
    %v4557 = vadd.f32 %v4542, 1.0
    %v4558 = vadd.f32 %v4544, 1.0
    %v4559 = vrcp.pop %v4545
    %v4560 = vmul.f32 %v4545, %v4559
    %v4561 = vsub.f32 1.0, %v4560
    %v4562 = vmul.f32 %v4559, %v4561
    %v4563 = vadd.f32 %v4559, %v4562
    %vm4564 = vweird.f32 %v4545
    %vm4565 = vweird.f32 %v4559
    %vm4566 = vmor %vm4564, %vm4565
    %v4567 = vsel %vm4566, %v4559, %v4563
    %v4568 = vand.u32 2147483647, %v4545
    %vm4569 = vcmp.eq.f32.partialorder %v4568, 8.507059e+37
    %v4570 = vand.u32 %v4545, 2147483648
    %v4571 = vor.u32 1.1754944e-38, %v4570
    %v4572 = vsel %vm4569, %v4571, %v4567
    %v4573 = vmul.f32 1.0, %v4572
    %v4574 = vrcp.pop %v4546
    %v4575 = vmul.f32 %v4546, %v4574
    %v4576 = vsub.f32 1.0, %v4575
    %v4577 = vmul.f32 %v4574, %v4576
    %v4578 = vadd.f32 %v4574, %v4577
    %vm4579 = vweird.f32 %v4546
    %vm4580 = vweird.f32 %v4574
    %vm4581 = vmor %vm4579, %vm4580
    %v4582 = vsel %vm4581, %v4574, %v4578
    %v4583 = vand.u32 2147483647, %v4546
    %vm4584 = vcmp.eq.f32.partialorder %v4583, 8.507059e+37
    %v4585 = vand.u32 %v4546, 2147483648
    %v4586 = vor.u32 1.1754944e-38, %v4585
    %v4587 = vsel %vm4584, %v4586, %v4582
    %v4588 = vmul.f32 1.0, %v4587
    %v4589 = vrcp.pop %v4547
    %v4590 = vmul.f32 %v4547, %v4589
    %v4591 = vsub.f32 1.0, %v4590
    %v4592 = vmul.f32 %v4589, %v4591
    %v4593 = vadd.f32 %v4589, %v4592
    %vm4594 = vweird.f32 %v4547
    %vm4595 = vweird.f32 %v4589
    %vm4596 = vmor %vm4594, %vm4595
    %v4597 = vsel %vm4596, %v4589, %v4593
    %v4598 = vand.u32 2147483647, %v4547
    %vm4599 = vcmp.eq.f32.partialorder %v4598, 8.507059e+37
    %v4600 = vand.u32 %v4547, 2147483648
    %v4601 = vor.u32 1.1754944e-38, %v4600
    %v4602 = vsel %vm4599, %v4601, %v4597
    %v4603 = vmul.f32 1.0, %v4602
    %v4604 = vrcp.pop %v4548
    %v4605 = vmul.f32 %v4548, %v4604
    %v4606 = vsub.f32 1.0, %v4605
    %v4607 = vmul.f32 %v4604, %v4606
    %v4608 = vadd.f32 %v4604, %v4607
    %vm4609 = vweird.f32 %v4548
    %vm4610 = vweird.f32 %v4604
    %vm4611 = vmor %vm4609, %vm4610
    %v4612 = vsel %vm4611, %v4604, %v4608
    %v4613 = vand.u32 2147483647, %v4548
    %vm4614 = vcmp.eq.f32.partialorder %v4613, 8.507059e+37
    %v4615 = vand.u32 %v4548, 2147483648
    %v4616 = vor.u32 1.1754944e-38, %v4615
    %v4617 = vsel %vm4614, %v4616, %v4612
    %v4618 = vmul.f32 1.0, %v4617
    %v4619 = vrcp.pop %v4549
    %v4620 = vmul.f32 %v4549, %v4619
    %v4621 = vsub.f32 1.0, %v4620
    %v4622 = vmul.f32 %v4619, %v4621
    %v4623 = vadd.f32 %v4619, %v4622
    %vm4624 = vweird.f32 %v4549
    %vm4625 = vweird.f32 %v4619
    %vm4626 = vmor %vm4624, %vm4625
    %v4627 = vsel %vm4626, %v4619, %v4623
    %v4628 = vand.u32 2147483647, %v4549
    %vm4629 = vcmp.eq.f32.partialorder %v4628, 8.507059e+37
    %v4630 = vand.u32 %v4549, 2147483648
    %v4631 = vor.u32 1.1754944e-38, %v4630
    %v4632 = vsel %vm4629, %v4631, %v4627
    %v4633 = vmul.f32 1.0, %v4632
    %v4634 = vrcp.pop %v4550
    %v4635 = vmul.f32 %v4550, %v4634
    %v4636 = vsub.f32 1.0, %v4635
    %v4637 = vmul.f32 %v4634, %v4636
    %v4638 = vadd.f32 %v4634, %v4637
    %vm4639 = vweird.f32 %v4550
    %vm4640 = vweird.f32 %v4634
    %vm4641 = vmor %vm4639, %vm4640
    %v4642 = vsel %vm4641, %v4634, %v4638
    %v4643 = vand.u32 2147483647, %v4550
    %vm4644 = vcmp.eq.f32.partialorder %v4643, 8.507059e+37
    %v4645 = vand.u32 %v4550, 2147483648
    %v4646 = vor.u32 1.1754944e-38, %v4645
    %v4647 = vsel %vm4644, %v4646, %v4642
    %v4648 = vmul.f32 1.0, %v4647
    %v4649 = vrcp.pop %v4551
    %v4650 = vmul.f32 %v4551, %v4649
    %v4651 = vsub.f32 1.0, %v4650
    %v4652 = vmul.f32 %v4649, %v4651
    %v4653 = vadd.f32 %v4649, %v4652
    %vm4654 = vweird.f32 %v4551
    %vm4655 = vweird.f32 %v4649
    %vm4656 = vmor %vm4654, %vm4655
    %v4657 = vsel %vm4656, %v4649, %v4653
    %v4658 = vand.u32 2147483647, %v4551
    %vm4659 = vcmp.eq.f32.partialorder %v4658, 8.507059e+37
    %v4660 = vand.u32 %v4551, 2147483648
    %v4661 = vor.u32 1.1754944e-38, %v4660
    %v4662 = vsel %vm4659, %v4661, %v4657
    %v4663 = vmul.f32 1.0, %v4662
    %v4664 = vrcp.pop %v4552
    %v4665 = vmul.f32 %v4552, %v4664
    %v4666 = vsub.f32 1.0, %v4665
    %v4667 = vmul.f32 %v4664, %v4666
    %v4668 = vadd.f32 %v4664, %v4667
    %vm4669 = vweird.f32 %v4552
    %vm4670 = vweird.f32 %v4664
    %vm4671 = vmor %vm4669, %vm4670
    %v4672 = vsel %vm4671, %v4664, %v4668
    %v4673 = vand.u32 2147483647, %v4552
    %vm4674 = vcmp.eq.f32.partialorder %v4673, 8.507059e+37
    %v4675 = vand.u32 %v4552, 2147483648
    %v4676 = vor.u32 1.1754944e-38, %v4675
    %v4677 = vsel %vm4674, %v4676, %v4672
    %v4678 = vmul.f32 1.0, %v4677
    %v4679 = vrcp.pop %v4553
    %v4680 = vmul.f32 %v4553, %v4679
    %v4681 = vsub.f32 1.0, %v4680
    %v4682 = vmul.f32 %v4679, %v4681
    %v4683 = vadd.f32 %v4679, %v4682
    %vm4684 = vweird.f32 %v4553
    %vm4685 = vweird.f32 %v4679
    %vm4686 = vmor %vm4684, %vm4685
    %v4687 = vsel %vm4686, %v4679, %v4683
    %v4688 = vand.u32 2147483647, %v4553
    %vm4689 = vcmp.eq.f32.partialorder %v4688, 8.507059e+37
    %v4690 = vand.u32 %v4553, 2147483648
    %v4691 = vor.u32 1.1754944e-38, %v4690
    %v4692 = vsel %vm4689, %v4691, %v4687
    %v4693 = vmul.f32 1.0, %v4692
    %v4694 = vrcp.pop %v4554
    %v4695 = vmul.f32 %v4554, %v4694
    %v4696 = vsub.f32 1.0, %v4695
    %v4697 = vmul.f32 %v4694, %v4696
    %v4698 = vadd.f32 %v4694, %v4697
    %vm4699 = vweird.f32 %v4554
    %vm4700 = vweird.f32 %v4694
    %vm4701 = vmor %vm4699, %vm4700
    %v4702 = vsel %vm4701, %v4694, %v4698
    %v4703 = vand.u32 2147483647, %v4554
    %vm4704 = vcmp.eq.f32.partialorder %v4703, 8.507059e+37
    %v4705 = vand.u32 %v4554, 2147483648
    %v4706 = vor.u32 1.1754944e-38, %v4705
    %v4707 = vsel %vm4704, %v4706, %v4702
    %v4708 = vmul.f32 1.0, %v4707
    %v4709 = vrcp.pop %v4555
    %v4710 = vmul.f32 %v4555, %v4709
    %v4711 = vsub.f32 1.0, %v4710
    %v4712 = vmul.f32 %v4709, %v4711
    %v4713 = vadd.f32 %v4709, %v4712
    %vm4714 = vweird.f32 %v4555
    %vm4715 = vweird.f32 %v4709
    %vm4716 = vmor %vm4714, %vm4715
    %v4717 = vsel %vm4716, %v4709, %v4713
    %v4718 = vand.u32 2147483647, %v4555
    %vm4719 = vcmp.eq.f32.partialorder %v4718, 8.507059e+37
    %v4720 = vand.u32 %v4555, 2147483648
    %v4721 = vor.u32 1.1754944e-38, %v4720
    %v4722 = vsel %vm4719, %v4721, %v4717
    %v4723 = vmul.f32 1.0, %v4722
    %v4724 = vrcp.pop %v4556
    %v4725 = vmul.f32 %v4556, %v4724
    %v4726 = vsub.f32 1.0, %v4725
    %v4727 = vmul.f32 %v4724, %v4726
    %v4728 = vadd.f32 %v4724, %v4727
    %vm4729 = vweird.f32 %v4556
    %vm4730 = vweird.f32 %v4724
    %vm4731 = vmor %vm4729, %vm4730
    %v4732 = vsel %vm4731, %v4724, %v4728
    %v4733 = vand.u32 2147483647, %v4556
    %vm4734 = vcmp.eq.f32.partialorder %v4733, 8.507059e+37
    %v4735 = vand.u32 %v4556, 2147483648
    %v4736 = vor.u32 1.1754944e-38, %v4735
    %v4737 = vsel %vm4734, %v4736, %v4732
    %v4738 = vmul.f32 1.0, %v4737
    %v4739 = vrcp.pop %v4557
    %v4740 = vmul.f32 %v4557, %v4739
    %v4741 = vsub.f32 1.0, %v4740
    %v4742 = vmul.f32 %v4739, %v4741
    %v4743 = vadd.f32 %v4739, %v4742
    %vm4744 = vweird.f32 %v4557
    %vm4745 = vweird.f32 %v4739
    %vm4746 = vmor %vm4744, %vm4745
    %v4747 = vsel %vm4746, %v4739, %v4743
    %v4748 = vand.u32 2147483647, %v4557
    %vm4749 = vcmp.eq.f32.partialorder %v4748, 8.507059e+37
    %v4750 = vand.u32 %v4557, 2147483648
    %v4751 = vor.u32 1.1754944e-38, %v4750
    %v4752 = vsel %vm4749, %v4751, %v4747
    %v4753 = vmul.f32 1.0, %v4752
    %v4754 = vrcp.pop %v4558
    %v4755 = vmul.f32 %v4558, %v4754
    %v4756 = vsub.f32 1.0, %v4755
    %v4757 = vmul.f32 %v4754, %v4756
    %v4758 = vadd.f32 %v4754, %v4757
    %vm4759 = vweird.f32 %v4558
    %vm4760 = vweird.f32 %v4754
    %vm4761 = vmor %vm4759, %vm4760
    %v4762 = vsel %vm4761, %v4754, %v4758
    %v4763 = vand.u32 2147483647, %v4558
    %vm4764 = vcmp.eq.f32.partialorder %v4763, 8.507059e+37
    %v4765 = vand.u32 %v4558, 2147483648
    %v4766 = vor.u32 1.1754944e-38, %v4765
    %v4767 = vsel %vm4764, %v4766, %v4762
    %v4768 = vmul.f32 1.0, %v4767
    %4769 = vst [vmem:[%s10] sm:$0xff] %v4573
    %4770 = vst [vmem:[%s10 + $0x8] sm:$0xff] %v4588
    %4771 = vst [vmem:[%s10 + $0x10] sm:$0xff] %v4603
    %4772 = vst [vmem:[%s10 + $0x18] sm:$0xff] %v4618
    %4773 = vst [vmem:[%s10 + $0x20] sm:$0xff] %v4633
    %4774 = vst [vmem:[%s10 + $0x28] sm:$0xff] %v4648
    %4775 = vst [vmem:[%s10 + $0x30] sm:$0xff] %v4663
    %4776 = vst [vmem:[%s10 + $0x38] sm:$0xff] %v4678
    %4777 = vst [vmem:[%s10 + $0x40] sm:$0xff] %v4693
    %4778 = vst [vmem:[%s10 + $0x48] sm:$0xff] %v4708
    %4779 = vst [vmem:[%s10 + $0x50] sm:$0xff] %v4723
    %4780 = vst [vmem:[%s10 + $0x58] sm:$0xff] %v4738
    %4781 = vst [vmem:[%s10 + $0x60] sm:$0xff] %v4753
    %4782 = vst [vmem:[%s10 + $0x68] sm:$0xff] %v4768
    %4783 = vst [vmem:[%s11] sm:$0xff] %v2344
    %4784 = vst [vmem:[%s11 + $0x18] sm:$0xff] %v2346
    %4785 = vst [vmem:[%s11 + $0x8] sm:$0xff] %v2400
    %4786 = vst [vmem:[%s11 + $0x20] sm:$0xff] %v2402
    %4787 = vst [vmem:[%s11 + $0x10] sm:$0xff] %v2414
    %4788 = vst [vmem:[%s11 + $0x28] sm:$0xff] %v2415
    // Predicated region
    $region58: #{vae_forward.1} parent=1 // pred_check
      _
    $region59: #{vae_forward.1} parent=1 // pred_check_branch
      %4790 = sbr.rel (0) target = $region61
    $region60: #{vae_forward.1} parent=1 // pred_region
      _
    $region61: #{vae_forward.1} parent=1 // pred_fallthru
      _
    // Predicated region
    $region62: #{vae_forward.1} parent=1 // pred_check
      _
    $region63: #{vae_forward.1} parent=1 // pred_check_branch
      %4792 = sbr.rel (0) target = $region65
    $region64: #{vae_forward.1} parent=1 // pred_region
      _
    $region65: #{vae_forward.1} parent=1 // pred_fallthru
      _
    // Predicated region
    $region66: #{vae_forward.1} parent=1 // pred_check
      _
    $region67: #{vae_forward.1} parent=1 // pred_check_branch
      %4794 = sbr.rel (0) target = $region69
    $region68: #{vae_forward.1} parent=1 // pred_region
      _
    $region69: #{vae_forward.1} parent=1 // pred_fallthru
      _
    // Predicated region
    $region70: #{vae_forward.1} parent=1 // pred_check
      _
    $region71: #{vae_forward.1} parent=1 // pred_check_branch
      %4796 = sbr.rel (0) target = $region73
    $region72: #{vae_forward.1} parent=1 // pred_region
      _
    $region73: #{vae_forward.1} parent=1 // pred_fallthru
      _
    %4797 = vsyncpa [#allocation3], 1
    %4798 = vsyncpa [#allocation5], 1
    %4799 = vsyncpa [#allocation8], 1

</llo_original>
